<compile_context>
chip_gen: v7x
topology: tpu7x:2x2x1
jax: 0.10.0
libtpu: 0.0.40
codegen_flags: <defaults>
</compile_context>

<pallas_src>
import functools

import jax
import jax.numpy as jnp
import numpy as np
from jax import lax
from jax.experimental import pallas as pl
from jax.experimental.pallas import tpu as pltpu

_BN_EPS = 1e-5


# --------------------------------------------------------------------------
# Fused ShuffleUnit kernel
# --------------------------------------------------------------------------
def _shuffle_unit_kernel(*refs, downsample, use_se, use_residual,
                         tap_offsets, nq, inv_pool):
    it = iter(refs)
    x_ref = next(it)            # (1, Next, Cb)  padded+flattened branch input
    mi_ref = next(it)           # (Next, 1)      1.0 on real pixels, 0.0 on pad
    mo_ref = next(it)           # (nq, 1)        1.0 on valid output positions
    if downsample:
        sdw_ref, sds_ref, sdb_ref, scw_ref, scs_ref, scb_ref = (
            next(it) for _ in range(6))
    (w1_ref, s1_ref, b1_ref, wd_ref, sd_ref, bd_ref,
     w2_ref, s2_ref, b2_ref) = (next(it) for _ in range(9))
    if use_se:
        wse1_ref, bse1_ref, wse2_ref, bse2_ref = (next(it) for _ in range(4))
    if downsample:
        y1_ref = next(it)
    y2_ref = next(it)

    def conv1x1_bn(a, w_ref, s_ref, b_ref, relu=True):
        # (M, Cin) @ (Cin, Cout) on the MXU, folded-BN scale/bias (+ReLU) epilogue.
        y = jnp.dot(a, w_ref[...].astype(jnp.float32),
                    preferred_element_type=jnp.float32)
        y = y * s_ref[...] + b_ref[...]
        return jnp.maximum(y, 0.0) if relu else y

    def dwconv3x3_bn(a_ext, w_ref, s_ref, b_ref):
        # a_ext: (Next, C) flattened padded activation (zeros on the pad ring).
        # Each of the 9 taps is a static contiguous row-slice at a precomputed
        # flat offset (stride-2 offsets already account for the even/odd
        # row/col regrouping done by the wrapper).
        w9 = w_ref[...].astype(jnp.float32)                    # (9, C)
        acc = a_ext[tap_offsets[0]:tap_offsets[0] + nq, :] * w9[0:1, :]
        for k in range(1, 9):
            off = tap_offsets[k]
            acc = acc + a_ext[off:off + nq, :] * w9[k:k + 1, :]
        return acc * s_ref[...] + b_ref[...]                   # BN, no activation

    x = x_ref[0].astype(jnp.float32)                           # (Next, Cb)

    # ---- main branch: conv1 -> dw3x3 -> conv2 (+SE) (+residual) -------------
    mid = conv1x1_bn(x, w1_ref, s1_ref, b1_ref) * mi_ref[...]  # re-zero halo ring
    y2 = dwconv3x3_bn(mid, wd_ref, sd_ref, bd_ref)             # (nq, Cmid)
    y2 = conv1x1_bn(y2, w2_ref, s2_ref, b2_ref)                # (nq, Cout)
    if use_se:
        pooled = jnp.sum(y2 * mo_ref[...], axis=0, keepdims=True) * inv_pool
        h = jnp.dot(pooled, wse1_ref[...], preferred_element_type=jnp.float32)
        h = jnp.maximum(h + bse1_ref[...], 0.0)
        s = jnp.dot(h, wse2_ref[...], preferred_element_type=jnp.float32)
        y2 = y2 * jax.nn.sigmoid(s + bse2_ref[...])
    if use_residual and not downsample:
        center = tap_offsets[4]            # (+1,+1) tap == identity alignment
        y2 = y2 + x[center:center + nq, :]
    y2_ref[0] = y2.astype(y2_ref.dtype)

    # ---- shortcut branch (downsample only): dw3x3(s2) -> conv1x1 ------------
    if downsample:
        y1 = dwconv3x3_bn(x, sdw_ref, sds_ref, sdb_ref)        # input ring is 0
        y1 = conv1x1_bn(y1, scw_ref, scs_ref, scb_ref)
        y1_ref[0] = y1.astype(y1_ref.dtype)


# --------------------------------------------------------------------------
# Wrapper-side geometry / input preparation (XLA glue, cheap data movement)
# --------------------------------------------------------------------------
def _geometry(H, W, stride):
    Hp, Wp = H + 2, W + 2
    Ho, Wo = (H - 1) // stride + 1, (W - 1) // stride + 1
    if stride == 1:
        offs = tuple(kh * Wp + kw for kh in range(3) for kw in range(3))
    else:
        He, We = (Hp + 1) // 2, (Wp + 1) // 2      # even row/col group sizes
        offs = tuple((kh // 2 + He * (kh % 2)) * Wp + (kw // 2 + We * (kw % 2))
                     for kh in range(3) for kw in range(3))
    nq = Ho * Wp                                   # output rows, pitch Wp
    next_len = max(Hp * Wp, nq + max(offs))        # extended flat-input rows
    return Hp, Wp, Ho, Wo, offs, nq, next_len


def _even_odd_regroup(a):
    # (B, Hp, Wp, C): regroup rows then cols as [evens..., odds...]
    a = jnp.concatenate([a[:, 0::2], a[:, 1::2]], axis=1)
    return jnp.concatenate([a[:, :, 0::2], a[:, :, 1::2]], axis=2)


def _prepare_branch_input(x_nhwc, stride):
    B, H, W, C = x_nhwc.shape
    Hp, Wp, Ho, Wo, offs, nq, next_len = _geometry(H, W, stride)
    xp = jnp.pad(x_nhwc, ((0, 0), (1, 1), (1, 1), (0, 0)))
    mask = jnp.zeros((1, Hp, Wp, 1), x_nhwc.dtype)
    mask = mask.at[:, 1:H + 1, 1:W + 1, :].set(1.0)
    if stride == 2:
        xp = _even_odd_regroup(xp)
        mask = _even_odd_regroup(mask)
    xf = xp.reshape(B, Hp * Wp, C)
    mi = mask.reshape(Hp * Wp, 1)
    extra = next_len - Hp * Wp
    if extra:
        xf = jnp.pad(xf, ((0, 0), (0, extra), (0, 0)))
        mi = jnp.pad(mi, ((0, extra), (0, 0)))
    mo = jnp.zeros((Ho, Wp), x_nhwc.dtype).at[:, :Wo].set(1.0).reshape(nq, 1)
    return xf, mi, mo, offs, nq, Ho, Wo, Wp


# --------------------------------------------------------------------------
# Parameter init (deterministic, synthetic) with BatchNorm folded to scale/bias
# --------------------------------------------------------------------------
def _fold_bn(gamma, beta, mean, var):
    scale = gamma / jnp.sqrt(var + _BN_EPS)
    bias = beta - mean * scale
    return scale, bias


def init_conv1x1_block(key, cin, cout):
    ks = jax.random.split(key, 5)
    w = jax.random.normal(ks[0], (cin, cout), jnp.float32) * 0.1
    gamma = jax.random.uniform(ks[1], (cout,), jnp.float32, 0.5, 1.5)
    beta = jax.random.normal(ks[2], (cout,), jnp.float32) * 0.1
    mean = jax.random.normal(ks[3], (cout,), jnp.float32) * 0.1
    var = jax.random.uniform(ks[4], (cout,), jnp.float32, 0.5, 1.5)
    scale, bias = _fold_bn(gamma, beta, mean, var)
    return dict(w=w, scale=scale, bias=bias)


def init_dwconv3x3_block(key, channels):
    ks = jax.random.split(key, 5)
    w = jax.random.normal(ks[0], (3, 3, channels), jnp.float32) * 0.1
    gamma = jax.random.uniform(ks[1], (channels,), jnp.float32, 0.5, 1.5)
    beta = jax.random.normal(ks[2], (channels,), jnp.float32) * 0.1
    mean = jax.random.normal(ks[3], (channels,), jnp.float32) * 0.1
    var = jax.random.uniform(ks[4], (channels,), jnp.float32, 0.5, 1.5)
    scale, bias = _fold_bn(gamma, beta, mean, var)
    return dict(w=w, scale=scale, bias=bias)


def init_se_block(key, channels, reduction=16):
    mid = max(channels // reduction, 1)
    ks = jax.random.split(key, 4)
    return dict(
        w1=jax.random.normal(ks[0], (channels, mid), jnp.float32) * 0.1,
        b1=jax.random.normal(ks[1], (mid,), jnp.float32) * 0.1,
        w2=jax.random.normal(ks[2], (mid, channels), jnp.float32) * 0.1,
        b2=jax.random.normal(ks[3], (channels,), jnp.float32) * 0.1,
    )


# --------------------------------------------------------------------------
# ShuffleUnit (JAX/Pallas)
# --------------------------------------------------------------------------
def channel_shuffle_nhwc(x, groups, group_first):
    B, H, W, C = x.shape
    cpg = C // groups
    if group_first:   # ChannelShuffle  (group-first split)
        x = x.reshape(B, H, W, groups, cpg).transpose(0, 1, 2, 4, 3)
    else:             # ChannelShuffle2 (channels-per-group-first split)
        x = x.reshape(B, H, W, cpg, groups).transpose(0, 1, 2, 4, 3)
    return x.reshape(B, H, W, C)


class ShuffleUnitPallas:
    def __init__(self, key, in_channels, out_channels, downsample, use_se,
                 use_residual, shuffle_group_first):
        assert in_channels % 2 == 0
        self.downsample = downsample
        self.use_se = use_se
        self.use_residual = use_residual
        self.shuffle_group_first = shuffle_group_first
        mid_channels = out_channels // 2
        in_channels2 = in_channels // 2
        y2_in = in_channels if downsample else in_channels2
        y2_out = out_channels - y2_in
        ks = jax.random.split(key, 6)
        self.conv1 = init_conv1x1_block(ks[0], y2_in, mid_channels)
        self.dconv = init_dwconv3x3_block(ks[1], mid_channels)
        self.conv2 = init_conv1x1_block(ks[2], mid_channels, y2_out)
        self.se = init_se_block(ks[3], y2_out) if use_se else None
        if downsample:
            self.shortcut_dconv = init_dwconv3x3_block(ks[4], in_channels)
            self.shortcut_conv = init_conv1x1_block(ks[5], in_channels, in_channels)

    def __call__(self, x_nchw):
        x = jnp.transpose(x_nchw, (0, 2, 3, 1))            # NCHW -> NHWC
        B, H, W, cin = x.shape
        stride = 2 if self.downsample else 1
        if self.downsample:
            x_branch = x
        else:
            y1_direct = x[..., : cin // 2]
            x_branch = x[..., cin // 2:]
        xf, mi, mo, offs, nq, Ho, Wo, Wp = _prepare_branch_input(x_branch, stride)
        cb = x_branch.shape[-1]
        cout = self.conv2["w"].shape[1]

        inputs = [xf, mi, mo]
        in_specs = [
            pl.BlockSpec((1, xf.shape[1], cb), lambda b: (b, 0, 0)),
            pl.BlockSpec(mi.shape, lambda b: (0, 0)),
            pl.BlockSpec(mo.shape, lambda b: (0, 0)),
        ]

        def add_const(arr):
            inputs.append(arr)
            in_specs.append(
                pl.BlockSpec(arr.shape, lambda b, n=arr.ndim: (0,) * n))

        if self.downsample:
            for a in (self.shortcut_dconv["w"].reshape(9, -1),
                      self.shortcut_dconv["scale"][None, :],
                      self.shortcut_dconv["bias"][None, :],
                      self.shortcut_conv["w"],
                      self.shortcut_conv["scale"][None, :],
                      self.shortcut_conv["bias"][None, :]):
                add_const(a)
        for a in (self.conv1["w"], self.conv1["scale"][None, :],
                  self.conv1["bias"][None, :],
                  self.dconv["w"].reshape(9, -1),
                  self.dconv["scale"][None, :], self.dconv["bias"][None, :],
                  self.conv2["w"], self.conv2["scale"][None, :],
                  self.conv2["bias"][None, :]):
            add_const(a)
        if self.use_se:
            for a in (self.se["w1"], self.se["b1"][None, :],
                      self.se["w2"], self.se["b2"][None, :]):
                add_const(a)

        out_shapes = [jax.ShapeDtypeStruct((B, nq, cout), x.dtype)]
        out_specs = [pl.BlockSpec((1, nq, cout), lambda b: (b, 0, 0))]
        if self.downsample:
            out_shapes.insert(0, jax.ShapeDtypeStruct((B, nq, cin), x.dtype))
            out_specs.insert(0, pl.BlockSpec((1, nq, cin), lambda b: (b, 0, 0)))

        kernel = functools.partial(
            _shuffle_unit_kernel,
            downsample=self.downsample, use_se=self.use_se,
            use_residual=self.use_residual, tap_offsets=offs, nq=nq,
            inv_pool=1.0 / float(Ho * Wo))

        outs = pl.pallas_call(
            kernel,
            grid=(B,),
            in_specs=in_specs,
            out_specs=tuple(out_specs) if len(out_specs) > 1 else out_specs[0],
            out_shape=tuple(out_shapes) if len(out_shapes) > 1 else out_shapes[0],
            compiler_params=pltpu.CompilerParams(
                dimension_semantics=("parallel",),
                vmem_limit_bytes=32 * 1024 * 1024),
        )(*inputs)

        if self.downsample:
            y1_flat, y2_flat = outs
            y1 = y1_flat.reshape(B, Ho, Wp, cin)[:, :, :Wo, :]
        else:
            y2_flat = outs
            y1 = y1_direct
        y2 = y2_flat.reshape(B, Ho, Wp, cout)[:, :, :Wo, :]
        out = jnp.concatenate([y1, y2], axis=-1)           # glue: concat + shuffle
        out = channel_shuffle_nhwc(out, groups=2,
                                   group_first=self.shuffle_group_first)
        return jnp.transpose(out, (0, 3, 1, 2))            # NHWC -> NCHW


# --------------------------------------------------------------------------
# Pure-JAX reference (lax.conv) for validation
# --------------------------------------------------------------------------
def _ref_conv1x1(x, p, relu):
    w = p["w"][None, None, :, :]
    y = lax.conv_general_dilated(x, w, (1, 1), "VALID",
                                 dimension_numbers=("NHWC", "HWIO", "NHWC"))
    y = y * p["scale"] + p["bias"]
    return jnp.maximum(y, 0.0) if relu else y


def _ref_dwconv(x, p, stride):
    C = x.shape[-1]
    w = p["w"].reshape(3, 3, 1, C)
    y = lax.conv_general_dilated(x, w, (stride, stride), ((1, 1), (1, 1)),
                                 dimension_numbers=("NHWC", "HWIO", "NHWC"),
                                 feature_group_count=C)
    return y * p["scale"] + p["bias"]


def _ref_se(x, p):
    pooled = jnp.mean(x, axis=(1, 2))
    h = jnp.maximum(pooled @ p["w1"] + p["b1"], 0.0)
    s = jax.nn.sigmoid(h @ p["w2"] + p["b2"])
    return x * s[:, None, None, :]


def ref_forward(unit, x_nchw):
    x = jnp.transpose(x_nchw, (0, 2, 3, 1))
    if unit.downsample:
        y1 = _ref_dwconv(x, unit.shortcut_dconv, 2)
        y1 = _ref_conv1x1(y1, unit.shortcut_conv, True)
        x2 = x
    else:
        C = x.shape[-1]
        y1, x2 = x[..., : C // 2], x[..., C // 2:]
    y2 = _ref_conv1x1(x2, unit.conv1, True)
    y2 = _ref_dwconv(y2, unit.dconv, 2 if unit.downsample else 1)
    y2 = _ref_conv1x1(y2, unit.conv2, True)
    if unit.use_se:
        y2 = _ref_se(y2, unit.se)
    if unit.use_residual and (not unit.downsample):
        y2 = y2 + x2
    out = jnp.concatenate([y1, y2], axis=-1)
    out = channel_shuffle_nhwc(out, 2, unit.shuffle_group_first)
    return jnp.transpose(out, (0, 3, 1, 2))


# --------------------------------------------------------------------------
if __name__ == "__main__":
    key = jax.random.PRNGKey(0)
    configs = [
        # (in_c, out_c, downsample, use_se, use_residual, group_first, B, HW)
        (4, 4, False, False, True, True, 2, 16),
        (4, 8, True, False, False, False, 2, 16),
        (32, 32, False, True, True, True, 2, 8),
    ]
    for idx, (cin, cout, down, se, res, gf, B, HW) in enumerate(configs):
        kparams, kx = jax.random.split(jax.random.fold_in(key, idx))
        unit = ShuffleUnitPallas(kparams, cin, cout, down, se, res, gf)
        x = jax.random.normal(kx, (B, cin, HW, HW), jnp.float32)
        out = jax.block_until_ready(unit(x))
        ref = jax.block_until_ready(ref_forward(unit, x))
        assert out.shape == ref.shape, (out.shape, ref.shape)
        if not np.allclose(np.asarray(out), np.asarray(ref), rtol=1e-4, atol=1e-4):
            raise AssertionError(f"config {idx}: Pallas output mismatch vs reference")
    print("KERNEL_OK")
</pallas_src>

<mosaic_0001>
module attributes {stable_mosaic.version = 11 : i64} {
  func.func @_shuffle_unit_kernel(%arg0: i32, %arg1: memref<1x326x2xf32, #tpu.memory_space<vmem>>, %arg2: memref<326x1xf32, #tpu.memory_space<vmem>>, %arg3: memref<288x1xf32, #tpu.memory_space<vmem>>, %arg4: memref<2x2xf32, #tpu.memory_space<vmem>>, %arg5: memref<1x2xf32, #tpu.memory_space<vmem>>, %arg6: memref<1x2xf32, #tpu.memory_space<vmem>>, %arg7: memref<9x2xf32, #tpu.memory_space<vmem>>, %arg8: memref<1x2xf32, #tpu.memory_space<vmem>>, %arg9: memref<1x2xf32, #tpu.memory_space<vmem>>, %arg10: memref<2x2xf32, #tpu.memory_space<vmem>>, %arg11: memref<1x2xf32, #tpu.memory_space<vmem>>, %arg12: memref<1x2xf32, #tpu.memory_space<vmem>>, %arg13: memref<1x288x2xf32, #tpu.memory_space<vmem>>) attributes {dimension_semantics = [#tpu.dimension_semantics<parallel>], iteration_bounds = array<i64: 2>, scalar_prefetch = 0 : i64, scratch_operands = 0 : i64, tpu.core_type = #tpu.core_type<tc>, window_params = [{transform_indices = @transform_0, window_bounds = array<i64: 1, 326, 2>}, {pipeline_mode = #tpu.pipeline_mode<synchronous>, transform_indices = @transform_1, window_bounds = array<i64: 326, 1>}, {pipeline_mode = #tpu.pipeline_mode<synchronous>, transform_indices = @transform_2, window_bounds = array<i64: 288, 1>}, {pipeline_mode = #tpu.pipeline_mode<synchronous>, transform_indices = @transform_3, window_bounds = array<i64: 2, 2>}, {pipeline_mode = #tpu.pipeline_mode<synchronous>, transform_indices = @transform_4, window_bounds = array<i64: 1, 2>}, {pipeline_mode = #tpu.pipeline_mode<synchronous>, transform_indices = @transform_5, window_bounds = array<i64: 1, 2>}, {pipeline_mode = #tpu.pipeline_mode<synchronous>, transform_indices = @transform_6, window_bounds = array<i64: 9, 2>}, {pipeline_mode = #tpu.pipeline_mode<synchronous>, transform_indices = @transform_7, window_bounds = array<i64: 1, 2>}, {pipeline_mode = #tpu.pipeline_mode<synchronous>, transform_indices = @transform_8, window_bounds = array<i64: 1, 2>}, {pipeline_mode = #tpu.pipeline_mode<synchronous>, transform_indices = @transform_9, window_bounds = array<i64: 2, 2>}, {pipeline_mode = #tpu.pipeline_mode<synchronous>, transform_indices = @transform_10, window_bounds = array<i64: 1, 2>}, {pipeline_mode = #tpu.pipeline_mode<synchronous>, transform_indices = @transform_11, window_bounds = array<i64: 1, 2>}, {transform_indices = @transform_12, window_bounds = array<i64: 1, 288, 2>}]} {
    %c0 = arith.constant 0 : index
    %c0_0 = arith.constant 0 : index
    %c0_1 = arith.constant 0 : index
    %0 = vector.load %arg1[%c0, %c0_0, %c0_1] : memref<1x326x2xf32, #tpu.memory_space<vmem>>, vector<1x326x2xf32>
    %1 = vector.shape_cast %0 : vector<1x326x2xf32> to vector<326x2xf32>
    %c0_2 = arith.constant 0 : index
    %c0_3 = arith.constant 0 : index
    %2 = vector.load %arg4[%c0_2, %c0_3] : memref<2x2xf32, #tpu.memory_space<vmem>>, vector<2x2xf32>
    %cst = arith.constant dense<0.000000e+00> : vector<326x2xf32>
    %3 = tpu.matmul %1, %2, %cst {dimension_numbers = #tpu.dot_dimension_numbers<[1], [0], [0], [1], [0, 0, 1, 1], [], []>} : vector<326x2xf32>, vector<2x2xf32>, vector<326x2xf32> -> vector<326x2xf32>
    %c0_4 = arith.constant 0 : index
    %c0_5 = arith.constant 0 : index
    %4 = vector.load %arg5[%c0_4, %c0_5] : memref<1x2xf32, #tpu.memory_space<vmem>>, vector<1x2xf32>
    %5 = vector.broadcast %4 : vector<1x2xf32> to vector<326x2xf32>
    %6 = arith.mulf %3, %5 : vector<326x2xf32>
    %c0_6 = arith.constant 0 : index
    %c0_7 = arith.constant 0 : index
    %7 = vector.load %arg6[%c0_6, %c0_7] : memref<1x2xf32, #tpu.memory_space<vmem>>, vector<1x2xf32>
    %8 = vector.broadcast %7 : vector<1x2xf32> to vector<326x2xf32>
    %9 = arith.addf %6, %8 : vector<326x2xf32>
    %cst_8 = arith.constant 0.000000e+00 : f32
    %10 = vector.broadcast %cst_8 : f32 to vector<326x2xf32>
    %11 = arith.maximumf %9, %10 : vector<326x2xf32>
    %c0_9 = arith.constant 0 : index
    %c0_10 = arith.constant 0 : index
    %12 = vector.load %arg2[%c0_9, %c0_10] : memref<326x1xf32, #tpu.memory_space<vmem>>, vector<326x1xf32>
    %13 = vector.broadcast %12 : vector<326x1xf32> to vector<326x2xf32>
    %14 = arith.mulf %11, %13 : vector<326x2xf32>
    %c0_11 = arith.constant 0 : index
    %c0_12 = arith.constant 0 : index
    %15 = vector.load %arg7[%c0_11, %c0_12] : memref<9x2xf32, #tpu.memory_space<vmem>>, vector<9x2xf32>
    %16 = vector.extract_strided_slice %14 {offsets = [0, 0], sizes = [288, 2], strides = [1, 1]} : vector<326x2xf32> to vector<288x2xf32>
    %17 = vector.extract_strided_slice %15 {offsets = [0, 0], sizes = [1, 2], strides = [1, 1]} : vector<9x2xf32> to vector<1x2xf32>
    %18 = vector.broadcast %17 : vector<1x2xf32> to vector<288x2xf32>
    %19 = arith.mulf %16, %18 : vector<288x2xf32>
    %20 = vector.extract_strided_slice %14 {offsets = [1, 0], sizes = [288, 2], strides = [1, 1]} : vector<326x2xf32> to vector<288x2xf32>
    %21 = vector.extract_strided_slice %15 {offsets = [1, 0], sizes = [1, 2], strides = [1, 1]} : vector<9x2xf32> to vector<1x2xf32>
    %22 = vector.broadcast %21 : vector<1x2xf32> to vector<288x2xf32>
    %23 = arith.mulf %20, %22 : vector<288x2xf32>
    %24 = arith.addf %19, %23 : vector<288x2xf32>
    %25 = vector.extract_strided_slice %14 {offsets = [2, 0], sizes = [288, 2], strides = [1, 1]} : vector<326x2xf32> to vector<288x2xf32>
    %26 = vector.extract_strided_slice %15 {offsets = [2, 0], sizes = [1, 2], strides = [1, 1]} : vector<9x2xf32> to vector<1x2xf32>
    %27 = vector.broadcast %26 : vector<1x2xf32> to vector<288x2xf32>
    %28 = arith.mulf %25, %27 : vector<288x2xf32>
    %29 = arith.addf %24, %28 : vector<288x2xf32>
    %30 = vector.extract_strided_slice %14 {offsets = [18, 0], sizes = [288, 2], strides = [1, 1]} : vector<326x2xf32> to vector<288x2xf32>
    %31 = vector.extract_strided_slice %15 {offsets = [3, 0], sizes = [1, 2], strides = [1, 1]} : vector<9x2xf32> to vector<1x2xf32>
    %32 = vector.broadcast %31 : vector<1x2xf32> to vector<288x2xf32>
    %33 = arith.mulf %30, %32 : vector<288x2xf32>
    %34 = arith.addf %29, %33 : vector<288x2xf32>
    %35 = vector.extract_strided_slice %14 {offsets = [19, 0], sizes = [288, 2], strides = [1, 1]} : vector<326x2xf32> to vector<288x2xf32>
    %36 = vector.extract_strided_slice %15 {offsets = [4, 0], sizes = [1, 2], strides = [1, 1]} : vector<9x2xf32> to vector<1x2xf32>
    %37 = vector.broadcast %36 : vector<1x2xf32> to vector<288x2xf32>
    %38 = arith.mulf %35, %37 : vector<288x2xf32>
    %39 = arith.addf %34, %38 : vector<288x2xf32>
    %40 = vector.extract_strided_slice %14 {offsets = [20, 0], sizes = [288, 2], strides = [1, 1]} : vector<326x2xf32> to vector<288x2xf32>
    %41 = vector.extract_strided_slice %15 {offsets = [5, 0], sizes = [1, 2], strides = [1, 1]} : vector<9x2xf32> to vector<1x2xf32>
    %42 = vector.broadcast %41 : vector<1x2xf32> to vector<288x2xf32>
    %43 = arith.mulf %40, %42 : vector<288x2xf32>
    %44 = arith.addf %39, %43 : vector<288x2xf32>
    %45 = vector.extract_strided_slice %14 {offsets = [36, 0], sizes = [288, 2], strides = [1, 1]} : vector<326x2xf32> to vector<288x2xf32>
    %46 = vector.extract_strided_slice %15 {offsets = [6, 0], sizes = [1, 2], strides = [1, 1]} : vector<9x2xf32> to vector<1x2xf32>
    %47 = vector.broadcast %46 : vector<1x2xf32> to vector<288x2xf32>
    %48 = arith.mulf %45, %47 : vector<288x2xf32>
    %49 = arith.addf %44, %48 : vector<288x2xf32>
    %50 = vector.extract_strided_slice %14 {offsets = [37, 0], sizes = [288, 2], strides = [1, 1]} : vector<326x2xf32> to vector<288x2xf32>
    %51 = vector.extract_strided_slice %15 {offsets = [7, 0], sizes = [1, 2], strides = [1, 1]} : vector<9x2xf32> to vector<1x2xf32>
    %52 = vector.broadcast %51 : vector<1x2xf32> to vector<288x2xf32>
    %53 = arith.mulf %50, %52 : vector<288x2xf32>
    %54 = arith.addf %49, %53 : vector<288x2xf32>
    %55 = vector.extract_strided_slice %14 {offsets = [38, 0], sizes = [288, 2], strides = [1, 1]} : vector<326x2xf32> to vector<288x2xf32>
    %56 = vector.extract_strided_slice %15 {offsets = [8, 0], sizes = [1, 2], strides = [1, 1]} : vector<9x2xf32> to vector<1x2xf32>
    %57 = vector.broadcast %56 : vector<1x2xf32> to vector<288x2xf32>
    %58 = arith.mulf %55, %57 : vector<288x2xf32>
    %59 = arith.addf %54, %58 : vector<288x2xf32>
    %c0_13 = arith.constant 0 : index
    %c0_14 = arith.constant 0 : index
    %60 = vector.load %arg8[%c0_13, %c0_14] : memref<1x2xf32, #tpu.memory_space<vmem>>, vector<1x2xf32>
    %61 = vector.broadcast %60 : vector<1x2xf32> to vector<288x2xf32>
    %62 = arith.mulf %59, %61 : vector<288x2xf32>
    %c0_15 = arith.constant 0 : index
    %c0_16 = arith.constant 0 : index
    %63 = vector.load %arg9[%c0_15, %c0_16] : memref<1x2xf32, #tpu.memory_space<vmem>>, vector<1x2xf32>
    %64 = vector.broadcast %63 : vector<1x2xf32> to vector<288x2xf32>
    %65 = arith.addf %62, %64 : vector<288x2xf32>
    %c0_17 = arith.constant 0 : index
    %c0_18 = arith.constant 0 : index
    %66 = vector.load %arg10[%c0_17, %c0_18] : memref<2x2xf32, #tpu.memory_space<vmem>>, vector<2x2xf32>
    %cst_19 = arith.constant dense<0.000000e+00> : vector<288x2xf32>
    %67 = tpu.matmul %65, %66, %cst_19 {dimension_numbers = #tpu.dot_dimension_numbers<[1], [0], [0], [1], [0, 0, 1, 1], [], []>} : vector<288x2xf32>, vector<2x2xf32>, vector<288x2xf32> -> vector<288x2xf32>
    %c0_20 = arith.constant 0 : index
    %c0_21 = arith.constant 0 : index
    %68 = vector.load %arg11[%c0_20, %c0_21] : memref<1x2xf32, #tpu.memory_space<vmem>>, vector<1x2xf32>
    %69 = vector.broadcast %68 : vector<1x2xf32> to vector<288x2xf32>
    %70 = arith.mulf %67, %69 : vector<288x2xf32>
    %c0_22 = arith.constant 0 : index
    %c0_23 = arith.constant 0 : index
    %71 = vector.load %arg12[%c0_22, %c0_23] : memref<1x2xf32, #tpu.memory_space<vmem>>, vector<1x2xf32>
    %72 = vector.broadcast %71 : vector<1x2xf32> to vector<288x2xf32>
    %73 = arith.addf %70, %72 : vector<288x2xf32>
    %cst_24 = arith.constant 0.000000e+00 : f32
    %74 = vector.broadcast %cst_24 : f32 to vector<288x2xf32>
    %75 = arith.maximumf %73, %74 : vector<288x2xf32>
    %76 = vector.extract_strided_slice %1 {offsets = [19, 0], sizes = [288, 2], strides = [1, 1]} : vector<326x2xf32> to vector<288x2xf32>
    %77 = arith.addf %75, %76 : vector<288x2xf32>
    %c0_25 = arith.constant 0 : index
    %c0_26 = arith.constant 0 : index
    %c0_27 = arith.constant 0 : index
    %78 = vector.load %arg13[%c0_25, %c0_26, %c0_27] : memref<1x288x2xf32, #tpu.memory_space<vmem>>, vector<1x288x2xf32>
    %79 = vector.shape_cast %78 : vector<1x288x2xf32> to vector<288x2xf32>
    %80 = vector.shape_cast %77 : vector<288x2xf32> to vector<1x288x2xf32>
    tpu.vector_store %arg13[%c0_25, %c0_26, %c0_27], %80 {strides = array<i32>} : memref<1x288x2xf32, #tpu.memory_space<vmem>>, vector<1x288x2xf32>,
    return
  }
  func.func @transform_0(%arg0: i32) -> (i32, i32, i32) {
    %c0_i32 = arith.constant 0 : i32
    %c0_i32_0 = arith.constant 0 : i32
    %c0_i32_1 = arith.constant 0 : i32
    return %arg0, %c0_i32, %c0_i32_0 : i32, i32, i32
  }
  func.func @transform_1(%arg0: i32) -> (i32, i32) {
    %c0_i32 = arith.constant 0 : i32
    %c0_i32_0 = arith.constant 0 : i32
    %c0_i32_1 = arith.constant 0 : i32
    return %c0_i32, %c0_i32_0 : i32, i32
  }
  func.func @transform_2(%arg0: i32) -> (i32, i32) {
    %c0_i32 = arith.constant 0 : i32
    %c0_i32_0 = arith.constant 0 : i32
    %c0_i32_1 = arith.constant 0 : i32
    return %c0_i32, %c0_i32_0 : i32, i32
  }
  func.func @transform_3(%arg0: i32) -> (i32, i32) {
    %c0_i32 = arith.constant 0 : i32
    %c0_i32_0 = arith.constant 0 : i32
    %c0_i32_1 = arith.constant 0 : i32
    return %c0_i32, %c0_i32_0 : i32, i32
  }
  func.func @transform_4(%arg0: i32) -> (i32, i32) {
    %c0_i32 = arith.constant 0 : i32
    %c0_i32_0 = arith.constant 0 : i32
    %c0_i32_1 = arith.constant 0 : i32
    return %c0_i32, %c0_i32_0 : i32, i32
  }
  func.func @transform_5(%arg0: i32) -> (i32, i32) {
    %c0_i32 = arith.constant 0 : i32
    %c0_i32_0 = arith.constant 0 : i32
    %c0_i32_1 = arith.constant 0 : i32
    return %c0_i32, %c0_i32_0 : i32, i32
  }
  func.func @transform_6(%arg0: i32) -> (i32, i32) {
    %c0_i32 = arith.constant 0 : i32
    %c0_i32_0 = arith.constant 0 : i32
    %c0_i32_1 = arith.constant 0 : i32
    return %c0_i32, %c0_i32_0 : i32, i32
  }
  func.func @transform_7(%arg0: i32) -> (i32, i32) {
    %c0_i32 = arith.constant 0 : i32
    %c0_i32_0 = arith.constant 0 : i32
    %c0_i32_1 = arith.constant 0 : i32
    return %c0_i32, %c0_i32_0 : i32, i32
  }
  func.func @transform_8(%arg0: i32) -> (i32, i32) {
    %c0_i32 = arith.constant 0 : i32
    %c0_i32_0 = arith.constant 0 : i32
    %c0_i32_1 = arith.constant 0 : i32
    return %c0_i32, %c0_i32_0 : i32, i32
  }
  func.func @transform_9(%arg0: i32) -> (i32, i32) {
    %c0_i32 = arith.constant 0 : i32
    %c0_i32_0 = arith.constant 0 : i32
    %c0_i32_1 = arith.constant 0 : i32
    return %c0_i32, %c0_i32_0 : i32, i32
  }
  func.func @transform_10(%arg0: i32) -> (i32, i32) {
    %c0_i32 = arith.constant 0 : i32
    %c0_i32_0 = arith.constant 0 : i32
    %c0_i32_1 = arith.constant 0 : i32
    return %c0_i32, %c0_i32_0 : i32, i32
  }
  func.func @transform_11(%arg0: i32) -> (i32, i32) {
    %c0_i32 = arith.constant 0 : i32
    %c0_i32_0 = arith.constant 0 : i32
    %c0_i32_1 = arith.constant 0 : i32
    return %c0_i32, %c0_i32_0 : i32, i32
  }
  func.func @transform_12(%arg0: i32) -> (i32, i32, i32) {
    %c0_i32 = arith.constant 0 : i32
    %c0_i32_0 = arith.constant 0 : i32
    %c0_i32_1 = arith.constant 0 : i32
    return %arg0, %c0_i32, %c0_i32_0 : i32, i32, i32
  }
}

</mosaic_0001>

<llo_original>
// kernel: tpu_custom_call.1
$region0: #{tpu_custom_call.1}
  #allocation0 [shape = 'u32[]', space=smem, size = 0x4, offset = 0x4, fixed_abs, tag = 'smem constant byte address 0x4 - core index']
  #allocation1 [shape = 'u32[144,128]{1,0:T(1,128)}', space=vmem, size = 0x12000, scoped, tag = 'internal scratch']
  %s0 = inlined_call_operand.vmem [shape: f32[2,326,2], index: 0, kind: input, shape index: {}]
  %s1 = inlined_call_operand.vmem [shape: f32[326,1], index: 1, kind: input, shape index: {}]
  %s2 = inlined_call_operand.vmem [shape: f32[288,1], index: 2, kind: input, shape index: {}]
  %s3 = inlined_call_operand.vmem [shape: f32[2,2], index: 3, kind: input, shape index: {}]
  %s4 = inlined_call_operand.vmem [shape: f32[1,2], index: 4, kind: input, shape index: {}]
  %s5 = inlined_call_operand.vmem [shape: f32[1,2], index: 5, kind: input, shape index: {}]
  %s6 = inlined_call_operand.vmem [shape: f32[9,2], index: 6, kind: input, shape index: {}]
  %s7 = inlined_call_operand.vmem [shape: f32[1,2], index: 7, kind: input, shape index: {}]
  %s8 = inlined_call_operand.vmem [shape: f32[1,2], index: 8, kind: input, shape index: {}]
  %s9 = inlined_call_operand.vmem [shape: f32[2,2], index: 9, kind: input, shape index: {}]
  %s10 = inlined_call_operand.vmem [shape: f32[1,2], index: 10, kind: input, shape index: {}]
  %s11 = inlined_call_operand.vmem [shape: f32[1,2], index: 11, kind: input, shape index: {}]
  %s12 = inlined_call_operand.vmem [shape: f32[2,288,2], index: 12, kind: output, shape index: {}]
  %s13 = sld [smem:[#allocation0]]
  $region81: #{tpu_custom_call.1} parent=0
    _
  %s15 = ssub.s32 1, %s13
  %s16 = scalar_select 0, %s15, %s13
  loop: start=0, step=1, limit=4
  $region2: #{tpu_custom_call.1} parent=0 // loop_pre_header
    _
  $region3: #{tpu_custom_call.1} parent=0 // loop_header
    %s18 = sphi 0, %s22
    %p19 = scmp.ge.s32.totalorder %s18, 4
    %s28 = sphi 0, %s30
    %s31 = sphi 0, %s28
    %s32 = sphi 0, %s31
    %s48 = sphi 0, %s32
    %s52 = sphi 0, %s52
    %s54 = sphi 0, %s52
    %s55 = sphi 0, %s54
    %s69 = sphi 0, %s55
    %s73 = sphi 0, %s73
    %s75 = sphi 0, %s73
    %s76 = sphi 0, %s75
    %s90 = sphi 0, %s76
    %s94 = sphi 0, %s94
    %s96 = sphi 0, %s94
    %s97 = sphi 0, %s96
    %s111 = sphi 0, %s97
    %s115 = sphi 0, %s115
    %s117 = sphi 0, %s115
    %s118 = sphi 0, %s117
    %s132 = sphi 0, %s118
    %s136 = sphi 0, %s136
    %s138 = sphi 0, %s136
    %s139 = sphi 0, %s138
    %s153 = sphi 0, %s139
    %s157 = sphi 0, %s157
    %s159 = sphi 0, %s157
    %s160 = sphi 0, %s159
    %s174 = sphi 0, %s160
    %s178 = sphi 0, %s178
    %s180 = sphi 0, %s178
    %s181 = sphi 0, %s180
    %s195 = sphi 0, %s181
    %s199 = sphi 0, %s199
    %s201 = sphi 0, %s199
    %s202 = sphi 0, %s201
    %s216 = sphi 0, %s202
    %s220 = sphi 0, %s220
    %s222 = sphi 0, %s220
    %s223 = sphi 0, %s222
    %s237 = sphi 0, %s223
    %s241 = sphi 0, %s241
    %s243 = sphi 0, %s241
    %s244 = sphi 0, %s243
    %s258 = sphi 0, %s244
    %s262 = sphi 0, %s262
    %s264 = sphi 0, %s262
    %s265 = sphi 0, %s264
    %s279 = sphi 0, %s265
    %s285 = sphi 0, %s287
    %s288 = sphi 0, %s285
    %s289 = sphi 0, %s288
    %s305 = sphi 0, %s289
  $region4: #{tpu_custom_call.1} parent=0 // loop_header_branch
    %21 = sbr.rel (%p19) target = $region8
  $region5: #{tpu_custom_call.1} parent=0 // loop_body
    %s23 = ssub.s32 %s18, 1
    %s24 = ssub.s32 %s18, 2
    %s25 = sadd.s32 %s18, 1
    %s26 = ssub.s32 %s18, %s25
    %p27 = scmp.eq.s32.totalorder %s26, 0
    %s29 = sadd.s32 %s28, 1
    %s30 = scalar_select %p27, %s28, %s29
    %p33 = pneg %p27
    %p34 = scmp.eq.s32.totalorder %s18, 1
    %p35 = por %p33, %p34
    %p36 = scmp.ne.s32.totalorder %s28, %s31
    %p37 = scmp.eq.s32.totalorder %s18, 0
    %p38 = por %p36, %p37
    %p39 = scmp.ne.s32.totalorder %s28, %s31
    %p40 = scmp.eq.s32.totalorder %s23, 1
    %p41 = por %p39, %p40
    %p42 = scmp.ne.s32.totalorder %s31, %s32
    %p43 = scmp.eq.s32.totalorder %s23, 0
    %p44 = por %p42, %p43
    %p45 = scmp.ne.s32.totalorder %s31, %s32
    %p46 = scmp.eq.s32.totalorder %s24, 1
    %p47 = por %p45, %p46
    %p49 = scmp.ne.s32.totalorder %s32, %s48
    %p50 = scmp.eq.s32.totalorder %s24, 0
    %p51 = por %p49, %p50
    %s53 = sadd.s32 %s52, 1
    %p56 = scmp.eq.s32.totalorder %s18, 1
    %p57 = scmp.ne.s32.totalorder %s52, %s54
    %p58 = scmp.eq.s32.totalorder %s18, 0
    %p59 = por %p57, %p58
    %p60 = scmp.ne.s32.totalorder %s52, %s54
    %p61 = scmp.eq.s32.totalorder %s23, 1
    %p62 = por %p60, %p61
    %p63 = scmp.ne.s32.totalorder %s54, %s55
    %p64 = scmp.eq.s32.totalorder %s23, 0
    %p65 = por %p63, %p64
    %p66 = scmp.ne.s32.totalorder %s54, %s55
    %p67 = scmp.eq.s32.totalorder %s24, 1
    %p68 = por %p66, %p67
    %p70 = scmp.ne.s32.totalorder %s55, %s69
    %p71 = scmp.eq.s32.totalorder %s24, 0
    %p72 = por %p70, %p71
    %s74 = sadd.s32 %s73, 1
    %p77 = scmp.eq.s32.totalorder %s18, 1
    %p78 = scmp.ne.s32.totalorder %s73, %s75
    %p79 = scmp.eq.s32.totalorder %s18, 0
    %p80 = por %p78, %p79
    %p81 = scmp.ne.s32.totalorder %s73, %s75
    %p82 = scmp.eq.s32.totalorder %s23, 1
    %p83 = por %p81, %p82
    %p84 = scmp.ne.s32.totalorder %s75, %s76
    %p85 = scmp.eq.s32.totalorder %s23, 0
    %p86 = por %p84, %p85
    %p87 = scmp.ne.s32.totalorder %s75, %s76
    %p88 = scmp.eq.s32.totalorder %s24, 1
    %p89 = por %p87, %p88
    %p91 = scmp.ne.s32.totalorder %s76, %s90
    %p92 = scmp.eq.s32.totalorder %s24, 0
    %p93 = por %p91, %p92
    %s95 = sadd.s32 %s94, 1
    %p98 = scmp.eq.s32.totalorder %s18, 1
    %p99 = scmp.ne.s32.totalorder %s94, %s96
    %p100 = scmp.eq.s32.totalorder %s18, 0
    %p101 = por %p99, %p100
    %p102 = scmp.ne.s32.totalorder %s94, %s96
    %p103 = scmp.eq.s32.totalorder %s23, 1
    %p104 = por %p102, %p103
    %p105 = scmp.ne.s32.totalorder %s96, %s97
    %p106 = scmp.eq.s32.totalorder %s23, 0
    %p107 = por %p105, %p106
    %p108 = scmp.ne.s32.totalorder %s96, %s97
    %p109 = scmp.eq.s32.totalorder %s24, 1
    %p110 = por %p108, %p109
    %p112 = scmp.ne.s32.totalorder %s97, %s111
    %p113 = scmp.eq.s32.totalorder %s24, 0
    %p114 = por %p112, %p113
    %s116 = sadd.s32 %s115, 1
    %p119 = scmp.eq.s32.totalorder %s18, 1
    %p120 = scmp.ne.s32.totalorder %s115, %s117
    %p121 = scmp.eq.s32.totalorder %s18, 0
    %p122 = por %p120, %p121
    %p123 = scmp.ne.s32.totalorder %s115, %s117
    %p124 = scmp.eq.s32.totalorder %s23, 1
    %p125 = por %p123, %p124
    %p126 = scmp.ne.s32.totalorder %s117, %s118
    %p127 = scmp.eq.s32.totalorder %s23, 0
    %p128 = por %p126, %p127
    %p129 = scmp.ne.s32.totalorder %s117, %s118
    %p130 = scmp.eq.s32.totalorder %s24, 1
    %p131 = por %p129, %p130
    %p133 = scmp.ne.s32.totalorder %s118, %s132
    %p134 = scmp.eq.s32.totalorder %s24, 0
    %p135 = por %p133, %p134
    %s137 = sadd.s32 %s136, 1
    %p140 = scmp.eq.s32.totalorder %s18, 1
    %p141 = scmp.ne.s32.totalorder %s136, %s138
    %p142 = scmp.eq.s32.totalorder %s18, 0
    %p143 = por %p141, %p142
    %p144 = scmp.ne.s32.totalorder %s136, %s138
    %p145 = scmp.eq.s32.totalorder %s23, 1
    %p146 = por %p144, %p145
    %p147 = scmp.ne.s32.totalorder %s138, %s139
    %p148 = scmp.eq.s32.totalorder %s23, 0
    %p149 = por %p147, %p148
    %p150 = scmp.ne.s32.totalorder %s138, %s139
    %p151 = scmp.eq.s32.totalorder %s24, 1
    %p152 = por %p150, %p151
    %p154 = scmp.ne.s32.totalorder %s139, %s153
    %p155 = scmp.eq.s32.totalorder %s24, 0
    %p156 = por %p154, %p155
    %s158 = sadd.s32 %s157, 1
    %p161 = scmp.eq.s32.totalorder %s18, 1
    %p162 = scmp.ne.s32.totalorder %s157, %s159
    %p163 = scmp.eq.s32.totalorder %s18, 0
    %p164 = por %p162, %p163
    %p165 = scmp.ne.s32.totalorder %s157, %s159
    %p166 = scmp.eq.s32.totalorder %s23, 1
    %p167 = por %p165, %p166
    %p168 = scmp.ne.s32.totalorder %s159, %s160
    %p169 = scmp.eq.s32.totalorder %s23, 0
    %p170 = por %p168, %p169
    %p171 = scmp.ne.s32.totalorder %s159, %s160
    %p172 = scmp.eq.s32.totalorder %s24, 1
    %p173 = por %p171, %p172
    %p175 = scmp.ne.s32.totalorder %s160, %s174
    %p176 = scmp.eq.s32.totalorder %s24, 0
    %p177 = por %p175, %p176
    %s179 = sadd.s32 %s178, 1
    %p182 = scmp.eq.s32.totalorder %s18, 1
    %p183 = scmp.ne.s32.totalorder %s178, %s180
    %p184 = scmp.eq.s32.totalorder %s18, 0
    %p185 = por %p183, %p184
    %p186 = scmp.ne.s32.totalorder %s178, %s180
    %p187 = scmp.eq.s32.totalorder %s23, 1
    %p188 = por %p186, %p187
    %p189 = scmp.ne.s32.totalorder %s180, %s181
    %p190 = scmp.eq.s32.totalorder %s23, 0
    %p191 = por %p189, %p190
    %p192 = scmp.ne.s32.totalorder %s180, %s181
    %p193 = scmp.eq.s32.totalorder %s24, 1
    %p194 = por %p192, %p193
    %p196 = scmp.ne.s32.totalorder %s181, %s195
    %p197 = scmp.eq.s32.totalorder %s24, 0
    %p198 = por %p196, %p197
    %s200 = sadd.s32 %s199, 1
    %p203 = scmp.eq.s32.totalorder %s18, 1
    %p204 = scmp.ne.s32.totalorder %s199, %s201
    %p205 = scmp.eq.s32.totalorder %s18, 0
    %p206 = por %p204, %p205
    %p207 = scmp.ne.s32.totalorder %s199, %s201
    %p208 = scmp.eq.s32.totalorder %s23, 1
    %p209 = por %p207, %p208
    %p210 = scmp.ne.s32.totalorder %s201, %s202
    %p211 = scmp.eq.s32.totalorder %s23, 0
    %p212 = por %p210, %p211
    %p213 = scmp.ne.s32.totalorder %s201, %s202
    %p214 = scmp.eq.s32.totalorder %s24, 1
    %p215 = por %p213, %p214
    %p217 = scmp.ne.s32.totalorder %s202, %s216
    %p218 = scmp.eq.s32.totalorder %s24, 0
    %p219 = por %p217, %p218
    %s221 = sadd.s32 %s220, 1
    %p224 = scmp.eq.s32.totalorder %s18, 1
    %p225 = scmp.ne.s32.totalorder %s220, %s222
    %p226 = scmp.eq.s32.totalorder %s18, 0
    %p227 = por %p225, %p226
    %p228 = scmp.ne.s32.totalorder %s220, %s222
    %p229 = scmp.eq.s32.totalorder %s23, 1
    %p230 = por %p228, %p229
    %p231 = scmp.ne.s32.totalorder %s222, %s223
    %p232 = scmp.eq.s32.totalorder %s23, 0
    %p233 = por %p231, %p232
    %p234 = scmp.ne.s32.totalorder %s222, %s223
    %p235 = scmp.eq.s32.totalorder %s24, 1
    %p236 = por %p234, %p235
    %p238 = scmp.ne.s32.totalorder %s223, %s237
    %p239 = scmp.eq.s32.totalorder %s24, 0
    %p240 = por %p238, %p239
    %s242 = sadd.s32 %s241, 1
    %p245 = scmp.eq.s32.totalorder %s18, 1
    %p246 = scmp.ne.s32.totalorder %s241, %s243
    %p247 = scmp.eq.s32.totalorder %s18, 0
    %p248 = por %p246, %p247
    %p249 = scmp.ne.s32.totalorder %s241, %s243
    %p250 = scmp.eq.s32.totalorder %s23, 1
    %p251 = por %p249, %p250
    %p252 = scmp.ne.s32.totalorder %s243, %s244
    %p253 = scmp.eq.s32.totalorder %s23, 0
    %p254 = por %p252, %p253
    %p255 = scmp.ne.s32.totalorder %s243, %s244
    %p256 = scmp.eq.s32.totalorder %s24, 1
    %p257 = por %p255, %p256
    %p259 = scmp.ne.s32.totalorder %s244, %s258
    %p260 = scmp.eq.s32.totalorder %s24, 0
    %p261 = por %p259, %p260
    %s263 = sadd.s32 %s262, 1
    %p266 = scmp.eq.s32.totalorder %s18, 1
    %p267 = scmp.ne.s32.totalorder %s262, %s264
    %p268 = scmp.eq.s32.totalorder %s18, 0
    %p269 = por %p267, %p268
    %p270 = scmp.ne.s32.totalorder %s262, %s264
    %p271 = scmp.eq.s32.totalorder %s23, 1
    %p272 = por %p270, %p271
    %p273 = scmp.ne.s32.totalorder %s264, %s265
    %p274 = scmp.eq.s32.totalorder %s23, 0
    %p275 = por %p273, %p274
    %p276 = scmp.ne.s32.totalorder %s264, %s265
    %p277 = scmp.eq.s32.totalorder %s24, 1
    %p278 = por %p276, %p277
    %p280 = scmp.ne.s32.totalorder %s265, %s279
    %p281 = scmp.eq.s32.totalorder %s24, 0
    %p282 = por %p280, %p281
    %s283 = ssub.s32 %s18, %s25
    %p284 = scmp.eq.s32.totalorder %s283, 0
    %s286 = sadd.s32 %s285, 1
    %s287 = scalar_select %p284, %s285, %s286
    %p290 = pneg %p284
    %p291 = scmp.eq.s32.totalorder %s18, 1
    %p292 = por %p290, %p291
    %p293 = scmp.ne.s32.totalorder %s285, %s288
    %p294 = scmp.eq.s32.totalorder %s18, 0
    %p295 = por %p293, %p294
    %p296 = scmp.ne.s32.totalorder %s285, %s288
    %p297 = scmp.eq.s32.totalorder %s23, 1
    %p298 = por %p296, %p297
    %p299 = scmp.ne.s32.totalorder %s288, %s289
    %p300 = scmp.eq.s32.totalorder %s23, 0
    %p301 = por %p299, %p300
    %p302 = scmp.ne.s32.totalorder %s288, %s289
    %p303 = scmp.eq.s32.totalorder %s24, 1
    %p304 = por %p302, %p303
    %p306 = scmp.ne.s32.totalorder %s289, %s305
    %p307 = scmp.eq.s32.totalorder %s24, 0
    %p308 = por %p306, %p307
    %p309 = scmp.le.s32.totalorder 1, %s18
    %p310 = scmp.lt.s32.totalorder %s18, 3
    %p311 = pnand %p309, %p310
    %p312 = pneg %p311
    // Predicated region
    $region9: #{tpu_custom_call.1} parent=5 // pred_check
      _
    $region10: #{tpu_custom_call.1} parent=5 // pred_check_branch
      %314 = sbr.rel (%p311) target = $region12
    $region11: #{tpu_custom_call.1} parent=5 // pred_region
      %s315 = ssub.s32 %s18, 1
      // Predicated region
      $region13: #{tpu_custom_call.1} parent=11 // pred_check
        %p316 = pneg %p65
      $region14: #{tpu_custom_call.1} parent=11 // pred_check_branch
        %318 = sbr.rel (%p316) target = $region16
      $region15: #{tpu_custom_call.1} parent=11 // pred_region
        _
      $region16: #{tpu_custom_call.1} parent=11 // pred_fallthru
        _
      // Predicated region
      $region17: #{tpu_custom_call.1} parent=11 // pred_check
        %p319 = pneg %p86
      $region18: #{tpu_custom_call.1} parent=11 // pred_check_branch
        %321 = sbr.rel (%p319) target = $region20
      $region19: #{tpu_custom_call.1} parent=11 // pred_region
        _
      $region20: #{tpu_custom_call.1} parent=11 // pred_fallthru
        _
      // Predicated region
      $region21: #{tpu_custom_call.1} parent=11 // pred_check
        %p322 = pneg %p107
      $region22: #{tpu_custom_call.1} parent=11 // pred_check_branch
        %324 = sbr.rel (%p322) target = $region24
      $region23: #{tpu_custom_call.1} parent=11 // pred_region
        _
      $region24: #{tpu_custom_call.1} parent=11 // pred_fallthru
        _
      // Predicated region
      $region25: #{tpu_custom_call.1} parent=11 // pred_check
        %p325 = pneg %p128
      $region26: #{tpu_custom_call.1} parent=11 // pred_check_branch
        %327 = sbr.rel (%p325) target = $region28
      $region27: #{tpu_custom_call.1} parent=11 // pred_region
        _
      $region28: #{tpu_custom_call.1} parent=11 // pred_fallthru
        _
      // Predicated region
      $region29: #{tpu_custom_call.1} parent=11 // pred_check
        %p328 = pneg %p149
      $region30: #{tpu_custom_call.1} parent=11 // pred_check_branch
        %330 = sbr.rel (%p328) target = $region32
      $region31: #{tpu_custom_call.1} parent=11 // pred_region
        _
      $region32: #{tpu_custom_call.1} parent=11 // pred_fallthru
        _
      // Predicated region
      $region33: #{tpu_custom_call.1} parent=11 // pred_check
        %p331 = pneg %p170
      $region34: #{tpu_custom_call.1} parent=11 // pred_check_branch
        %333 = sbr.rel (%p331) target = $region36
      $region35: #{tpu_custom_call.1} parent=11 // pred_region
        _
      $region36: #{tpu_custom_call.1} parent=11 // pred_fallthru
        _
      // Predicated region
      $region37: #{tpu_custom_call.1} parent=11 // pred_check
        %p334 = pneg %p191
      $region38: #{tpu_custom_call.1} parent=11 // pred_check_branch
        %336 = sbr.rel (%p334) target = $region40
      $region39: #{tpu_custom_call.1} parent=11 // pred_region
        _
      $region40: #{tpu_custom_call.1} parent=11 // pred_fallthru
        _
      // Predicated region
      $region41: #{tpu_custom_call.1} parent=11 // pred_check
        %p337 = pneg %p212
      $region42: #{tpu_custom_call.1} parent=11 // pred_check_branch
        %339 = sbr.rel (%p337) target = $region44
      $region43: #{tpu_custom_call.1} parent=11 // pred_region
        _
      $region44: #{tpu_custom_call.1} parent=11 // pred_fallthru
        _
      // Predicated region
      $region45: #{tpu_custom_call.1} parent=11 // pred_check
        %p340 = pneg %p233
      $region46: #{tpu_custom_call.1} parent=11 // pred_check_branch
        %342 = sbr.rel (%p340) target = $region48
      $region47: #{tpu_custom_call.1} parent=11 // pred_region
        _
      $region48: #{tpu_custom_call.1} parent=11 // pred_fallthru
        _
      // Predicated region
      $region49: #{tpu_custom_call.1} parent=11 // pred_check
        %p343 = pneg %p254
      $region50: #{tpu_custom_call.1} parent=11 // pred_check_branch
        %345 = sbr.rel (%p343) target = $region52
      $region51: #{tpu_custom_call.1} parent=11 // pred_region
        _
      $region52: #{tpu_custom_call.1} parent=11 // pred_fallthru
        _
      // Predicated region
      $region53: #{tpu_custom_call.1} parent=11 // pred_check
        %p346 = pneg %p275
      $region54: #{tpu_custom_call.1} parent=11 // pred_check_branch
        %348 = sbr.rel (%p346) target = $region56
      $region55: #{tpu_custom_call.1} parent=11 // pred_region
        _
      $region56: #{tpu_custom_call.1} parent=11 // pred_fallthru
        _
    $region12: #{tpu_custom_call.1} parent=5 // pred_fallthru
      _
    %p349 = scmp.lt.s32.totalorder %s18, 2
    // Predicated region
    $region57: #{tpu_custom_call.1} parent=5 // pred_check
      %p350 = pneg %p349
    $region58: #{tpu_custom_call.1} parent=5 // pred_check_branch
      %352 = sbr.rel (%p350) target = $region60
    $region59: #{tpu_custom_call.1} parent=5 // pred_region
      // Predicated region
      $region61: #{tpu_custom_call.1} parent=59 // pred_check
        %p353 = pneg %p38
      $region62: #{tpu_custom_call.1} parent=59 // pred_check_branch
        %355 = sbr.rel (%p353) target = $region64
      $region63: #{tpu_custom_call.1} parent=59 // pred_region
        %p356 = scmp.lt.s32.totalorder %s18, 1
        %s357 = scalar_select %p356, %s18, 1
        %s358 = smul.addr %s357, 41
        %s359 = smul.addr %s358, 8
        %s360 = scalar_lea.vmem %s0, %s359
      $region64: #{tpu_custom_call.1} parent=59 // pred_fallthru
        _
    $region60: #{tpu_custom_call.1} parent=5 // pred_fallthru
      _
    %p361 = scmp.le.s32.totalorder 1, %s18
    %p362 = scmp.lt.s32.totalorder %s18, 3
    %p363 = pnand %p361, %p362
    %p364 = pneg %p363
    // Predicated region
    $region65: #{tpu_custom_call.1} parent=5 // pred_check
      _
    $region66: #{tpu_custom_call.1} parent=5 // pred_check_branch
      %366 = sbr.rel (%p363) target = $region68
    $region67: #{tpu_custom_call.1} parent=5 // pred_region
      %s367 = ssub.s32 %s18, 1
      %p368 = scmp.lt.s32.totalorder %s23, 1
      %s369 = scalar_select %p368, %s23, 1
      %s370 = smul.addr %s369, 41
      %s371 = smul.addr %s370, 8
      %s372 = scalar_lea.vmem %s0, %s371
      %p373 = pneg %p44
      %p374 = pneg %p41
      %p375 = pneg %p65
      %p376 = pneg %p62
      %p377 = pneg %p86
      %p378 = pneg %p83
      %p379 = pneg %p107
      %p380 = pneg %p104
      %p381 = pneg %p128
      %p382 = pneg %p125
      %p383 = pneg %p149
      %p384 = pneg %p146
      %p385 = pneg %p170
      %p386 = pneg %p167
      %p387 = pneg %p191
      %p388 = pneg %p188
      %p389 = pneg %p212
      %p390 = pneg %p209
      %p391 = pneg %p233
      %p392 = pneg %p230
      %p393 = pneg %p254
      %p394 = pneg %p251
      %p395 = pneg %p275
      %p396 = pneg %p272
      %p397 = pneg %p301
      %p398 = pneg %p298
      %p399 = scmp.lt.s32.totalorder %s23, 1
      %s400 = scalar_select %p399, %s23, 1
      %s401 = smul.addr %s400, 36
      %s402 = smul.addr %s401, 8
      %s403 = scalar_lea.vmem %s12, %s402
      %p404 = scmp.lt.s32.totalorder %s23, 1
      %s405 = scalar_select %p404, %s23, 1
      %s406 = smul.addr %s405, 41
      %s407 = smul.addr %s406, 8
      %s408 = scalar_lea.vmem %s0, %s407
      %p409 = scmp.lt.s32.totalorder %s23, 1
      %s410 = scalar_select %p409, %s23, 1
      %s411 = smul.addr %s410, 36
      %s412 = smul.addr %s411, 8
      %s413 = scalar_lea.vmem %s12, %s412
      %v414 = vld [vmem:[%s408] sm:$0xff]
      %v415 = vld [vmem:[%s408 + $0x8] sm:$0xff]
      %v416 = vld [vmem:[%s408 + $0x10] sm:$0xff]
      %v417 = vld [vmem:[%s408 + $0x18] sm:$0xff]
      %v418 = vld [vmem:[%s408 + $0x20] sm:$0xff]
      %v419 = vld [vmem:[%s408 + $0x28] sm:$0xff]
      %v420 = vld [vmem:[%s408 + $0x30] sm:$0xff]
      %v421 = vld [vmem:[%s408 + $0x38] sm:$0xff]
      %v422 = vld [vmem:[%s408 + $0x40] sm:$0xff]
      %v423 = vld [vmem:[%s408 + $0x48] sm:$0xff]
      %v424 = vld [vmem:[%s408 + $0x50] sm:$0xff]
      %v425 = vld [vmem:[%s408 + $0x58] sm:$0xff]
      %v426 = vld [vmem:[%s408 + $0x60] sm:$0xff]
      %v427 = vld [vmem:[%s408 + $0x68] sm:$0xff]
      %v428 = vld [vmem:[%s408 + $0x70] sm:$0xff]
      %v429 = vld [vmem:[%s408 + $0x78] sm:$0xff]
      %v430 = vld [vmem:[%s408 + $0x80] sm:$0xff]
      %v431 = vld [vmem:[%s408 + $0x88] sm:$0xff]
      %v432 = vld [vmem:[%s408 + $0x90] sm:$0xff]
      %v433 = vld [vmem:[%s408 + $0x98] sm:$0xff]
      %v434 = vld [vmem:[%s408 + $0xa0] sm:$0xff]
      %v435 = vld [vmem:[%s408 + $0xa8] sm:$0xff]
      %v436 = vld [vmem:[%s408 + $0xb0] sm:$0xff]
      %v437 = vld [vmem:[%s408 + $0xb8] sm:$0xff]
      %v438 = vld [vmem:[%s408 + $0xc0] sm:$0xff]
      %v439 = vld [vmem:[%s408 + $0xc8] sm:$0xff]
      %v440 = vld [vmem:[%s408 + $0xd0] sm:$0xff]
      %v441 = vld [vmem:[%s408 + $0xd8] sm:$0xff]
      %v442 = vld [vmem:[%s408 + $0xe0] sm:$0xff]
      %v443 = vld [vmem:[%s408 + $0xe8] sm:$0xff]
      %v444 = vld [vmem:[%s408 + $0xf0] sm:$0xff]
      %v445 = vld [vmem:[%s408 + $0xf8] sm:$0xff]
      %v446 = vld [vmem:[%s408 + $0x100] sm:$0xff]
      %v447 = vld [vmem:[%s408 + $0x108] sm:$0xff]
      %v448 = vld [vmem:[%s408 + $0x110] sm:$0xff]
      %v449 = vld [vmem:[%s408 + $0x118] sm:$0xff]
      %v450 = vld [vmem:[%s408 + $0x120] sm:$0xff]
      %v451 = vld [vmem:[%s408 + $0x128] sm:$0xff]
      %v452 = vld [vmem:[%s408 + $0x130] sm:$0xff]
      %v453 = vld [vmem:[%s408 + $0x138] sm:$0xff]
      %v454 = vld [vmem:[%s408 + $0x140] sm:$0x3f]
      %v455 = vld [vmem:[%s3] sm:$0x3]
      %vm456 = vcmask 15360
      %v458 = vsel %vm456, %v414, 0
      %v461 = vsel %vm456, %v415, 0
      %v464 = vsel %vm456, %v416, 0
      %v467 = vsel %vm456, %v417, 0
      %v470 = vsel %vm456, %v418, 0
      %v473 = vsel %vm456, %v419, 0
      %v476 = vsel %vm456, %v420, 0
      %v479 = vsel %vm456, %v421, 0
      %v482 = vsel %vm456, %v422, 0
      %v485 = vsel %vm456, %v423, 0
      %v488 = vsel %vm456, %v424, 0
      %v491 = vsel %vm456, %v425, 0
      %v494 = vsel %vm456, %v426, 0
      %v497 = vsel %vm456, %v427, 0
      %v500 = vsel %vm456, %v428, 0
      %v503 = vsel %vm456, %v429, 0
      %v506 = vsel %vm456, %v430, 0
      %v509 = vsel %vm456, %v431, 0
      %v512 = vsel %vm456, %v432, 0
      %v515 = vsel %vm456, %v433, 0
      %v518 = vsel %vm456, %v434, 0
      %v521 = vsel %vm456, %v435, 0
      %v524 = vsel %vm456, %v436, 0
      %v527 = vsel %vm456, %v437, 0
      %v530 = vsel %vm456, %v438, 0
      %v533 = vsel %vm456, %v439, 0
      %v536 = vsel %vm456, %v440, 0
      %v539 = vsel %vm456, %v441, 0
      %v542 = vsel %vm456, %v442, 0
      %v545 = vsel %vm456, %v443, 0
      %v548 = vsel %vm456, %v444, 0
      %v551 = vsel %vm456, %v445, 0
      %v554 = vsel %vm456, %v446, 0
      %v557 = vsel %vm456, %v447, 0
      %v560 = vsel %vm456, %v448, 0
      %v563 = vsel %vm456, %v449, 0
      %v566 = vsel %vm456, %v450, 0
      %v569 = vsel %vm456, %v451, 0
      %v572 = vsel %vm456, %v452, 0
      %v575 = vsel %vm456, %v453, 0
      %v578 = vsel %vm456, %v454, 0
      %vm580 = vcmask 1041408
      %v582 = vsel %vm580, %v455, 0
      %584 = vmatprep.subr.mxu0 0.0
      %585 = vmatpush1.msra.mxu0 %v582
      %586 = vmatprep.subr.mxu0 0.0
      %587 = vmatpush1.msra.mxu0 0.0
      %588 = vmatprep.subr.mxu0 0.0
      %589 = vmatpush1.msra.mxu0 0.0
      %590 = vmatprep.subr.mxu0 0.0
      %591 = vmatpush1.msra.mxu0 0.0
      %592 = vmatprep.subr.mxu0 0.0
      %593 = vmatpush1.msra.mxu0 0.0
      %594 = vmatprep.subr.mxu0 0.0
      %595 = vmatpush1.msra.mxu0 0.0
      %596 = vmatprep.subr.mxu0 0.0
      %597 = vmatpush1.msra.mxu0 0.0
      %598 = vmatprep.subr.mxu0 0.0
      %599 = vmatpush1.msra.mxu0 0.0
      %600 = vmatprep.subr.mxu0 0.0
      %601 = vmatpush1.msra.mxu0 0.0
      %602 = vmatprep.subr.mxu0 0.0
      %603 = vmatpush1.msra.mxu0 0.0
      %604 = vmatprep.subr.mxu0 0.0
      %605 = vmatpush1.msra.mxu0 0.0
      %606 = vmatprep.subr.mxu0 0.0
      %607 = vmatpush1.msra.mxu0 0.0
      %608 = vmatprep.subr.mxu0 0.0
      %609 = vmatpush1.msra.mxu0 0.0
      %610 = vmatprep.subr.mxu0 0.0
      %611 = vmatpush1.msra.mxu0 0.0
      %612 = vmatprep.subr.mxu0 0.0
      %613 = vmatpush1.msra.mxu0 0.0
      %614 = vmatprep.subr.mxu0 0.0
      %615 = vmatpush1.msra.mxu0 0.0
      %616 = vmatprep.subr.mxu0 0.0
      %617 = vmatpush1.msra.mxu0 0.0
      %618 = vmatprep.subr.mxu0 0.0
      %619 = vmatpush1.msra.mxu0 0.0
      %620 = vmatprep.subr.mxu0 0.0
      %621 = vmatpush1.msra.mxu0 0.0
      %622 = vmatprep.subr.mxu0 0.0
      %623 = vmatpush1.msra.mxu0 0.0
      %624 = vmatprep.subr.mxu0 0.0
      %625 = vmatpush1.msra.mxu0 0.0
      %626 = vmatprep.subr.mxu0 0.0
      %627 = vmatpush1.msra.mxu0 0.0
      %628 = vmatprep.subr.mxu0 0.0
      %629 = vmatpush1.msra.mxu0 0.0
      %630 = vmatprep.subr.mxu0 0.0
      %631 = vmatpush1.msra.mxu0 0.0
      %632 = vmatprep.subr.mxu0 0.0
      %633 = vmatpush1.msra.mxu0 0.0
      %634 = vmatprep.subr.mxu0 0.0
      %635 = vmatpush1.msra.mxu0 0.0
      %636 = vmatprep.subr.mxu0 0.0
      %637 = vmatpush1.msra.mxu0 0.0
      %638 = vmatprep.subr.mxu0 0.0
      %639 = vmatpush1.msra.mxu0 0.0
      %640 = vmatprep.subr.mxu0 0.0
      %641 = vmatpush1.msra.mxu0 0.0
      %642 = vmatprep.subr.mxu0 0.0
      %643 = vmatpush1.msra.mxu0 0.0
      %644 = vmatprep.subr.mxu0 0.0
      %645 = vmatpush1.msra.mxu0 0.0
      %646 = vmatprep.subr.mxu0 0.0
      %647 = vmatpush1.msra.mxu0 0.0
      %648 = vmatprep.mubr.f32.mxu0 0.0
      %649 = vmatmul.mubr.f32.gmra.mrb[0].mxu0 %v458
      %v650 = vpop.f32.mrb[0].mxu0
      %v651 = vadd.f32 0.0, %v650
      %v652 = vpop.f32.mrb[0].mxu0
      %653 = vmatprep.mubr.f32.mxu0 0.0
      %654 = vmatmul.mubr.f32.gmra.mrb[0].mxu0 %v461
      %v655 = vpop.f32.mrb[0].mxu0
      %v656 = vadd.f32 0.0, %v655
      %v657 = vpop.f32.mrb[0].mxu0
      %658 = vmatprep.mubr.f32.mxu0 0.0
      %659 = vmatmul.mubr.f32.gmra.mrb[0].mxu0 %v464
      %v660 = vpop.f32.mrb[0].mxu0
      %v661 = vadd.f32 0.0, %v660
      %v662 = vpop.f32.mrb[0].mxu0
      %663 = vmatprep.mubr.f32.mxu0 0.0
      %664 = vmatmul.mubr.f32.gmra.mrb[0].mxu0 %v467
      %v665 = vpop.f32.mrb[0].mxu0
      %v666 = vadd.f32 0.0, %v665
      %v667 = vpop.f32.mrb[0].mxu0
      %668 = vmatprep.mubr.f32.mxu0 0.0
      %669 = vmatmul.mubr.f32.gmra.mrb[0].mxu0 %v470
      %v670 = vpop.f32.mrb[0].mxu0
      %v671 = vadd.f32 0.0, %v670
      %v672 = vpop.f32.mrb[0].mxu0
      %673 = vmatprep.mubr.f32.mxu0 0.0
      %674 = vmatmul.mubr.f32.gmra.mrb[0].mxu0 %v473
      %v675 = vpop.f32.mrb[0].mxu0
      %v676 = vadd.f32 0.0, %v675
      %v677 = vpop.f32.mrb[0].mxu0
      %678 = vmatprep.mubr.f32.mxu0 0.0
      %679 = vmatmul.mubr.f32.gmra.mrb[0].mxu0 %v476
      %v680 = vpop.f32.mrb[0].mxu0
      %v681 = vadd.f32 0.0, %v680
      %v682 = vpop.f32.mrb[0].mxu0
      %683 = vmatprep.mubr.f32.mxu0 0.0
      %684 = vmatmul.mubr.f32.gmra.mrb[0].mxu0 %v479
      %v685 = vpop.f32.mrb[0].mxu0
      %v686 = vadd.f32 0.0, %v685
      %v687 = vpop.f32.mrb[0].mxu0
      %688 = vmatprep.mubr.f32.mxu0 0.0
      %689 = vmatmul.mubr.f32.gmra.mrb[0].mxu0 %v482
      %v690 = vpop.f32.mrb[0].mxu0
      %v691 = vadd.f32 0.0, %v690
      %v692 = vpop.f32.mrb[0].mxu0
      %693 = vmatprep.mubr.f32.mxu0 0.0
      %694 = vmatmul.mubr.f32.gmra.mrb[0].mxu0 %v485
      %v695 = vpop.f32.mrb[0].mxu0
      %v696 = vadd.f32 0.0, %v695
      %v697 = vpop.f32.mrb[0].mxu0
      %698 = vmatprep.mubr.f32.mxu0 0.0
      %699 = vmatmul.mubr.f32.gmra.mrb[0].mxu0 %v488
      %v700 = vpop.f32.mrb[0].mxu0
      %v701 = vadd.f32 0.0, %v700
      %v702 = vpop.f32.mrb[0].mxu0
      %703 = vmatprep.mubr.f32.mxu0 0.0
      %704 = vmatmul.mubr.f32.gmra.mrb[0].mxu0 %v491
      %v705 = vpop.f32.mrb[0].mxu0
      %v706 = vadd.f32 0.0, %v705
      %v707 = vpop.f32.mrb[0].mxu0
      %708 = vmatprep.mubr.f32.mxu0 0.0
      %709 = vmatmul.mubr.f32.gmra.mrb[0].mxu0 %v494
      %v710 = vpop.f32.mrb[0].mxu0
      %v711 = vadd.f32 0.0, %v710
      %v712 = vpop.f32.mrb[0].mxu0
      %713 = vmatprep.mubr.f32.mxu0 0.0
      %714 = vmatmul.mubr.f32.gmra.mrb[0].mxu0 %v497
      %v715 = vpop.f32.mrb[0].mxu0
      %v716 = vadd.f32 0.0, %v715
      %v717 = vpop.f32.mrb[0].mxu0
      %718 = vmatprep.mubr.f32.mxu0 0.0
      %719 = vmatmul.mubr.f32.gmra.mrb[0].mxu0 %v500
      %v720 = vpop.f32.mrb[0].mxu0
      %v721 = vadd.f32 0.0, %v720
      %v722 = vpop.f32.mrb[0].mxu0
      %723 = vmatprep.mubr.f32.mxu0 0.0
      %724 = vmatmul.mubr.f32.gmra.mrb[0].mxu0 %v503
      %v725 = vpop.f32.mrb[0].mxu0
      %v726 = vadd.f32 0.0, %v725
      %v727 = vpop.f32.mrb[0].mxu0
      %728 = vmatprep.mubr.f32.mxu0 0.0
      %729 = vmatmul.mubr.f32.gmra.mrb[0].mxu0 %v506
      %v730 = vpop.f32.mrb[0].mxu0
      %v731 = vadd.f32 0.0, %v730
      %v732 = vpop.f32.mrb[0].mxu0
      %733 = vmatprep.mubr.f32.mxu0 0.0
      %734 = vmatmul.mubr.f32.gmra.mrb[0].mxu0 %v509
      %v735 = vpop.f32.mrb[0].mxu0
      %v736 = vadd.f32 0.0, %v735
      %v737 = vpop.f32.mrb[0].mxu0
      %738 = vmatprep.mubr.f32.mxu0 0.0
      %739 = vmatmul.mubr.f32.gmra.mrb[0].mxu0 %v512
      %v740 = vpop.f32.mrb[0].mxu0
      %v741 = vadd.f32 0.0, %v740
      %v742 = vpop.f32.mrb[0].mxu0
      %743 = vmatprep.mubr.f32.mxu0 0.0
      %744 = vmatmul.mubr.f32.gmra.mrb[0].mxu0 %v515
      %v745 = vpop.f32.mrb[0].mxu0
      %v746 = vadd.f32 0.0, %v745
      %v747 = vpop.f32.mrb[0].mxu0
      %748 = vmatprep.mubr.f32.mxu0 0.0
      %749 = vmatmul.mubr.f32.gmra.mrb[0].mxu0 %v518
      %v750 = vpop.f32.mrb[0].mxu0
      %v751 = vadd.f32 0.0, %v750
      %v752 = vpop.f32.mrb[0].mxu0
      %753 = vmatprep.mubr.f32.mxu0 0.0
      %754 = vmatmul.mubr.f32.gmra.mrb[0].mxu0 %v521
      %v755 = vpop.f32.mrb[0].mxu0
      %v756 = vadd.f32 0.0, %v755
      %v757 = vpop.f32.mrb[0].mxu0
      %758 = vmatprep.mubr.f32.mxu0 0.0
      %759 = vmatmul.mubr.f32.gmra.mrb[0].mxu0 %v524
      %v760 = vpop.f32.mrb[0].mxu0
      %v761 = vadd.f32 0.0, %v760
      %v762 = vpop.f32.mrb[0].mxu0
      %763 = vmatprep.mubr.f32.mxu0 0.0
      %764 = vmatmul.mubr.f32.gmra.mrb[0].mxu0 %v527
      %v765 = vpop.f32.mrb[0].mxu0
      %v766 = vadd.f32 0.0, %v765
      %v767 = vpop.f32.mrb[0].mxu0
      %768 = vmatprep.mubr.f32.mxu0 0.0
      %769 = vmatmul.mubr.f32.gmra.mrb[0].mxu0 %v530
      %v770 = vpop.f32.mrb[0].mxu0
      %v771 = vadd.f32 0.0, %v770
      %v772 = vpop.f32.mrb[0].mxu0
      %773 = vmatprep.mubr.f32.mxu0 0.0
      %774 = vmatmul.mubr.f32.gmra.mrb[0].mxu0 %v533
      %v775 = vpop.f32.mrb[0].mxu0
      %v776 = vadd.f32 0.0, %v775
      %v777 = vpop.f32.mrb[0].mxu0
      %778 = vmatprep.mubr.f32.mxu0 0.0
      %779 = vmatmul.mubr.f32.gmra.mrb[0].mxu0 %v536
      %v780 = vpop.f32.mrb[0].mxu0
      %v781 = vadd.f32 0.0, %v780
      %v782 = vpop.f32.mrb[0].mxu0
      %783 = vmatprep.mubr.f32.mxu0 0.0
      %784 = vmatmul.mubr.f32.gmra.mrb[0].mxu0 %v539
      %v785 = vpop.f32.mrb[0].mxu0
      %v786 = vadd.f32 0.0, %v785
      %v787 = vpop.f32.mrb[0].mxu0
      %788 = vmatprep.mubr.f32.mxu0 0.0
      %789 = vmatmul.mubr.f32.gmra.mrb[0].mxu0 %v542
      %v790 = vpop.f32.mrb[0].mxu0
      %v791 = vadd.f32 0.0, %v790
      %v792 = vpop.f32.mrb[0].mxu0
      %793 = vmatprep.mubr.f32.mxu0 0.0
      %794 = vmatmul.mubr.f32.gmra.mrb[0].mxu0 %v545
      %v795 = vpop.f32.mrb[0].mxu0
      %v796 = vadd.f32 0.0, %v795
      %v797 = vpop.f32.mrb[0].mxu0
      %798 = vmatprep.mubr.f32.mxu0 0.0
      %799 = vmatmul.mubr.f32.gmra.mrb[0].mxu0 %v548
      %v800 = vpop.f32.mrb[0].mxu0
      %v801 = vadd.f32 0.0, %v800
      %v802 = vpop.f32.mrb[0].mxu0
      %803 = vmatprep.mubr.f32.mxu0 0.0
      %804 = vmatmul.mubr.f32.gmra.mrb[0].mxu0 %v551
      %v805 = vpop.f32.mrb[0].mxu0
      %v806 = vadd.f32 0.0, %v805
      %v807 = vpop.f32.mrb[0].mxu0
      %808 = vmatprep.mubr.f32.mxu0 0.0
      %809 = vmatmul.mubr.f32.gmra.mrb[0].mxu0 %v554
      %v810 = vpop.f32.mrb[0].mxu0
      %v811 = vadd.f32 0.0, %v810
      %v812 = vpop.f32.mrb[0].mxu0
      %813 = vmatprep.mubr.f32.mxu0 0.0
      %814 = vmatmul.mubr.f32.gmra.mrb[0].mxu0 %v557
      %v815 = vpop.f32.mrb[0].mxu0
      %v816 = vadd.f32 0.0, %v815
      %v817 = vpop.f32.mrb[0].mxu0
      %818 = vmatprep.mubr.f32.mxu0 0.0
      %819 = vmatmul.mubr.f32.gmra.mrb[0].mxu0 %v560
      %v820 = vpop.f32.mrb[0].mxu0
      %v821 = vadd.f32 0.0, %v820
      %v822 = vpop.f32.mrb[0].mxu0
      %823 = vmatprep.mubr.f32.mxu0 0.0
      %824 = vmatmul.mubr.f32.gmra.mrb[0].mxu0 %v563
      %v825 = vpop.f32.mrb[0].mxu0
      %v826 = vadd.f32 0.0, %v825
      %v827 = vpop.f32.mrb[0].mxu0
      %828 = vmatprep.mubr.f32.mxu0 0.0
      %829 = vmatmul.mubr.f32.gmra.mrb[0].mxu0 %v566
      %v830 = vpop.f32.mrb[0].mxu0
      %v831 = vadd.f32 0.0, %v830
      %v832 = vpop.f32.mrb[0].mxu0
      %833 = vmatprep.mubr.f32.mxu0 0.0
      %834 = vmatmul.mubr.f32.gmra.mrb[0].mxu0 %v569
      %v835 = vpop.f32.mrb[0].mxu0
      %v836 = vadd.f32 0.0, %v835
      %v837 = vpop.f32.mrb[0].mxu0
      %838 = vmatprep.mubr.f32.mxu0 0.0
      %839 = vmatmul.mubr.f32.gmra.mrb[0].mxu0 %v572
      %v840 = vpop.f32.mrb[0].mxu0
      %v841 = vadd.f32 0.0, %v840
      %v842 = vpop.f32.mrb[0].mxu0
      %843 = vmatprep.mubr.f32.mxu0 0.0
      %844 = vmatmul.mubr.f32.gmra.mrb[0].mxu0 %v575
      %v845 = vpop.f32.mrb[0].mxu0
      %v846 = vadd.f32 0.0, %v845
      %v847 = vpop.f32.mrb[0].mxu0
      %848 = vmatprep.mubr.f32.mxu0 0.0
      %849 = vmatmul.mubr.f32.gmra.mrb[0].mxu0 %v578
      %v850 = vpop.f32.mrb[0].mxu0
      %v851 = vadd.f32 0.0, %v850
      %v852 = vpop.f32.mrb[0].mxu0
      %853 = vdwg.mxu0
      %v854 = vld [vmem:[%s4] sm:$0x1]
      %v856 = vlaneseq
      %v857 = vshrl.u32 %v856, 7
      %v858 = vsub.s32 0, %v857
      %v859 = vrot.slane %v854, %v858
      %v861 = vmul.f32 %v651, %v859
      %v862 = vmul.f32 %v656, %v859
      %v863 = vmul.f32 %v661, %v859
      %v864 = vmul.f32 %v666, %v859
      %v865 = vmul.f32 %v671, %v859
      %v866 = vmul.f32 %v676, %v859
      %v867 = vmul.f32 %v681, %v859
      %v868 = vmul.f32 %v686, %v859
      %v869 = vmul.f32 %v691, %v859
      %v870 = vmul.f32 %v696, %v859
      %v871 = vmul.f32 %v701, %v859
      %v872 = vmul.f32 %v706, %v859
      %v873 = vmul.f32 %v711, %v859
      %v874 = vmul.f32 %v716, %v859
      %v875 = vmul.f32 %v721, %v859
      %v876 = vmul.f32 %v726, %v859
      %v877 = vmul.f32 %v731, %v859
      %v878 = vmul.f32 %v736, %v859
      %v879 = vmul.f32 %v741, %v859
      %v880 = vmul.f32 %v746, %v859
      %v881 = vmul.f32 %v751, %v859
      %v882 = vmul.f32 %v756, %v859
      %v883 = vmul.f32 %v761, %v859
      %v884 = vmul.f32 %v766, %v859
      %v885 = vmul.f32 %v771, %v859
      %v886 = vmul.f32 %v776, %v859
      %v887 = vmul.f32 %v781, %v859
      %v888 = vmul.f32 %v786, %v859
      %v889 = vmul.f32 %v791, %v859
      %v890 = vmul.f32 %v796, %v859
      %v891 = vmul.f32 %v801, %v859
      %v892 = vmul.f32 %v806, %v859
      %v893 = vmul.f32 %v811, %v859
      %v894 = vmul.f32 %v816, %v859
      %v895 = vmul.f32 %v821, %v859
      %v896 = vmul.f32 %v826, %v859
      %v897 = vmul.f32 %v831, %v859
      %v898 = vmul.f32 %v836, %v859
      %v899 = vmul.f32 %v841, %v859
      %v900 = vmul.f32 %v846, %v859
      %v901 = vmul.f32 %v851, %v859
      %v902 = vld [vmem:[%s5] sm:$0x1]
      %v904 = vlaneseq
      %v905 = vshrl.u32 %v904, 7
      %v906 = vsub.s32 0, %v905
      %v907 = vrot.slane %v902, %v906
      %v909 = vadd.f32 %v861, %v907
      %v910 = vadd.f32 %v862, %v907
      %v911 = vadd.f32 %v863, %v907
      %v912 = vadd.f32 %v864, %v907
      %v913 = vadd.f32 %v865, %v907
      %v914 = vadd.f32 %v866, %v907
      %v915 = vadd.f32 %v867, %v907
      %v916 = vadd.f32 %v868, %v907
      %v917 = vadd.f32 %v869, %v907
      %v918 = vadd.f32 %v870, %v907
      %v919 = vadd.f32 %v871, %v907
      %v920 = vadd.f32 %v872, %v907
      %v921 = vadd.f32 %v873, %v907
      %v922 = vadd.f32 %v874, %v907
      %v923 = vadd.f32 %v875, %v907
      %v924 = vadd.f32 %v876, %v907
      %v925 = vadd.f32 %v877, %v907
      %v926 = vadd.f32 %v878, %v907
      %v927 = vadd.f32 %v879, %v907
      %v928 = vadd.f32 %v880, %v907
      %v929 = vadd.f32 %v881, %v907
      %v930 = vadd.f32 %v882, %v907
      %v931 = vadd.f32 %v883, %v907
      %v932 = vadd.f32 %v884, %v907
      %v933 = vadd.f32 %v885, %v907
      %v934 = vadd.f32 %v886, %v907
      %v935 = vadd.f32 %v887, %v907
      %v936 = vadd.f32 %v888, %v907
      %v937 = vadd.f32 %v889, %v907
      %v938 = vadd.f32 %v890, %v907
      %v939 = vadd.f32 %v891, %v907
      %v940 = vadd.f32 %v892, %v907
      %v941 = vadd.f32 %v893, %v907
      %v942 = vadd.f32 %v894, %v907
      %v943 = vadd.f32 %v895, %v907
      %v944 = vadd.f32 %v896, %v907
      %v945 = vadd.f32 %v897, %v907
      %v946 = vadd.f32 %v898, %v907
      %v947 = vadd.f32 %v899, %v907
      %v948 = vadd.f32 %v900, %v907
      %v949 = vadd.f32 %v901, %v907
      %v950 = vmax.f32 %v909, 0.0
      %v951 = vmax.f32 %v910, 0.0
      %v952 = vmax.f32 %v911, 0.0
      %v953 = vmax.f32 %v912, 0.0
      %v954 = vmax.f32 %v913, 0.0
      %v955 = vmax.f32 %v914, 0.0
      %v956 = vmax.f32 %v915, 0.0
      %v957 = vmax.f32 %v916, 0.0
      %v958 = vmax.f32 %v917, 0.0
      %v959 = vmax.f32 %v918, 0.0
      %v960 = vmax.f32 %v919, 0.0
      %v961 = vmax.f32 %v920, 0.0
      %v962 = vmax.f32 %v921, 0.0
      %v963 = vmax.f32 %v922, 0.0
      %v964 = vmax.f32 %v923, 0.0
      %v965 = vmax.f32 %v924, 0.0
      %v966 = vmax.f32 %v925, 0.0
      %v967 = vmax.f32 %v926, 0.0
      %v968 = vmax.f32 %v927, 0.0
      %v969 = vmax.f32 %v928, 0.0
      %v970 = vmax.f32 %v929, 0.0
      %v971 = vmax.f32 %v930, 0.0
      %v972 = vmax.f32 %v931, 0.0
      %v973 = vmax.f32 %v932, 0.0
      %v974 = vmax.f32 %v933, 0.0
      %v975 = vmax.f32 %v934, 0.0
      %v976 = vmax.f32 %v935, 0.0
      %v977 = vmax.f32 %v936, 0.0
      %v978 = vmax.f32 %v937, 0.0
      %v979 = vmax.f32 %v938, 0.0
      %v980 = vmax.f32 %v939, 0.0
      %v981 = vmax.f32 %v940, 0.0
      %v982 = vmax.f32 %v941, 0.0
      %v983 = vmax.f32 %v942, 0.0
      %v984 = vmax.f32 %v943, 0.0
      %v985 = vmax.f32 %v944, 0.0
      %v986 = vmax.f32 %v945, 0.0
      %v987 = vmax.f32 %v946, 0.0
      %v988 = vmax.f32 %v947, 0.0
      %v989 = vmax.f32 %v948, 0.0
      %v990 = vmax.f32 %v949, 0.0
      %v991 = vld [vmem:[%s1] sm:$0xff]
      %v992 = vld [vmem:[%s1 + $0x8] sm:$0xff]
      %v993 = vld [vmem:[%s1 + $0x10] sm:$0xff]
      %v994 = vld [vmem:[%s1 + $0x18] sm:$0xff]
      %v995 = vld [vmem:[%s1 + $0x20] sm:$0xff]
      %v996 = vld [vmem:[%s1 + $0x28] sm:$0xff]
      %v997 = vld [vmem:[%s1 + $0x30] sm:$0xff]
      %v998 = vld [vmem:[%s1 + $0x38] sm:$0xff]
      %v999 = vld [vmem:[%s1 + $0x40] sm:$0xff]
      %v1000 = vld [vmem:[%s1 + $0x48] sm:$0xff]
      %v1001 = vld [vmem:[%s1 + $0x50] sm:$0xff]
      %v1002 = vld [vmem:[%s1 + $0x58] sm:$0xff]
      %v1003 = vld [vmem:[%s1 + $0x60] sm:$0xff]
      %v1004 = vld [vmem:[%s1 + $0x68] sm:$0xff]
      %v1005 = vld [vmem:[%s1 + $0x70] sm:$0xff]
      %v1006 = vld [vmem:[%s1 + $0x78] sm:$0xff]
      %v1007 = vld [vmem:[%s1 + $0x80] sm:$0xff]
      %v1008 = vld [vmem:[%s1 + $0x88] sm:$0xff]
      %v1009 = vld [vmem:[%s1 + $0x90] sm:$0xff]
      %v1010 = vld [vmem:[%s1 + $0x98] sm:$0xff]
      %v1011 = vld [vmem:[%s1 + $0xa0] sm:$0xff]
      %v1012 = vld [vmem:[%s1 + $0xa8] sm:$0xff]
      %v1013 = vld [vmem:[%s1 + $0xb0] sm:$0xff]
      %v1014 = vld [vmem:[%s1 + $0xb8] sm:$0xff]
      %v1015 = vld [vmem:[%s1 + $0xc0] sm:$0xff]
      %v1016 = vld [vmem:[%s1 + $0xc8] sm:$0xff]
      %v1017 = vld [vmem:[%s1 + $0xd0] sm:$0xff]
      %v1018 = vld [vmem:[%s1 + $0xd8] sm:$0xff]
      %v1019 = vld [vmem:[%s1 + $0xe0] sm:$0xff]
      %v1020 = vld [vmem:[%s1 + $0xe8] sm:$0xff]
      %v1021 = vld [vmem:[%s1 + $0xf0] sm:$0xff]
      %v1022 = vld [vmem:[%s1 + $0xf8] sm:$0xff]
      %v1023 = vld [vmem:[%s1 + $0x100] sm:$0xff]
      %v1024 = vld [vmem:[%s1 + $0x108] sm:$0xff]
      %v1025 = vld [vmem:[%s1 + $0x110] sm:$0xff]
      %v1026 = vld [vmem:[%s1 + $0x118] sm:$0xff]
      %v1027 = vld [vmem:[%s1 + $0x120] sm:$0xff]
      %v1028 = vld [vmem:[%s1 + $0x128] sm:$0xff]
      %v1029 = vld [vmem:[%s1 + $0x130] sm:$0xff]
      %v1030 = vld [vmem:[%s1 + $0x138] sm:$0xff]
      %v1031 = vld [vmem:[%s1 + $0x140] sm:$0x3f]
      %1033 = vset.pattern.permute.xlu0 0
      %1034 = vperm.xlu0 %1033, %v991
      %v1035 = vpop.permute.xlu0 %1034
      %1038 = vset.pattern.permute.xlu0 0
      %1039 = vperm.xlu0 %1038, %v992
      %v1040 = vpop.permute.xlu0 %1039
      %1043 = vset.pattern.permute.xlu0 0
      %1044 = vperm.xlu0 %1043, %v993
      %v1045 = vpop.permute.xlu0 %1044
      %1048 = vset.pattern.permute.xlu0 0
      %1049 = vperm.xlu0 %1048, %v994
      %v1050 = vpop.permute.xlu0 %1049
      %1053 = vset.pattern.permute.xlu0 0
      %1054 = vperm.xlu0 %1053, %v995
      %v1055 = vpop.permute.xlu0 %1054
      %1058 = vset.pattern.permute.xlu0 0
      %1059 = vperm.xlu0 %1058, %v996
      %v1060 = vpop.permute.xlu0 %1059
      %1063 = vset.pattern.permute.xlu0 0
      %1064 = vperm.xlu0 %1063, %v997
      %v1065 = vpop.permute.xlu0 %1064
      %1068 = vset.pattern.permute.xlu0 0
      %1069 = vperm.xlu0 %1068, %v998
      %v1070 = vpop.permute.xlu0 %1069
      %1073 = vset.pattern.permute.xlu0 0
      %1074 = vperm.xlu0 %1073, %v999
      %v1075 = vpop.permute.xlu0 %1074
      %1078 = vset.pattern.permute.xlu0 0
      %1079 = vperm.xlu0 %1078, %v1000
      %v1080 = vpop.permute.xlu0 %1079
      %1083 = vset.pattern.permute.xlu0 0
      %1084 = vperm.xlu0 %1083, %v1001
      %v1085 = vpop.permute.xlu0 %1084
      %1088 = vset.pattern.permute.xlu0 0
      %1089 = vperm.xlu0 %1088, %v1002
      %v1090 = vpop.permute.xlu0 %1089
      %1093 = vset.pattern.permute.xlu0 0
      %1094 = vperm.xlu0 %1093, %v1003
      %v1095 = vpop.permute.xlu0 %1094
      %1098 = vset.pattern.permute.xlu0 0
      %1099 = vperm.xlu0 %1098, %v1004
      %v1100 = vpop.permute.xlu0 %1099
      %1103 = vset.pattern.permute.xlu0 0
      %1104 = vperm.xlu0 %1103, %v1005
      %v1105 = vpop.permute.xlu0 %1104
      %1108 = vset.pattern.permute.xlu0 0
      %1109 = vperm.xlu0 %1108, %v1006
      %v1110 = vpop.permute.xlu0 %1109
      %1113 = vset.pattern.permute.xlu0 0
      %1114 = vperm.xlu0 %1113, %v1007
      %v1115 = vpop.permute.xlu0 %1114
      %1118 = vset.pattern.permute.xlu0 0
      %1119 = vperm.xlu0 %1118, %v1008
      %v1120 = vpop.permute.xlu0 %1119
      %1123 = vset.pattern.permute.xlu0 0
      %1124 = vperm.xlu0 %1123, %v1009
      %v1125 = vpop.permute.xlu0 %1124
      %1128 = vset.pattern.permute.xlu0 0
      %1129 = vperm.xlu0 %1128, %v1010
      %v1130 = vpop.permute.xlu0 %1129
      %1133 = vset.pattern.permute.xlu0 0
      %1134 = vperm.xlu0 %1133, %v1011
      %v1135 = vpop.permute.xlu0 %1134
      %1138 = vset.pattern.permute.xlu0 0
      %1139 = vperm.xlu0 %1138, %v1012
      %v1140 = vpop.permute.xlu0 %1139
      %1143 = vset.pattern.permute.xlu0 0
      %1144 = vperm.xlu0 %1143, %v1013
      %v1145 = vpop.permute.xlu0 %1144
      %1148 = vset.pattern.permute.xlu0 0
      %1149 = vperm.xlu0 %1148, %v1014
      %v1150 = vpop.permute.xlu0 %1149
      %1153 = vset.pattern.permute.xlu0 0
      %1154 = vperm.xlu0 %1153, %v1015
      %v1155 = vpop.permute.xlu0 %1154
      %1158 = vset.pattern.permute.xlu0 0
      %1159 = vperm.xlu0 %1158, %v1016
      %v1160 = vpop.permute.xlu0 %1159
      %1163 = vset.pattern.permute.xlu0 0
      %1164 = vperm.xlu0 %1163, %v1017
      %v1165 = vpop.permute.xlu0 %1164
      %1168 = vset.pattern.permute.xlu0 0
      %1169 = vperm.xlu0 %1168, %v1018
      %v1170 = vpop.permute.xlu0 %1169
      %1173 = vset.pattern.permute.xlu0 0
      %1174 = vperm.xlu0 %1173, %v1019
      %v1175 = vpop.permute.xlu0 %1174
      %1178 = vset.pattern.permute.xlu0 0
      %1179 = vperm.xlu0 %1178, %v1020
      %v1180 = vpop.permute.xlu0 %1179
      %1183 = vset.pattern.permute.xlu0 0
      %1184 = vperm.xlu0 %1183, %v1021
      %v1185 = vpop.permute.xlu0 %1184
      %1188 = vset.pattern.permute.xlu0 0
      %1189 = vperm.xlu0 %1188, %v1022
      %v1190 = vpop.permute.xlu0 %1189
      %1193 = vset.pattern.permute.xlu0 0
      %1194 = vperm.xlu0 %1193, %v1023
      %v1195 = vpop.permute.xlu0 %1194
      %1198 = vset.pattern.permute.xlu0 0
      %1199 = vperm.xlu0 %1198, %v1024
      %v1200 = vpop.permute.xlu0 %1199
      %1203 = vset.pattern.permute.xlu0 0
      %1204 = vperm.xlu0 %1203, %v1025
      %v1205 = vpop.permute.xlu0 %1204
      %1208 = vset.pattern.permute.xlu0 0
      %1209 = vperm.xlu0 %1208, %v1026
      %v1210 = vpop.permute.xlu0 %1209
      %1213 = vset.pattern.permute.xlu0 0
      %1214 = vperm.xlu0 %1213, %v1027
      %v1215 = vpop.permute.xlu0 %1214
      %1218 = vset.pattern.permute.xlu0 0
      %1219 = vperm.xlu0 %1218, %v1028
      %v1220 = vpop.permute.xlu0 %1219
      %1223 = vset.pattern.permute.xlu0 0
      %1224 = vperm.xlu0 %1223, %v1029
      %v1225 = vpop.permute.xlu0 %1224
      %1228 = vset.pattern.permute.xlu0 0
      %1229 = vperm.xlu0 %1228, %v1030
      %v1230 = vpop.permute.xlu0 %1229
      %1233 = vset.pattern.permute.xlu0 0
      %1234 = vperm.xlu0 %1233, %v1031
      %v1235 = vpop.permute.xlu0 %1234
      %v1237 = vmul.f32 %v950, %v1035
      %v1238 = vmul.f32 %v951, %v1040
      %v1239 = vmul.f32 %v952, %v1045
      %v1240 = vmul.f32 %v953, %v1050
      %v1241 = vmul.f32 %v954, %v1055
      %v1242 = vmul.f32 %v955, %v1060
      %v1243 = vmul.f32 %v956, %v1065
      %v1244 = vmul.f32 %v957, %v1070
      %v1245 = vmul.f32 %v958, %v1075
      %v1246 = vmul.f32 %v959, %v1080
      %v1247 = vmul.f32 %v960, %v1085
      %v1248 = vmul.f32 %v961, %v1090
      %v1249 = vmul.f32 %v962, %v1095
      %v1250 = vmul.f32 %v963, %v1100
      %v1251 = vmul.f32 %v964, %v1105
      %v1252 = vmul.f32 %v965, %v1110
      %v1253 = vmul.f32 %v966, %v1115
      %v1254 = vmul.f32 %v967, %v1120
      %v1255 = vmul.f32 %v968, %v1125
      %v1256 = vmul.f32 %v969, %v1130
      %v1257 = vmul.f32 %v970, %v1135
      %v1258 = vmul.f32 %v971, %v1140
      %v1259 = vmul.f32 %v972, %v1145
      %v1260 = vmul.f32 %v973, %v1150
      %v1261 = vmul.f32 %v974, %v1155
      %v1262 = vmul.f32 %v975, %v1160
      %v1263 = vmul.f32 %v976, %v1165
      %v1264 = vmul.f32 %v977, %v1170
      %v1265 = vmul.f32 %v978, %v1175
      %v1266 = vmul.f32 %v979, %v1180
      %v1267 = vmul.f32 %v980, %v1185
      %v1268 = vmul.f32 %v981, %v1190
      %v1269 = vmul.f32 %v982, %v1195
      %v1270 = vmul.f32 %v983, %v1200
      %v1271 = vmul.f32 %v984, %v1205
      %v1272 = vmul.f32 %v985, %v1210
      %v1273 = vmul.f32 %v986, %v1215
      %v1274 = vmul.f32 %v987, %v1220
      %v1275 = vmul.f32 %v988, %v1225
      %v1276 = vmul.f32 %v989, %v1230
      %v1277 = vmul.f32 %v990, %v1235
      %v1278 = vld [vmem:[%s6] sm:$0xff]
      %v1279 = vld [vmem:[%s6 + $0x8] sm:$0x1]
      %v1280 = vlaneseq
      %v1281 = vshrl.u32 %v1280, 7
      %v1282 = vsub.s32 0, %v1281
      %v1283 = vrot.slane %v1278, %v1282
      %v1284 = vmul.f32 %v1237, %v1283
      %v1285 = vmul.f32 %v1238, %v1283
      %v1286 = vmul.f32 %v1239, %v1283
      %v1287 = vmul.f32 %v1240, %v1283
      %v1288 = vmul.f32 %v1241, %v1283
      %v1289 = vmul.f32 %v1242, %v1283
      %v1290 = vmul.f32 %v1243, %v1283
      %v1291 = vmul.f32 %v1244, %v1283
      %v1292 = vmul.f32 %v1245, %v1283
      %v1293 = vmul.f32 %v1246, %v1283
      %v1294 = vmul.f32 %v1247, %v1283
      %v1295 = vmul.f32 %v1248, %v1283
      %v1296 = vmul.f32 %v1249, %v1283
      %v1297 = vmul.f32 %v1250, %v1283
      %v1298 = vmul.f32 %v1251, %v1283
      %v1299 = vmul.f32 %v1252, %v1283
      %v1300 = vmul.f32 %v1253, %v1283
      %v1301 = vmul.f32 %v1254, %v1283
      %v1302 = vmul.f32 %v1255, %v1283
      %v1303 = vmul.f32 %v1256, %v1283
      %v1304 = vmul.f32 %v1257, %v1283
      %v1305 = vmul.f32 %v1258, %v1283
      %v1306 = vmul.f32 %v1259, %v1283
      %v1307 = vmul.f32 %v1260, %v1283
      %v1308 = vmul.f32 %v1261, %v1283
      %v1309 = vmul.f32 %v1262, %v1283
      %v1310 = vmul.f32 %v1263, %v1283
      %v1311 = vmul.f32 %v1264, %v1283
      %v1312 = vmul.f32 %v1265, %v1283
      %v1313 = vmul.f32 %v1266, %v1283
      %v1314 = vmul.f32 %v1267, %v1283
      %v1315 = vmul.f32 %v1268, %v1283
      %v1316 = vmul.f32 %v1269, %v1283
      %v1317 = vmul.f32 %v1270, %v1283
      %v1318 = vmul.f32 %v1271, %v1283
      %v1319 = vmul.f32 %v1272, %v1283
      %v1320 = vlaneseq
      %v1321 = vshrl.u32 %v1320, 7
      %v1322 = vsub.s32 1, %v1321
      %v1323 = vrot.slane %v1278, %v1322
      %v1324 = vmul.f32 %v1237, %v1323
      %v1325 = vmul.f32 %v1238, %v1323
      %v1326 = vmul.f32 %v1239, %v1323
      %v1327 = vmul.f32 %v1240, %v1323
      %v1328 = vmul.f32 %v1241, %v1323
      %v1329 = vmul.f32 %v1242, %v1323
      %v1330 = vmul.f32 %v1243, %v1323
      %v1331 = vmul.f32 %v1244, %v1323
      %v1332 = vmul.f32 %v1245, %v1323
      %v1333 = vmul.f32 %v1246, %v1323
      %v1334 = vmul.f32 %v1247, %v1323
      %v1335 = vmul.f32 %v1248, %v1323
      %v1336 = vmul.f32 %v1249, %v1323
      %v1337 = vmul.f32 %v1250, %v1323
      %v1338 = vmul.f32 %v1251, %v1323
      %v1339 = vmul.f32 %v1252, %v1323
      %v1340 = vmul.f32 %v1253, %v1323
      %v1341 = vmul.f32 %v1254, %v1323
      %v1342 = vmul.f32 %v1255, %v1323
      %v1343 = vmul.f32 %v1256, %v1323
      %v1344 = vmul.f32 %v1257, %v1323
      %v1345 = vmul.f32 %v1258, %v1323
      %v1346 = vmul.f32 %v1259, %v1323
      %v1347 = vmul.f32 %v1260, %v1323
      %v1348 = vmul.f32 %v1261, %v1323
      %v1349 = vmul.f32 %v1262, %v1323
      %v1350 = vmul.f32 %v1263, %v1323
      %v1351 = vmul.f32 %v1264, %v1323
      %v1352 = vmul.f32 %v1265, %v1323
      %v1353 = vmul.f32 %v1266, %v1323
      %v1354 = vmul.f32 %v1267, %v1323
      %v1355 = vmul.f32 %v1268, %v1323
      %v1356 = vmul.f32 %v1269, %v1323
      %v1357 = vmul.f32 %v1270, %v1323
      %v1358 = vmul.f32 %v1271, %v1323
      %v1359 = vmul.f32 %v1272, %v1323
      %v1360 = vmul.f32 %v1273, %v1323
      %vm1398 = vcmask 1046528
      %v1399 = vrot.slane %v1324, 1
      %v1400 = vrot.slane %v1325, 1
      %v1401 = vsel %vm1398, %v1399, %v1400
      %v1402 = vrot.slane %v1326, 1
      %v1403 = vsel %vm1398, %v1400, %v1402
      %v1404 = vrot.slane %v1327, 1
      %v1405 = vsel %vm1398, %v1402, %v1404
      %v1406 = vrot.slane %v1328, 1
      %v1407 = vsel %vm1398, %v1404, %v1406
      %v1408 = vrot.slane %v1329, 1
      %v1409 = vsel %vm1398, %v1406, %v1408
      %v1410 = vrot.slane %v1330, 1
      %v1411 = vsel %vm1398, %v1408, %v1410
      %v1412 = vrot.slane %v1331, 1
      %v1413 = vsel %vm1398, %v1410, %v1412
      %v1414 = vrot.slane %v1332, 1
      %v1415 = vsel %vm1398, %v1412, %v1414
      %v1416 = vrot.slane %v1333, 1
      %v1417 = vsel %vm1398, %v1414, %v1416
      %v1418 = vrot.slane %v1334, 1
      %v1419 = vsel %vm1398, %v1416, %v1418
      %v1420 = vrot.slane %v1335, 1
      %v1421 = vsel %vm1398, %v1418, %v1420
      %v1422 = vrot.slane %v1336, 1
      %v1423 = vsel %vm1398, %v1420, %v1422
      %v1424 = vrot.slane %v1337, 1
      %v1425 = vsel %vm1398, %v1422, %v1424
      %v1426 = vrot.slane %v1338, 1
      %v1427 = vsel %vm1398, %v1424, %v1426
      %v1428 = vrot.slane %v1339, 1
      %v1429 = vsel %vm1398, %v1426, %v1428
      %v1430 = vrot.slane %v1340, 1
      %v1431 = vsel %vm1398, %v1428, %v1430
      %v1432 = vrot.slane %v1341, 1
      %v1433 = vsel %vm1398, %v1430, %v1432
      %v1434 = vrot.slane %v1342, 1
      %v1435 = vsel %vm1398, %v1432, %v1434
      %v1436 = vrot.slane %v1343, 1
      %v1437 = vsel %vm1398, %v1434, %v1436
      %v1438 = vrot.slane %v1344, 1
      %v1439 = vsel %vm1398, %v1436, %v1438
      %v1440 = vrot.slane %v1345, 1
      %v1441 = vsel %vm1398, %v1438, %v1440
      %v1442 = vrot.slane %v1346, 1
      %v1443 = vsel %vm1398, %v1440, %v1442
      %v1444 = vrot.slane %v1347, 1
      %v1445 = vsel %vm1398, %v1442, %v1444
      %v1446 = vrot.slane %v1348, 1
      %v1447 = vsel %vm1398, %v1444, %v1446
      %v1448 = vrot.slane %v1349, 1
      %v1449 = vsel %vm1398, %v1446, %v1448
      %v1450 = vrot.slane %v1350, 1
      %v1451 = vsel %vm1398, %v1448, %v1450
      %v1452 = vrot.slane %v1351, 1
      %v1453 = vsel %vm1398, %v1450, %v1452
      %v1454 = vrot.slane %v1352, 1
      %v1455 = vsel %vm1398, %v1452, %v1454
      %v1456 = vrot.slane %v1353, 1
      %v1457 = vsel %vm1398, %v1454, %v1456
      %v1458 = vrot.slane %v1354, 1
      %v1459 = vsel %vm1398, %v1456, %v1458
      %v1460 = vrot.slane %v1355, 1
      %v1461 = vsel %vm1398, %v1458, %v1460
      %v1462 = vrot.slane %v1356, 1
      %v1463 = vsel %vm1398, %v1460, %v1462
      %v1464 = vrot.slane %v1357, 1
      %v1465 = vsel %vm1398, %v1462, %v1464
      %v1466 = vrot.slane %v1358, 1
      %v1467 = vsel %vm1398, %v1464, %v1466
      %v1468 = vrot.slane %v1359, 1
      %v1469 = vsel %vm1398, %v1466, %v1468
      %v1470 = vrot.slane %v1360, 1
      %v1471 = vsel %vm1398, %v1468, %v1470
      %v1508 = vadd.f32 %v1284, %v1401
      %v1509 = vadd.f32 %v1285, %v1403
      %v1510 = vadd.f32 %v1286, %v1405
      %v1511 = vadd.f32 %v1287, %v1407
      %v1512 = vadd.f32 %v1288, %v1409
      %v1513 = vadd.f32 %v1289, %v1411
      %v1514 = vadd.f32 %v1290, %v1413
      %v1515 = vadd.f32 %v1291, %v1415
      %v1516 = vadd.f32 %v1292, %v1417
      %v1517 = vadd.f32 %v1293, %v1419
      %v1518 = vadd.f32 %v1294, %v1421
      %v1519 = vadd.f32 %v1295, %v1423
      %v1520 = vadd.f32 %v1296, %v1425
      %v1521 = vadd.f32 %v1297, %v1427
      %v1522 = vadd.f32 %v1298, %v1429
      %v1523 = vadd.f32 %v1299, %v1431
      %v1524 = vadd.f32 %v1300, %v1433
      %v1525 = vadd.f32 %v1301, %v1435
      %v1526 = vadd.f32 %v1302, %v1437
      %v1527 = vadd.f32 %v1303, %v1439
      %v1528 = vadd.f32 %v1304, %v1441
      %v1529 = vadd.f32 %v1305, %v1443
      %v1530 = vadd.f32 %v1306, %v1445
      %v1531 = vadd.f32 %v1307, %v1447
      %v1532 = vadd.f32 %v1308, %v1449
      %v1533 = vadd.f32 %v1309, %v1451
      %v1534 = vadd.f32 %v1310, %v1453
      %v1535 = vadd.f32 %v1311, %v1455
      %v1536 = vadd.f32 %v1312, %v1457
      %v1537 = vadd.f32 %v1313, %v1459
      %v1538 = vadd.f32 %v1314, %v1461
      %v1539 = vadd.f32 %v1315, %v1463
      %v1540 = vadd.f32 %v1316, %v1465
      %v1541 = vadd.f32 %v1317, %v1467
      %v1542 = vadd.f32 %v1318, %v1469
      %v1543 = vadd.f32 %v1319, %v1471
      %v1544 = vlaneseq
      %v1545 = vshrl.u32 %v1544, 7
      %v1546 = vsub.s32 2, %v1545
      %v1547 = vrot.slane %v1278, %v1546
      %v1548 = vmul.f32 %v1237, %v1547
      %v1549 = vmul.f32 %v1238, %v1547
      %v1550 = vmul.f32 %v1239, %v1547
      %v1551 = vmul.f32 %v1240, %v1547
      %v1552 = vmul.f32 %v1241, %v1547
      %v1553 = vmul.f32 %v1242, %v1547
      %v1554 = vmul.f32 %v1243, %v1547
      %v1555 = vmul.f32 %v1244, %v1547
      %v1556 = vmul.f32 %v1245, %v1547
      %v1557 = vmul.f32 %v1246, %v1547
      %v1558 = vmul.f32 %v1247, %v1547
      %v1559 = vmul.f32 %v1248, %v1547
      %v1560 = vmul.f32 %v1249, %v1547
      %v1561 = vmul.f32 %v1250, %v1547
      %v1562 = vmul.f32 %v1251, %v1547
      %v1563 = vmul.f32 %v1252, %v1547
      %v1564 = vmul.f32 %v1253, %v1547
      %v1565 = vmul.f32 %v1254, %v1547
      %v1566 = vmul.f32 %v1255, %v1547
      %v1567 = vmul.f32 %v1256, %v1547
      %v1568 = vmul.f32 %v1257, %v1547
      %v1569 = vmul.f32 %v1258, %v1547
      %v1570 = vmul.f32 %v1259, %v1547
      %v1571 = vmul.f32 %v1260, %v1547
      %v1572 = vmul.f32 %v1261, %v1547
      %v1573 = vmul.f32 %v1262, %v1547
      %v1574 = vmul.f32 %v1263, %v1547
      %v1575 = vmul.f32 %v1264, %v1547
      %v1576 = vmul.f32 %v1265, %v1547
      %v1577 = vmul.f32 %v1266, %v1547
      %v1578 = vmul.f32 %v1267, %v1547
      %v1579 = vmul.f32 %v1268, %v1547
      %v1580 = vmul.f32 %v1269, %v1547
      %v1581 = vmul.f32 %v1270, %v1547
      %v1582 = vmul.f32 %v1271, %v1547
      %v1583 = vmul.f32 %v1272, %v1547
      %v1584 = vmul.f32 %v1273, %v1547
      %vm1622 = vcmask 1045504
      %v1623 = vrot.slane %v1548, 2
      %v1624 = vrot.slane %v1549, 2
      %v1625 = vsel %vm1622, %v1623, %v1624
      %v1626 = vrot.slane %v1550, 2
      %v1627 = vsel %vm1622, %v1624, %v1626
      %v1628 = vrot.slane %v1551, 2
      %v1629 = vsel %vm1622, %v1626, %v1628
      %v1630 = vrot.slane %v1552, 2
      %v1631 = vsel %vm1622, %v1628, %v1630
      %v1632 = vrot.slane %v1553, 2
      %v1633 = vsel %vm1622, %v1630, %v1632
      %v1634 = vrot.slane %v1554, 2
      %v1635 = vsel %vm1622, %v1632, %v1634
      %v1636 = vrot.slane %v1555, 2
      %v1637 = vsel %vm1622, %v1634, %v1636
      %v1638 = vrot.slane %v1556, 2
      %v1639 = vsel %vm1622, %v1636, %v1638
      %v1640 = vrot.slane %v1557, 2
      %v1641 = vsel %vm1622, %v1638, %v1640
      %v1642 = vrot.slane %v1558, 2
      %v1643 = vsel %vm1622, %v1640, %v1642
      %v1644 = vrot.slane %v1559, 2
      %v1645 = vsel %vm1622, %v1642, %v1644
      %v1646 = vrot.slane %v1560, 2
      %v1647 = vsel %vm1622, %v1644, %v1646
      %v1648 = vrot.slane %v1561, 2
      %v1649 = vsel %vm1622, %v1646, %v1648
      %v1650 = vrot.slane %v1562, 2
      %v1651 = vsel %vm1622, %v1648, %v1650
      %v1652 = vrot.slane %v1563, 2
      %v1653 = vsel %vm1622, %v1650, %v1652
      %v1654 = vrot.slane %v1564, 2
      %v1655 = vsel %vm1622, %v1652, %v1654
      %v1656 = vrot.slane %v1565, 2
      %v1657 = vsel %vm1622, %v1654, %v1656
      %v1658 = vrot.slane %v1566, 2
      %v1659 = vsel %vm1622, %v1656, %v1658
      %v1660 = vrot.slane %v1567, 2
      %v1661 = vsel %vm1622, %v1658, %v1660
      %v1662 = vrot.slane %v1568, 2
      %v1663 = vsel %vm1622, %v1660, %v1662
      %v1664 = vrot.slane %v1569, 2
      %v1665 = vsel %vm1622, %v1662, %v1664
      %v1666 = vrot.slane %v1570, 2
      %v1667 = vsel %vm1622, %v1664, %v1666
      %v1668 = vrot.slane %v1571, 2
      %v1669 = vsel %vm1622, %v1666, %v1668
      %v1670 = vrot.slane %v1572, 2
      %v1671 = vsel %vm1622, %v1668, %v1670
      %v1672 = vrot.slane %v1573, 2
      %v1673 = vsel %vm1622, %v1670, %v1672
      %v1674 = vrot.slane %v1574, 2
      %v1675 = vsel %vm1622, %v1672, %v1674
      %v1676 = vrot.slane %v1575, 2
      %v1677 = vsel %vm1622, %v1674, %v1676
      %v1678 = vrot.slane %v1576, 2
      %v1679 = vsel %vm1622, %v1676, %v1678
      %v1680 = vrot.slane %v1577, 2
      %v1681 = vsel %vm1622, %v1678, %v1680
      %v1682 = vrot.slane %v1578, 2
      %v1683 = vsel %vm1622, %v1680, %v1682
      %v1684 = vrot.slane %v1579, 2
      %v1685 = vsel %vm1622, %v1682, %v1684
      %v1686 = vrot.slane %v1580, 2
      %v1687 = vsel %vm1622, %v1684, %v1686
      %v1688 = vrot.slane %v1581, 2
      %v1689 = vsel %vm1622, %v1686, %v1688
      %v1690 = vrot.slane %v1582, 2
      %v1691 = vsel %vm1622, %v1688, %v1690
      %v1692 = vrot.slane %v1583, 2
      %v1693 = vsel %vm1622, %v1690, %v1692
      %v1694 = vrot.slane %v1584, 2
      %v1695 = vsel %vm1622, %v1692, %v1694
      %v1732 = vadd.f32 %v1508, %v1625
      %v1733 = vadd.f32 %v1509, %v1627
      %v1734 = vadd.f32 %v1510, %v1629
      %v1735 = vadd.f32 %v1511, %v1631
      %v1736 = vadd.f32 %v1512, %v1633
      %v1737 = vadd.f32 %v1513, %v1635
      %v1738 = vadd.f32 %v1514, %v1637
      %v1739 = vadd.f32 %v1515, %v1639
      %v1740 = vadd.f32 %v1516, %v1641
      %v1741 = vadd.f32 %v1517, %v1643
      %v1742 = vadd.f32 %v1518, %v1645
      %v1743 = vadd.f32 %v1519, %v1647
      %v1744 = vadd.f32 %v1520, %v1649
      %v1745 = vadd.f32 %v1521, %v1651
      %v1746 = vadd.f32 %v1522, %v1653
      %v1747 = vadd.f32 %v1523, %v1655
      %v1748 = vadd.f32 %v1524, %v1657
      %v1749 = vadd.f32 %v1525, %v1659
      %v1750 = vadd.f32 %v1526, %v1661
      %v1751 = vadd.f32 %v1527, %v1663
      %v1752 = vadd.f32 %v1528, %v1665
      %v1753 = vadd.f32 %v1529, %v1667
      %v1754 = vadd.f32 %v1530, %v1669
      %v1755 = vadd.f32 %v1531, %v1671
      %v1756 = vadd.f32 %v1532, %v1673
      %v1757 = vadd.f32 %v1533, %v1675
      %v1758 = vadd.f32 %v1534, %v1677
      %v1759 = vadd.f32 %v1535, %v1679
      %v1760 = vadd.f32 %v1536, %v1681
      %v1761 = vadd.f32 %v1537, %v1683
      %v1762 = vadd.f32 %v1538, %v1685
      %v1763 = vadd.f32 %v1539, %v1687
      %v1764 = vadd.f32 %v1540, %v1689
      %v1765 = vadd.f32 %v1541, %v1691
      %v1766 = vadd.f32 %v1542, %v1693
      %v1767 = vadd.f32 %v1543, %v1695
      %v1768 = vlaneseq
      %v1769 = vshrl.u32 %v1768, 7
      %v1770 = vsub.s32 3, %v1769
      %v1771 = vrot.slane %v1278, %v1770
      %v1772 = vmul.f32 %v1239, %v1771
      %v1773 = vmul.f32 %v1240, %v1771
      %v1774 = vmul.f32 %v1241, %v1771
      %v1775 = vmul.f32 %v1242, %v1771
      %v1776 = vmul.f32 %v1243, %v1771
      %v1777 = vmul.f32 %v1244, %v1771
      %v1778 = vmul.f32 %v1245, %v1771
      %v1779 = vmul.f32 %v1246, %v1771
      %v1780 = vmul.f32 %v1247, %v1771
      %v1781 = vmul.f32 %v1248, %v1771
      %v1782 = vmul.f32 %v1249, %v1771
      %v1783 = vmul.f32 %v1250, %v1771
      %v1784 = vmul.f32 %v1251, %v1771
      %v1785 = vmul.f32 %v1252, %v1771
      %v1786 = vmul.f32 %v1253, %v1771
      %v1787 = vmul.f32 %v1254, %v1771
      %v1788 = vmul.f32 %v1255, %v1771
      %v1789 = vmul.f32 %v1256, %v1771
      %v1790 = vmul.f32 %v1257, %v1771
      %v1791 = vmul.f32 %v1258, %v1771
      %v1792 = vmul.f32 %v1259, %v1771
      %v1793 = vmul.f32 %v1260, %v1771
      %v1794 = vmul.f32 %v1261, %v1771
      %v1795 = vmul.f32 %v1262, %v1771
      %v1796 = vmul.f32 %v1263, %v1771
      %v1797 = vmul.f32 %v1264, %v1771
      %v1798 = vmul.f32 %v1265, %v1771
      %v1799 = vmul.f32 %v1266, %v1771
      %v1800 = vmul.f32 %v1267, %v1771
      %v1801 = vmul.f32 %v1268, %v1771
      %v1802 = vmul.f32 %v1269, %v1771
      %v1803 = vmul.f32 %v1270, %v1771
      %v1804 = vmul.f32 %v1271, %v1771
      %v1805 = vmul.f32 %v1272, %v1771
      %v1806 = vmul.f32 %v1273, %v1771
      %v1807 = vmul.f32 %v1274, %v1771
      %v1808 = vmul.f32 %v1275, %v1771
      %v1846 = vrot.slane %v1772, 2
      %v1847 = vrot.slane %v1773, 2
      %v1848 = vsel %vm1622, %v1846, %v1847
      %v1849 = vrot.slane %v1774, 2
      %v1850 = vsel %vm1622, %v1847, %v1849
      %v1851 = vrot.slane %v1775, 2
      %v1852 = vsel %vm1622, %v1849, %v1851
      %v1853 = vrot.slane %v1776, 2
      %v1854 = vsel %vm1622, %v1851, %v1853
      %v1855 = vrot.slane %v1777, 2
      %v1856 = vsel %vm1622, %v1853, %v1855
      %v1857 = vrot.slane %v1778, 2
      %v1858 = vsel %vm1622, %v1855, %v1857
      %v1859 = vrot.slane %v1779, 2
      %v1860 = vsel %vm1622, %v1857, %v1859
      %v1861 = vrot.slane %v1780, 2
      %v1862 = vsel %vm1622, %v1859, %v1861
      %v1863 = vrot.slane %v1781, 2
      %v1864 = vsel %vm1622, %v1861, %v1863
      %v1865 = vrot.slane %v1782, 2
      %v1866 = vsel %vm1622, %v1863, %v1865
      %v1867 = vrot.slane %v1783, 2
      %v1868 = vsel %vm1622, %v1865, %v1867
      %v1869 = vrot.slane %v1784, 2
      %v1870 = vsel %vm1622, %v1867, %v1869
      %v1871 = vrot.slane %v1785, 2
      %v1872 = vsel %vm1622, %v1869, %v1871
      %v1873 = vrot.slane %v1786, 2
      %v1874 = vsel %vm1622, %v1871, %v1873
      %v1875 = vrot.slane %v1787, 2
      %v1876 = vsel %vm1622, %v1873, %v1875
      %v1877 = vrot.slane %v1788, 2
      %v1878 = vsel %vm1622, %v1875, %v1877
      %v1879 = vrot.slane %v1789, 2
      %v1880 = vsel %vm1622, %v1877, %v1879
      %v1881 = vrot.slane %v1790, 2
      %v1882 = vsel %vm1622, %v1879, %v1881
      %v1883 = vrot.slane %v1791, 2
      %v1884 = vsel %vm1622, %v1881, %v1883
      %v1885 = vrot.slane %v1792, 2
      %v1886 = vsel %vm1622, %v1883, %v1885
      %v1887 = vrot.slane %v1793, 2
      %v1888 = vsel %vm1622, %v1885, %v1887
      %v1889 = vrot.slane %v1794, 2
      %v1890 = vsel %vm1622, %v1887, %v1889
      %v1891 = vrot.slane %v1795, 2
      %v1892 = vsel %vm1622, %v1889, %v1891
      %v1893 = vrot.slane %v1796, 2
      %v1894 = vsel %vm1622, %v1891, %v1893
      %v1895 = vrot.slane %v1797, 2
      %v1896 = vsel %vm1622, %v1893, %v1895
      %v1897 = vrot.slane %v1798, 2
      %v1898 = vsel %vm1622, %v1895, %v1897
      %v1899 = vrot.slane %v1799, 2
      %v1900 = vsel %vm1622, %v1897, %v1899
      %v1901 = vrot.slane %v1800, 2
      %v1902 = vsel %vm1622, %v1899, %v1901
      %v1903 = vrot.slane %v1801, 2
      %v1904 = vsel %vm1622, %v1901, %v1903
      %v1905 = vrot.slane %v1802, 2
      %v1906 = vsel %vm1622, %v1903, %v1905
      %v1907 = vrot.slane %v1803, 2
      %v1908 = vsel %vm1622, %v1905, %v1907
      %v1909 = vrot.slane %v1804, 2
      %v1910 = vsel %vm1622, %v1907, %v1909
      %v1911 = vrot.slane %v1805, 2
      %v1912 = vsel %vm1622, %v1909, %v1911
      %v1913 = vrot.slane %v1806, 2
      %v1914 = vsel %vm1622, %v1911, %v1913
      %v1915 = vrot.slane %v1807, 2
      %v1916 = vsel %vm1622, %v1913, %v1915
      %v1917 = vrot.slane %v1808, 2
      %v1918 = vsel %vm1622, %v1915, %v1917
      %v1955 = vadd.f32 %v1732, %v1848
      %v1956 = vadd.f32 %v1733, %v1850
      %v1957 = vadd.f32 %v1734, %v1852
      %v1958 = vadd.f32 %v1735, %v1854
      %v1959 = vadd.f32 %v1736, %v1856
      %v1960 = vadd.f32 %v1737, %v1858
      %v1961 = vadd.f32 %v1738, %v1860
      %v1962 = vadd.f32 %v1739, %v1862
      %v1963 = vadd.f32 %v1740, %v1864
      %v1964 = vadd.f32 %v1741, %v1866
      %v1965 = vadd.f32 %v1742, %v1868
      %v1966 = vadd.f32 %v1743, %v1870
      %v1967 = vadd.f32 %v1744, %v1872
      %v1968 = vadd.f32 %v1745, %v1874
      %v1969 = vadd.f32 %v1746, %v1876
      %v1970 = vadd.f32 %v1747, %v1878
      %v1971 = vadd.f32 %v1748, %v1880
      %v1972 = vadd.f32 %v1749, %v1882
      %v1973 = vadd.f32 %v1750, %v1884
      %v1974 = vadd.f32 %v1751, %v1886
      %v1975 = vadd.f32 %v1752, %v1888
      %v1976 = vadd.f32 %v1753, %v1890
      %v1977 = vadd.f32 %v1754, %v1892
      %v1978 = vadd.f32 %v1755, %v1894
      %v1979 = vadd.f32 %v1756, %v1896
      %v1980 = vadd.f32 %v1757, %v1898
      %v1981 = vadd.f32 %v1758, %v1900
      %v1982 = vadd.f32 %v1759, %v1902
      %v1983 = vadd.f32 %v1760, %v1904
      %v1984 = vadd.f32 %v1761, %v1906
      %v1985 = vadd.f32 %v1762, %v1908
      %v1986 = vadd.f32 %v1763, %v1910
      %v1987 = vadd.f32 %v1764, %v1912
      %v1988 = vadd.f32 %v1765, %v1914
      %v1989 = vadd.f32 %v1766, %v1916
      %v1990 = vadd.f32 %v1767, %v1918
      %v1991 = vlaneseq
      %v1992 = vshrl.u32 %v1991, 7
      %v1993 = vsub.s32 4, %v1992
      %v1994 = vrot.slane %v1278, %v1993
      %v1995 = vmul.f32 %v1239, %v1994
      %v1996 = vmul.f32 %v1240, %v1994
      %v1997 = vmul.f32 %v1241, %v1994
      %v1998 = vmul.f32 %v1242, %v1994
      %v1999 = vmul.f32 %v1243, %v1994
      %v2000 = vmul.f32 %v1244, %v1994
      %v2001 = vmul.f32 %v1245, %v1994
      %v2002 = vmul.f32 %v1246, %v1994
      %v2003 = vmul.f32 %v1247, %v1994
      %v2004 = vmul.f32 %v1248, %v1994
      %v2005 = vmul.f32 %v1249, %v1994
      %v2006 = vmul.f32 %v1250, %v1994
      %v2007 = vmul.f32 %v1251, %v1994
      %v2008 = vmul.f32 %v1252, %v1994
      %v2009 = vmul.f32 %v1253, %v1994
      %v2010 = vmul.f32 %v1254, %v1994
      %v2011 = vmul.f32 %v1255, %v1994
      %v2012 = vmul.f32 %v1256, %v1994
      %v2013 = vmul.f32 %v1257, %v1994
      %v2014 = vmul.f32 %v1258, %v1994
      %v2015 = vmul.f32 %v1259, %v1994
      %v2016 = vmul.f32 %v1260, %v1994
      %v2017 = vmul.f32 %v1261, %v1994
      %v2018 = vmul.f32 %v1262, %v1994
      %v2019 = vmul.f32 %v1263, %v1994
      %v2020 = vmul.f32 %v1264, %v1994
      %v2021 = vmul.f32 %v1265, %v1994
      %v2022 = vmul.f32 %v1266, %v1994
      %v2023 = vmul.f32 %v1267, %v1994
      %v2024 = vmul.f32 %v1268, %v1994
      %v2025 = vmul.f32 %v1269, %v1994
      %v2026 = vmul.f32 %v1270, %v1994
      %v2027 = vmul.f32 %v1271, %v1994
      %v2028 = vmul.f32 %v1272, %v1994
      %v2029 = vmul.f32 %v1273, %v1994
      %v2030 = vmul.f32 %v1274, %v1994
      %v2031 = vmul.f32 %v1275, %v1994
      %vm2069 = vcmask 1044480
      %v2070 = vrot.slane %v1995, 3
      %v2071 = vrot.slane %v1996, 3
      %v2072 = vsel %vm2069, %v2070, %v2071
      %v2073 = vrot.slane %v1997, 3
      %v2074 = vsel %vm2069, %v2071, %v2073
      %v2075 = vrot.slane %v1998, 3
      %v2076 = vsel %vm2069, %v2073, %v2075
      %v2077 = vrot.slane %v1999, 3
      %v2078 = vsel %vm2069, %v2075, %v2077
      %v2079 = vrot.slane %v2000, 3
      %v2080 = vsel %vm2069, %v2077, %v2079
      %v2081 = vrot.slane %v2001, 3
      %v2082 = vsel %vm2069, %v2079, %v2081
      %v2083 = vrot.slane %v2002, 3
      %v2084 = vsel %vm2069, %v2081, %v2083
      %v2085 = vrot.slane %v2003, 3
      %v2086 = vsel %vm2069, %v2083, %v2085
      %v2087 = vrot.slane %v2004, 3
      %v2088 = vsel %vm2069, %v2085, %v2087
      %v2089 = vrot.slane %v2005, 3
      %v2090 = vsel %vm2069, %v2087, %v2089
      %v2091 = vrot.slane %v2006, 3
      %v2092 = vsel %vm2069, %v2089, %v2091
      %v2093 = vrot.slane %v2007, 3
      %v2094 = vsel %vm2069, %v2091, %v2093
      %v2095 = vrot.slane %v2008, 3
      %v2096 = vsel %vm2069, %v2093, %v2095
      %v2097 = vrot.slane %v2009, 3
      %v2098 = vsel %vm2069, %v2095, %v2097
      %v2099 = vrot.slane %v2010, 3
      %v2100 = vsel %vm2069, %v2097, %v2099
      %v2101 = vrot.slane %v2011, 3
      %v2102 = vsel %vm2069, %v2099, %v2101
      %v2103 = vrot.slane %v2012, 3
      %v2104 = vsel %vm2069, %v2101, %v2103
      %v2105 = vrot.slane %v2013, 3
      %v2106 = vsel %vm2069, %v2103, %v2105
      %v2107 = vrot.slane %v2014, 3
      %v2108 = vsel %vm2069, %v2105, %v2107
      %v2109 = vrot.slane %v2015, 3
      %v2110 = vsel %vm2069, %v2107, %v2109
      %v2111 = vrot.slane %v2016, 3
      %v2112 = vsel %vm2069, %v2109, %v2111
      %v2113 = vrot.slane %v2017, 3
      %v2114 = vsel %vm2069, %v2111, %v2113
      %v2115 = vrot.slane %v2018, 3
      %v2116 = vsel %vm2069, %v2113, %v2115
      %v2117 = vrot.slane %v2019, 3
      %v2118 = vsel %vm2069, %v2115, %v2117
      %v2119 = vrot.slane %v2020, 3
      %v2120 = vsel %vm2069, %v2117, %v2119
      %v2121 = vrot.slane %v2021, 3
      %v2122 = vsel %vm2069, %v2119, %v2121
      %v2123 = vrot.slane %v2022, 3
      %v2124 = vsel %vm2069, %v2121, %v2123
      %v2125 = vrot.slane %v2023, 3
      %v2126 = vsel %vm2069, %v2123, %v2125
      %v2127 = vrot.slane %v2024, 3
      %v2128 = vsel %vm2069, %v2125, %v2127
      %v2129 = vrot.slane %v2025, 3
      %v2130 = vsel %vm2069, %v2127, %v2129
      %v2131 = vrot.slane %v2026, 3
      %v2132 = vsel %vm2069, %v2129, %v2131
      %v2133 = vrot.slane %v2027, 3
      %v2134 = vsel %vm2069, %v2131, %v2133
      %v2135 = vrot.slane %v2028, 3
      %v2136 = vsel %vm2069, %v2133, %v2135
      %v2137 = vrot.slane %v2029, 3
      %v2138 = vsel %vm2069, %v2135, %v2137
      %v2139 = vrot.slane %v2030, 3
      %v2140 = vsel %vm2069, %v2137, %v2139
      %v2141 = vrot.slane %v2031, 3
      %v2142 = vsel %vm2069, %v2139, %v2141
      %v2179 = vadd.f32 %v1955, %v2072
      %v2180 = vadd.f32 %v1956, %v2074
      %v2181 = vadd.f32 %v1957, %v2076
      %v2182 = vadd.f32 %v1958, %v2078
      %v2183 = vadd.f32 %v1959, %v2080
      %v2184 = vadd.f32 %v1960, %v2082
      %v2185 = vadd.f32 %v1961, %v2084
      %v2186 = vadd.f32 %v1962, %v2086
      %v2187 = vadd.f32 %v1963, %v2088
      %v2188 = vadd.f32 %v1964, %v2090
      %v2189 = vadd.f32 %v1965, %v2092
      %v2190 = vadd.f32 %v1966, %v2094
      %v2191 = vadd.f32 %v1967, %v2096
      %v2192 = vadd.f32 %v1968, %v2098
      %v2193 = vadd.f32 %v1969, %v2100
      %v2194 = vadd.f32 %v1970, %v2102
      %v2195 = vadd.f32 %v1971, %v2104
      %v2196 = vadd.f32 %v1972, %v2106
      %v2197 = vadd.f32 %v1973, %v2108
      %v2198 = vadd.f32 %v1974, %v2110
      %v2199 = vadd.f32 %v1975, %v2112
      %v2200 = vadd.f32 %v1976, %v2114
      %v2201 = vadd.f32 %v1977, %v2116
      %v2202 = vadd.f32 %v1978, %v2118
      %v2203 = vadd.f32 %v1979, %v2120
      %v2204 = vadd.f32 %v1980, %v2122
      %v2205 = vadd.f32 %v1981, %v2124
      %v2206 = vadd.f32 %v1982, %v2126
      %v2207 = vadd.f32 %v1983, %v2128
      %v2208 = vadd.f32 %v1984, %v2130
      %v2209 = vadd.f32 %v1985, %v2132
      %v2210 = vadd.f32 %v1986, %v2134
      %v2211 = vadd.f32 %v1987, %v2136
      %v2212 = vadd.f32 %v1988, %v2138
      %v2213 = vadd.f32 %v1989, %v2140
      %v2214 = vadd.f32 %v1990, %v2142
      %v2215 = vlaneseq
      %v2216 = vshrl.u32 %v2215, 7
      %v2217 = vsub.s32 5, %v2216
      %v2218 = vrot.slane %v1278, %v2217
      %v2219 = vmul.f32 %v1239, %v2218
      %v2220 = vmul.f32 %v1240, %v2218
      %v2221 = vmul.f32 %v1241, %v2218
      %v2222 = vmul.f32 %v1242, %v2218
      %v2223 = vmul.f32 %v1243, %v2218
      %v2224 = vmul.f32 %v1244, %v2218
      %v2225 = vmul.f32 %v1245, %v2218
      %v2226 = vmul.f32 %v1246, %v2218
      %v2227 = vmul.f32 %v1247, %v2218
      %v2228 = vmul.f32 %v1248, %v2218
      %v2229 = vmul.f32 %v1249, %v2218
      %v2230 = vmul.f32 %v1250, %v2218
      %v2231 = vmul.f32 %v1251, %v2218
      %v2232 = vmul.f32 %v1252, %v2218
      %v2233 = vmul.f32 %v1253, %v2218
      %v2234 = vmul.f32 %v1254, %v2218
      %v2235 = vmul.f32 %v1255, %v2218
      %v2236 = vmul.f32 %v1256, %v2218
      %v2237 = vmul.f32 %v1257, %v2218
      %v2238 = vmul.f32 %v1258, %v2218
      %v2239 = vmul.f32 %v1259, %v2218
      %v2240 = vmul.f32 %v1260, %v2218
      %v2241 = vmul.f32 %v1261, %v2218
      %v2242 = vmul.f32 %v1262, %v2218
      %v2243 = vmul.f32 %v1263, %v2218
      %v2244 = vmul.f32 %v1264, %v2218
      %v2245 = vmul.f32 %v1265, %v2218
      %v2246 = vmul.f32 %v1266, %v2218
      %v2247 = vmul.f32 %v1267, %v2218
      %v2248 = vmul.f32 %v1268, %v2218
      %v2249 = vmul.f32 %v1269, %v2218
      %v2250 = vmul.f32 %v1270, %v2218
      %v2251 = vmul.f32 %v1271, %v2218
      %v2252 = vmul.f32 %v1272, %v2218
      %v2253 = vmul.f32 %v1273, %v2218
      %v2254 = vmul.f32 %v1274, %v2218
      %v2255 = vmul.f32 %v1275, %v2218
      %vm2293 = vcmask 1043456
      %v2294 = vrot.slane %v2219, 4
      %v2295 = vrot.slane %v2220, 4
      %v2296 = vsel %vm2293, %v2294, %v2295
      %v2297 = vrot.slane %v2221, 4
      %v2298 = vsel %vm2293, %v2295, %v2297
      %v2299 = vrot.slane %v2222, 4
      %v2300 = vsel %vm2293, %v2297, %v2299
      %v2301 = vrot.slane %v2223, 4
      %v2302 = vsel %vm2293, %v2299, %v2301
      %v2303 = vrot.slane %v2224, 4
      %v2304 = vsel %vm2293, %v2301, %v2303
      %v2305 = vrot.slane %v2225, 4
      %v2306 = vsel %vm2293, %v2303, %v2305
      %v2307 = vrot.slane %v2226, 4
      %v2308 = vsel %vm2293, %v2305, %v2307
      %v2309 = vrot.slane %v2227, 4
      %v2310 = vsel %vm2293, %v2307, %v2309
      %v2311 = vrot.slane %v2228, 4
      %v2312 = vsel %vm2293, %v2309, %v2311
      %v2313 = vrot.slane %v2229, 4
      %v2314 = vsel %vm2293, %v2311, %v2313
      %v2315 = vrot.slane %v2230, 4
      %v2316 = vsel %vm2293, %v2313, %v2315
      %v2317 = vrot.slane %v2231, 4
      %v2318 = vsel %vm2293, %v2315, %v2317
      %v2319 = vrot.slane %v2232, 4
      %v2320 = vsel %vm2293, %v2317, %v2319
      %v2321 = vrot.slane %v2233, 4
      %v2322 = vsel %vm2293, %v2319, %v2321
      %v2323 = vrot.slane %v2234, 4
      %v2324 = vsel %vm2293, %v2321, %v2323
      %v2325 = vrot.slane %v2235, 4
      %v2326 = vsel %vm2293, %v2323, %v2325
      %v2327 = vrot.slane %v2236, 4
      %v2328 = vsel %vm2293, %v2325, %v2327
      %v2329 = vrot.slane %v2237, 4
      %v2330 = vsel %vm2293, %v2327, %v2329
      %v2331 = vrot.slane %v2238, 4
      %v2332 = vsel %vm2293, %v2329, %v2331
      %v2333 = vrot.slane %v2239, 4
      %v2334 = vsel %vm2293, %v2331, %v2333
      %v2335 = vrot.slane %v2240, 4
      %v2336 = vsel %vm2293, %v2333, %v2335
      %v2337 = vrot.slane %v2241, 4
      %v2338 = vsel %vm2293, %v2335, %v2337
      %v2339 = vrot.slane %v2242, 4
      %v2340 = vsel %vm2293, %v2337, %v2339
      %v2341 = vrot.slane %v2243, 4
      %v2342 = vsel %vm2293, %v2339, %v2341
      %v2343 = vrot.slane %v2244, 4
      %v2344 = vsel %vm2293, %v2341, %v2343
      %v2345 = vrot.slane %v2245, 4
      %v2346 = vsel %vm2293, %v2343, %v2345
      %v2347 = vrot.slane %v2246, 4
      %v2348 = vsel %vm2293, %v2345, %v2347
      %v2349 = vrot.slane %v2247, 4
      %v2350 = vsel %vm2293, %v2347, %v2349
      %v2351 = vrot.slane %v2248, 4
      %v2352 = vsel %vm2293, %v2349, %v2351
      %v2353 = vrot.slane %v2249, 4
      %v2354 = vsel %vm2293, %v2351, %v2353
      %v2355 = vrot.slane %v2250, 4
      %v2356 = vsel %vm2293, %v2353, %v2355
      %v2357 = vrot.slane %v2251, 4
      %v2358 = vsel %vm2293, %v2355, %v2357
      %v2359 = vrot.slane %v2252, 4
      %v2360 = vsel %vm2293, %v2357, %v2359
      %v2361 = vrot.slane %v2253, 4
      %v2362 = vsel %vm2293, %v2359, %v2361
      %v2363 = vrot.slane %v2254, 4
      %v2364 = vsel %vm2293, %v2361, %v2363
      %v2365 = vrot.slane %v2255, 4
      %v2366 = vsel %vm2293, %v2363, %v2365
      %v2403 = vadd.f32 %v2179, %v2296
      %v2404 = vadd.f32 %v2180, %v2298
      %v2405 = vadd.f32 %v2181, %v2300
      %v2406 = vadd.f32 %v2182, %v2302
      %v2407 = vadd.f32 %v2183, %v2304
      %v2408 = vadd.f32 %v2184, %v2306
      %v2409 = vadd.f32 %v2185, %v2308
      %v2410 = vadd.f32 %v2186, %v2310
      %v2411 = vadd.f32 %v2187, %v2312
      %v2412 = vadd.f32 %v2188, %v2314
      %v2413 = vadd.f32 %v2189, %v2316
      %v2414 = vadd.f32 %v2190, %v2318
      %v2415 = vadd.f32 %v2191, %v2320
      %v2416 = vadd.f32 %v2192, %v2322
      %v2417 = vadd.f32 %v2193, %v2324
      %v2418 = vadd.f32 %v2194, %v2326
      %v2419 = vadd.f32 %v2195, %v2328
      %v2420 = vadd.f32 %v2196, %v2330
      %v2421 = vadd.f32 %v2197, %v2332
      %v2422 = vadd.f32 %v2198, %v2334
      %v2423 = vadd.f32 %v2199, %v2336
      %v2424 = vadd.f32 %v2200, %v2338
      %v2425 = vadd.f32 %v2201, %v2340
      %v2426 = vadd.f32 %v2202, %v2342
      %v2427 = vadd.f32 %v2203, %v2344
      %v2428 = vadd.f32 %v2204, %v2346
      %v2429 = vadd.f32 %v2205, %v2348
      %v2430 = vadd.f32 %v2206, %v2350
      %v2431 = vadd.f32 %v2207, %v2352
      %v2432 = vadd.f32 %v2208, %v2354
      %v2433 = vadd.f32 %v2209, %v2356
      %v2434 = vadd.f32 %v2210, %v2358
      %v2435 = vadd.f32 %v2211, %v2360
      %v2436 = vadd.f32 %v2212, %v2362
      %v2437 = vadd.f32 %v2213, %v2364
      %v2438 = vadd.f32 %v2214, %v2366
      %v2439 = vlaneseq
      %v2440 = vshrl.u32 %v2439, 7
      %v2441 = vsub.s32 6, %v2440
      %v2442 = vrot.slane %v1278, %v2441
      %v2443 = vmul.f32 %v1241, %v2442
      %v2444 = vmul.f32 %v1242, %v2442
      %v2445 = vmul.f32 %v1243, %v2442
      %v2446 = vmul.f32 %v1244, %v2442
      %v2447 = vmul.f32 %v1245, %v2442
      %v2448 = vmul.f32 %v1246, %v2442
      %v2449 = vmul.f32 %v1247, %v2442
      %v2450 = vmul.f32 %v1248, %v2442
      %v2451 = vmul.f32 %v1249, %v2442
      %v2452 = vmul.f32 %v1250, %v2442
      %v2453 = vmul.f32 %v1251, %v2442
      %v2454 = vmul.f32 %v1252, %v2442
      %v2455 = vmul.f32 %v1253, %v2442
      %v2456 = vmul.f32 %v1254, %v2442
      %v2457 = vmul.f32 %v1255, %v2442
      %v2458 = vmul.f32 %v1256, %v2442
      %v2459 = vmul.f32 %v1257, %v2442
      %v2460 = vmul.f32 %v1258, %v2442
      %v2461 = vmul.f32 %v1259, %v2442
      %v2462 = vmul.f32 %v1260, %v2442
      %v2463 = vmul.f32 %v1261, %v2442
      %v2464 = vmul.f32 %v1262, %v2442
      %v2465 = vmul.f32 %v1263, %v2442
      %v2466 = vmul.f32 %v1264, %v2442
      %v2467 = vmul.f32 %v1265, %v2442
      %v2468 = vmul.f32 %v1266, %v2442
      %v2469 = vmul.f32 %v1267, %v2442
      %v2470 = vmul.f32 %v1268, %v2442
      %v2471 = vmul.f32 %v1269, %v2442
      %v2472 = vmul.f32 %v1270, %v2442
      %v2473 = vmul.f32 %v1271, %v2442
      %v2474 = vmul.f32 %v1272, %v2442
      %v2475 = vmul.f32 %v1273, %v2442
      %v2476 = vmul.f32 %v1274, %v2442
      %v2477 = vmul.f32 %v1275, %v2442
      %v2478 = vmul.f32 %v1276, %v2442
      %v2479 = vmul.f32 %v1277, %v2442
      %v2517 = vrot.slane %v2443, 4
      %v2518 = vrot.slane %v2444, 4
      %v2519 = vsel %vm2293, %v2517, %v2518
      %v2520 = vrot.slane %v2445, 4
      %v2521 = vsel %vm2293, %v2518, %v2520
      %v2522 = vrot.slane %v2446, 4
      %v2523 = vsel %vm2293, %v2520, %v2522
      %v2524 = vrot.slane %v2447, 4
      %v2525 = vsel %vm2293, %v2522, %v2524
      %v2526 = vrot.slane %v2448, 4
      %v2527 = vsel %vm2293, %v2524, %v2526
      %v2528 = vrot.slane %v2449, 4
      %v2529 = vsel %vm2293, %v2526, %v2528
      %v2530 = vrot.slane %v2450, 4
      %v2531 = vsel %vm2293, %v2528, %v2530
      %v2532 = vrot.slane %v2451, 4
      %v2533 = vsel %vm2293, %v2530, %v2532
      %v2534 = vrot.slane %v2452, 4
      %v2535 = vsel %vm2293, %v2532, %v2534
      %v2536 = vrot.slane %v2453, 4
      %v2537 = vsel %vm2293, %v2534, %v2536
      %v2538 = vrot.slane %v2454, 4
      %v2539 = vsel %vm2293, %v2536, %v2538
      %v2540 = vrot.slane %v2455, 4
      %v2541 = vsel %vm2293, %v2538, %v2540
      %v2542 = vrot.slane %v2456, 4
      %v2543 = vsel %vm2293, %v2540, %v2542
      %v2544 = vrot.slane %v2457, 4
      %v2545 = vsel %vm2293, %v2542, %v2544
      %v2546 = vrot.slane %v2458, 4
      %v2547 = vsel %vm2293, %v2544, %v2546
      %v2548 = vrot.slane %v2459, 4
      %v2549 = vsel %vm2293, %v2546, %v2548
      %v2550 = vrot.slane %v2460, 4
      %v2551 = vsel %vm2293, %v2548, %v2550
      %v2552 = vrot.slane %v2461, 4
      %v2553 = vsel %vm2293, %v2550, %v2552
      %v2554 = vrot.slane %v2462, 4
      %v2555 = vsel %vm2293, %v2552, %v2554
      %v2556 = vrot.slane %v2463, 4
      %v2557 = vsel %vm2293, %v2554, %v2556
      %v2558 = vrot.slane %v2464, 4
      %v2559 = vsel %vm2293, %v2556, %v2558
      %v2560 = vrot.slane %v2465, 4
      %v2561 = vsel %vm2293, %v2558, %v2560
      %v2562 = vrot.slane %v2466, 4
      %v2563 = vsel %vm2293, %v2560, %v2562
      %v2564 = vrot.slane %v2467, 4
      %v2565 = vsel %vm2293, %v2562, %v2564
      %v2566 = vrot.slane %v2468, 4
      %v2567 = vsel %vm2293, %v2564, %v2566
      %v2568 = vrot.slane %v2469, 4
      %v2569 = vsel %vm2293, %v2566, %v2568
      %v2570 = vrot.slane %v2470, 4
      %v2571 = vsel %vm2293, %v2568, %v2570
      %v2572 = vrot.slane %v2471, 4
      %v2573 = vsel %vm2293, %v2570, %v2572
      %v2574 = vrot.slane %v2472, 4
      %v2575 = vsel %vm2293, %v2572, %v2574
      %v2576 = vrot.slane %v2473, 4
      %v2577 = vsel %vm2293, %v2574, %v2576
      %v2578 = vrot.slane %v2474, 4
      %v2579 = vsel %vm2293, %v2576, %v2578
      %v2580 = vrot.slane %v2475, 4
      %v2581 = vsel %vm2293, %v2578, %v2580
      %v2582 = vrot.slane %v2476, 4
      %v2583 = vsel %vm2293, %v2580, %v2582
      %v2584 = vrot.slane %v2477, 4
      %v2585 = vsel %vm2293, %v2582, %v2584
      %v2586 = vrot.slane %v2478, 4
      %v2587 = vsel %vm2293, %v2584, %v2586
      %v2588 = vrot.slane %v2479, 4
      %v2589 = vsel %vm2293, %v2586, %v2588
      %v2626 = vadd.f32 %v2403, %v2519
      %v2627 = vadd.f32 %v2404, %v2521
      %v2628 = vadd.f32 %v2405, %v2523
      %v2629 = vadd.f32 %v2406, %v2525
      %v2630 = vadd.f32 %v2407, %v2527
      %v2631 = vadd.f32 %v2408, %v2529
      %v2632 = vadd.f32 %v2409, %v2531
      %v2633 = vadd.f32 %v2410, %v2533
      %v2634 = vadd.f32 %v2411, %v2535
      %v2635 = vadd.f32 %v2412, %v2537
      %v2636 = vadd.f32 %v2413, %v2539
      %v2637 = vadd.f32 %v2414, %v2541
      %v2638 = vadd.f32 %v2415, %v2543
      %v2639 = vadd.f32 %v2416, %v2545
      %v2640 = vadd.f32 %v2417, %v2547
      %v2641 = vadd.f32 %v2418, %v2549
      %v2642 = vadd.f32 %v2419, %v2551
      %v2643 = vadd.f32 %v2420, %v2553
      %v2644 = vadd.f32 %v2421, %v2555
      %v2645 = vadd.f32 %v2422, %v2557
      %v2646 = vadd.f32 %v2423, %v2559
      %v2647 = vadd.f32 %v2424, %v2561
      %v2648 = vadd.f32 %v2425, %v2563
      %v2649 = vadd.f32 %v2426, %v2565
      %v2650 = vadd.f32 %v2427, %v2567
      %v2651 = vadd.f32 %v2428, %v2569
      %v2652 = vadd.f32 %v2429, %v2571
      %v2653 = vadd.f32 %v2430, %v2573
      %v2654 = vadd.f32 %v2431, %v2575
      %v2655 = vadd.f32 %v2432, %v2577
      %v2656 = vadd.f32 %v2433, %v2579
      %v2657 = vadd.f32 %v2434, %v2581
      %v2658 = vadd.f32 %v2435, %v2583
      %v2659 = vadd.f32 %v2436, %v2585
      %v2660 = vadd.f32 %v2437, %v2587
      %v2661 = vadd.f32 %v2438, %v2589
      %v2662 = vlaneseq
      %v2663 = vshrl.u32 %v2662, 7
      %v2664 = vsub.s32 7, %v2663
      %v2665 = vrot.slane %v1278, %v2664
      %v2666 = vmul.f32 %v1241, %v2665
      %v2667 = vmul.f32 %v1242, %v2665
      %v2668 = vmul.f32 %v1243, %v2665
      %v2669 = vmul.f32 %v1244, %v2665
      %v2670 = vmul.f32 %v1245, %v2665
      %v2671 = vmul.f32 %v1246, %v2665
      %v2672 = vmul.f32 %v1247, %v2665
      %v2673 = vmul.f32 %v1248, %v2665
      %v2674 = vmul.f32 %v1249, %v2665
      %v2675 = vmul.f32 %v1250, %v2665
      %v2676 = vmul.f32 %v1251, %v2665
      %v2677 = vmul.f32 %v1252, %v2665
      %v2678 = vmul.f32 %v1253, %v2665
      %v2679 = vmul.f32 %v1254, %v2665
      %v2680 = vmul.f32 %v1255, %v2665
      %v2681 = vmul.f32 %v1256, %v2665
      %v2682 = vmul.f32 %v1257, %v2665
      %v2683 = vmul.f32 %v1258, %v2665
      %v2684 = vmul.f32 %v1259, %v2665
      %v2685 = vmul.f32 %v1260, %v2665
      %v2686 = vmul.f32 %v1261, %v2665
      %v2687 = vmul.f32 %v1262, %v2665
      %v2688 = vmul.f32 %v1263, %v2665
      %v2689 = vmul.f32 %v1264, %v2665
      %v2690 = vmul.f32 %v1265, %v2665
      %v2691 = vmul.f32 %v1266, %v2665
      %v2692 = vmul.f32 %v1267, %v2665
      %v2693 = vmul.f32 %v1268, %v2665
      %v2694 = vmul.f32 %v1269, %v2665
      %v2695 = vmul.f32 %v1270, %v2665
      %v2696 = vmul.f32 %v1271, %v2665
      %v2697 = vmul.f32 %v1272, %v2665
      %v2698 = vmul.f32 %v1273, %v2665
      %v2699 = vmul.f32 %v1274, %v2665
      %v2700 = vmul.f32 %v1275, %v2665
      %v2701 = vmul.f32 %v1276, %v2665
      %v2702 = vmul.f32 %v1277, %v2665
      %vm2740 = vcmask 1042432
      %v2741 = vrot.slane %v2666, 5
      %v2742 = vrot.slane %v2667, 5
      %v2743 = vsel %vm2740, %v2741, %v2742
      %v2744 = vrot.slane %v2668, 5
      %v2745 = vsel %vm2740, %v2742, %v2744
      %v2746 = vrot.slane %v2669, 5
      %v2747 = vsel %vm2740, %v2744, %v2746
      %v2748 = vrot.slane %v2670, 5
      %v2749 = vsel %vm2740, %v2746, %v2748
      %v2750 = vrot.slane %v2671, 5
      %v2751 = vsel %vm2740, %v2748, %v2750
      %v2752 = vrot.slane %v2672, 5
      %v2753 = vsel %vm2740, %v2750, %v2752
      %v2754 = vrot.slane %v2673, 5
      %v2755 = vsel %vm2740, %v2752, %v2754
      %v2756 = vrot.slane %v2674, 5
      %v2757 = vsel %vm2740, %v2754, %v2756
      %v2758 = vrot.slane %v2675, 5
      %v2759 = vsel %vm2740, %v2756, %v2758
      %v2760 = vrot.slane %v2676, 5
      %v2761 = vsel %vm2740, %v2758, %v2760
      %v2762 = vrot.slane %v2677, 5
      %v2763 = vsel %vm2740, %v2760, %v2762
      %v2764 = vrot.slane %v2678, 5
      %v2765 = vsel %vm2740, %v2762, %v2764
      %v2766 = vrot.slane %v2679, 5
      %v2767 = vsel %vm2740, %v2764, %v2766
      %v2768 = vrot.slane %v2680, 5
      %v2769 = vsel %vm2740, %v2766, %v2768
      %v2770 = vrot.slane %v2681, 5
      %v2771 = vsel %vm2740, %v2768, %v2770
      %v2772 = vrot.slane %v2682, 5
      %v2773 = vsel %vm2740, %v2770, %v2772
      %v2774 = vrot.slane %v2683, 5
      %v2775 = vsel %vm2740, %v2772, %v2774
      %v2776 = vrot.slane %v2684, 5
      %v2777 = vsel %vm2740, %v2774, %v2776
      %v2778 = vrot.slane %v2685, 5
      %v2779 = vsel %vm2740, %v2776, %v2778
      %v2780 = vrot.slane %v2686, 5
      %v2781 = vsel %vm2740, %v2778, %v2780
      %v2782 = vrot.slane %v2687, 5
      %v2783 = vsel %vm2740, %v2780, %v2782
      %v2784 = vrot.slane %v2688, 5
      %v2785 = vsel %vm2740, %v2782, %v2784
      %v2786 = vrot.slane %v2689, 5
      %v2787 = vsel %vm2740, %v2784, %v2786
      %v2788 = vrot.slane %v2690, 5
      %v2789 = vsel %vm2740, %v2786, %v2788
      %v2790 = vrot.slane %v2691, 5
      %v2791 = vsel %vm2740, %v2788, %v2790
      %v2792 = vrot.slane %v2692, 5
      %v2793 = vsel %vm2740, %v2790, %v2792
      %v2794 = vrot.slane %v2693, 5
      %v2795 = vsel %vm2740, %v2792, %v2794
      %v2796 = vrot.slane %v2694, 5
      %v2797 = vsel %vm2740, %v2794, %v2796
      %v2798 = vrot.slane %v2695, 5
      %v2799 = vsel %vm2740, %v2796, %v2798
      %v2800 = vrot.slane %v2696, 5
      %v2801 = vsel %vm2740, %v2798, %v2800
      %v2802 = vrot.slane %v2697, 5
      %v2803 = vsel %vm2740, %v2800, %v2802
      %v2804 = vrot.slane %v2698, 5
      %v2805 = vsel %vm2740, %v2802, %v2804
      %v2806 = vrot.slane %v2699, 5
      %v2807 = vsel %vm2740, %v2804, %v2806
      %v2808 = vrot.slane %v2700, 5
      %v2809 = vsel %vm2740, %v2806, %v2808
      %v2810 = vrot.slane %v2701, 5
      %v2811 = vsel %vm2740, %v2808, %v2810
      %v2812 = vrot.slane %v2702, 5
      %v2813 = vsel %vm2740, %v2810, %v2812
      %v2850 = vadd.f32 %v2626, %v2743
      %v2851 = vadd.f32 %v2627, %v2745
      %v2852 = vadd.f32 %v2628, %v2747
      %v2853 = vadd.f32 %v2629, %v2749
      %v2854 = vadd.f32 %v2630, %v2751
      %v2855 = vadd.f32 %v2631, %v2753
      %v2856 = vadd.f32 %v2632, %v2755
      %v2857 = vadd.f32 %v2633, %v2757
      %v2858 = vadd.f32 %v2634, %v2759
      %v2859 = vadd.f32 %v2635, %v2761
      %v2860 = vadd.f32 %v2636, %v2763
      %v2861 = vadd.f32 %v2637, %v2765
      %v2862 = vadd.f32 %v2638, %v2767
      %v2863 = vadd.f32 %v2639, %v2769
      %v2864 = vadd.f32 %v2640, %v2771
      %v2865 = vadd.f32 %v2641, %v2773
      %v2866 = vadd.f32 %v2642, %v2775
      %v2867 = vadd.f32 %v2643, %v2777
      %v2868 = vadd.f32 %v2644, %v2779
      %v2869 = vadd.f32 %v2645, %v2781
      %v2870 = vadd.f32 %v2646, %v2783
      %v2871 = vadd.f32 %v2647, %v2785
      %v2872 = vadd.f32 %v2648, %v2787
      %v2873 = vadd.f32 %v2649, %v2789
      %v2874 = vadd.f32 %v2650, %v2791
      %v2875 = vadd.f32 %v2651, %v2793
      %v2876 = vadd.f32 %v2652, %v2795
      %v2877 = vadd.f32 %v2653, %v2797
      %v2878 = vadd.f32 %v2654, %v2799
      %v2879 = vadd.f32 %v2655, %v2801
      %v2880 = vadd.f32 %v2656, %v2803
      %v2881 = vadd.f32 %v2657, %v2805
      %v2882 = vadd.f32 %v2658, %v2807
      %v2883 = vadd.f32 %v2659, %v2809
      %v2884 = vadd.f32 %v2660, %v2811
      %v2885 = vadd.f32 %v2661, %v2813
      %v2886 = vlaneseq
      %v2887 = vshrl.u32 %v2886, 7
      %v2888 = vsub.s32 0, %v2887
      %v2889 = vrot.slane %v1279, %v2888
      %v2890 = vmul.f32 %v1241, %v2889
      %v2891 = vmul.f32 %v1242, %v2889
      %v2892 = vmul.f32 %v1243, %v2889
      %v2893 = vmul.f32 %v1244, %v2889
      %v2894 = vmul.f32 %v1245, %v2889
      %v2895 = vmul.f32 %v1246, %v2889
      %v2896 = vmul.f32 %v1247, %v2889
      %v2897 = vmul.f32 %v1248, %v2889
      %v2898 = vmul.f32 %v1249, %v2889
      %v2899 = vmul.f32 %v1250, %v2889
      %v2900 = vmul.f32 %v1251, %v2889
      %v2901 = vmul.f32 %v1252, %v2889
      %v2902 = vmul.f32 %v1253, %v2889
      %v2903 = vmul.f32 %v1254, %v2889
      %v2904 = vmul.f32 %v1255, %v2889
      %v2905 = vmul.f32 %v1256, %v2889
      %v2906 = vmul.f32 %v1257, %v2889
      %v2907 = vmul.f32 %v1258, %v2889
      %v2908 = vmul.f32 %v1259, %v2889
      %v2909 = vmul.f32 %v1260, %v2889
      %v2910 = vmul.f32 %v1261, %v2889
      %v2911 = vmul.f32 %v1262, %v2889
      %v2912 = vmul.f32 %v1263, %v2889
      %v2913 = vmul.f32 %v1264, %v2889
      %v2914 = vmul.f32 %v1265, %v2889
      %v2915 = vmul.f32 %v1266, %v2889
      %v2916 = vmul.f32 %v1267, %v2889
      %v2917 = vmul.f32 %v1268, %v2889
      %v2918 = vmul.f32 %v1269, %v2889
      %v2919 = vmul.f32 %v1270, %v2889
      %v2920 = vmul.f32 %v1271, %v2889
      %v2921 = vmul.f32 %v1272, %v2889
      %v2922 = vmul.f32 %v1273, %v2889
      %v2923 = vmul.f32 %v1274, %v2889
      %v2924 = vmul.f32 %v1275, %v2889
      %v2925 = vmul.f32 %v1276, %v2889
      %v2926 = vmul.f32 %v1277, %v2889
      %v2964 = vrot.slane %v2890, 6
      %v2965 = vrot.slane %v2891, 6
      %v2966 = vsel %vm580, %v2964, %v2965
      %v2967 = vrot.slane %v2892, 6
      %v2968 = vsel %vm580, %v2965, %v2967
      %v2969 = vrot.slane %v2893, 6
      %v2970 = vsel %vm580, %v2967, %v2969
      %v2971 = vrot.slane %v2894, 6
      %v2972 = vsel %vm580, %v2969, %v2971
      %v2973 = vrot.slane %v2895, 6
      %v2974 = vsel %vm580, %v2971, %v2973
      %v2975 = vrot.slane %v2896, 6
      %v2976 = vsel %vm580, %v2973, %v2975
      %v2977 = vrot.slane %v2897, 6
      %v2978 = vsel %vm580, %v2975, %v2977
      %v2979 = vrot.slane %v2898, 6
      %v2980 = vsel %vm580, %v2977, %v2979
      %v2981 = vrot.slane %v2899, 6
      %v2982 = vsel %vm580, %v2979, %v2981
      %v2983 = vrot.slane %v2900, 6
      %v2984 = vsel %vm580, %v2981, %v2983
      %v2985 = vrot.slane %v2901, 6
      %v2986 = vsel %vm580, %v2983, %v2985
      %v2987 = vrot.slane %v2902, 6
      %v2988 = vsel %vm580, %v2985, %v2987
      %v2989 = vrot.slane %v2903, 6
      %v2990 = vsel %vm580, %v2987, %v2989
      %v2991 = vrot.slane %v2904, 6
      %v2992 = vsel %vm580, %v2989, %v2991
      %v2993 = vrot.slane %v2905, 6
      %v2994 = vsel %vm580, %v2991, %v2993
      %v2995 = vrot.slane %v2906, 6
      %v2996 = vsel %vm580, %v2993, %v2995
      %v2997 = vrot.slane %v2907, 6
      %v2998 = vsel %vm580, %v2995, %v2997
      %v2999 = vrot.slane %v2908, 6
      %v3000 = vsel %vm580, %v2997, %v2999
      %v3001 = vrot.slane %v2909, 6
      %v3002 = vsel %vm580, %v2999, %v3001
      %v3003 = vrot.slane %v2910, 6
      %v3004 = vsel %vm580, %v3001, %v3003
      %v3005 = vrot.slane %v2911, 6
      %v3006 = vsel %vm580, %v3003, %v3005
      %v3007 = vrot.slane %v2912, 6
      %v3008 = vsel %vm580, %v3005, %v3007
      %v3009 = vrot.slane %v2913, 6
      %v3010 = vsel %vm580, %v3007, %v3009
      %v3011 = vrot.slane %v2914, 6
      %v3012 = vsel %vm580, %v3009, %v3011
      %v3013 = vrot.slane %v2915, 6
      %v3014 = vsel %vm580, %v3011, %v3013
      %v3015 = vrot.slane %v2916, 6
      %v3016 = vsel %vm580, %v3013, %v3015
      %v3017 = vrot.slane %v2917, 6
      %v3018 = vsel %vm580, %v3015, %v3017
      %v3019 = vrot.slane %v2918, 6
      %v3020 = vsel %vm580, %v3017, %v3019
      %v3021 = vrot.slane %v2919, 6
      %v3022 = vsel %vm580, %v3019, %v3021
      %v3023 = vrot.slane %v2920, 6
      %v3024 = vsel %vm580, %v3021, %v3023
      %v3025 = vrot.slane %v2921, 6
      %v3026 = vsel %vm580, %v3023, %v3025
      %v3027 = vrot.slane %v2922, 6
      %v3028 = vsel %vm580, %v3025, %v3027
      %v3029 = vrot.slane %v2923, 6
      %v3030 = vsel %vm580, %v3027, %v3029
      %v3031 = vrot.slane %v2924, 6
      %v3032 = vsel %vm580, %v3029, %v3031
      %v3033 = vrot.slane %v2925, 6
      %v3034 = vsel %vm580, %v3031, %v3033
      %v3035 = vrot.slane %v2926, 6
      %v3036 = vsel %vm580, %v3033, %v3035
      %v3073 = vadd.f32 %v2850, %v2966
      %v3074 = vadd.f32 %v2851, %v2968
      %v3075 = vadd.f32 %v2852, %v2970
      %v3076 = vadd.f32 %v2853, %v2972
      %v3077 = vadd.f32 %v2854, %v2974
      %v3078 = vadd.f32 %v2855, %v2976
      %v3079 = vadd.f32 %v2856, %v2978
      %v3080 = vadd.f32 %v2857, %v2980
      %v3081 = vadd.f32 %v2858, %v2982
      %v3082 = vadd.f32 %v2859, %v2984
      %v3083 = vadd.f32 %v2860, %v2986
      %v3084 = vadd.f32 %v2861, %v2988
      %v3085 = vadd.f32 %v2862, %v2990
      %v3086 = vadd.f32 %v2863, %v2992
      %v3087 = vadd.f32 %v2864, %v2994
      %v3088 = vadd.f32 %v2865, %v2996
      %v3089 = vadd.f32 %v2866, %v2998
      %v3090 = vadd.f32 %v2867, %v3000
      %v3091 = vadd.f32 %v2868, %v3002
      %v3092 = vadd.f32 %v2869, %v3004
      %v3093 = vadd.f32 %v2870, %v3006
      %v3094 = vadd.f32 %v2871, %v3008
      %v3095 = vadd.f32 %v2872, %v3010
      %v3096 = vadd.f32 %v2873, %v3012
      %v3097 = vadd.f32 %v2874, %v3014
      %v3098 = vadd.f32 %v2875, %v3016
      %v3099 = vadd.f32 %v2876, %v3018
      %v3100 = vadd.f32 %v2877, %v3020
      %v3101 = vadd.f32 %v2878, %v3022
      %v3102 = vadd.f32 %v2879, %v3024
      %v3103 = vadd.f32 %v2880, %v3026
      %v3104 = vadd.f32 %v2881, %v3028
      %v3105 = vadd.f32 %v2882, %v3030
      %v3106 = vadd.f32 %v2883, %v3032
      %v3107 = vadd.f32 %v2884, %v3034
      %v3108 = vadd.f32 %v2885, %v3036
      %v3109 = vld [vmem:[%s7] sm:$0x1]
      %v3111 = vlaneseq
      %v3112 = vshrl.u32 %v3111, 7
      %v3113 = vsub.s32 0, %v3112
      %v3114 = vrot.slane %v3109, %v3113
      %v3116 = vmul.f32 %v3073, %v3114
      %v3117 = vmul.f32 %v3074, %v3114
      %v3118 = vmul.f32 %v3075, %v3114
      %v3119 = vmul.f32 %v3076, %v3114
      %v3120 = vmul.f32 %v3077, %v3114
      %v3121 = vmul.f32 %v3078, %v3114
      %v3122 = vmul.f32 %v3079, %v3114
      %v3123 = vmul.f32 %v3080, %v3114
      %v3124 = vmul.f32 %v3081, %v3114
      %v3125 = vmul.f32 %v3082, %v3114
      %v3126 = vmul.f32 %v3083, %v3114
      %v3127 = vmul.f32 %v3084, %v3114
      %v3128 = vmul.f32 %v3085, %v3114
      %v3129 = vmul.f32 %v3086, %v3114
      %v3130 = vmul.f32 %v3087, %v3114
      %v3131 = vmul.f32 %v3088, %v3114
      %v3132 = vmul.f32 %v3089, %v3114
      %v3133 = vmul.f32 %v3090, %v3114
      %v3134 = vmul.f32 %v3091, %v3114
      %v3135 = vmul.f32 %v3092, %v3114
      %v3136 = vmul.f32 %v3093, %v3114
      %v3137 = vmul.f32 %v3094, %v3114
      %v3138 = vmul.f32 %v3095, %v3114
      %v3139 = vmul.f32 %v3096, %v3114
      %v3140 = vmul.f32 %v3097, %v3114
      %v3141 = vmul.f32 %v3098, %v3114
      %v3142 = vmul.f32 %v3099, %v3114
      %v3143 = vmul.f32 %v3100, %v3114
      %v3144 = vmul.f32 %v3101, %v3114
      %v3145 = vmul.f32 %v3102, %v3114
      %v3146 = vmul.f32 %v3103, %v3114
      %v3147 = vmul.f32 %v3104, %v3114
      %v3148 = vmul.f32 %v3105, %v3114
      %v3149 = vmul.f32 %v3106, %v3114
      %v3150 = vmul.f32 %v3107, %v3114
      %v3151 = vmul.f32 %v3108, %v3114
      %v3152 = vld [vmem:[%s8] sm:$0x1]
      %v3154 = vlaneseq
      %v3155 = vshrl.u32 %v3154, 7
      %v3156 = vsub.s32 0, %v3155
      %v3157 = vrot.slane %v3152, %v3156
      %v3159 = vadd.f32 %v3116, %v3157
      %v3160 = vadd.f32 %v3117, %v3157
      %v3161 = vadd.f32 %v3118, %v3157
      %v3162 = vadd.f32 %v3119, %v3157
      %v3163 = vadd.f32 %v3120, %v3157
      %v3164 = vadd.f32 %v3121, %v3157
      %v3165 = vadd.f32 %v3122, %v3157
      %v3166 = vadd.f32 %v3123, %v3157
      %v3167 = vadd.f32 %v3124, %v3157
      %v3168 = vadd.f32 %v3125, %v3157
      %v3169 = vadd.f32 %v3126, %v3157
      %v3170 = vadd.f32 %v3127, %v3157
      %v3171 = vadd.f32 %v3128, %v3157
      %v3172 = vadd.f32 %v3129, %v3157
      %v3173 = vadd.f32 %v3130, %v3157
      %v3174 = vadd.f32 %v3131, %v3157
      %v3175 = vadd.f32 %v3132, %v3157
      %v3176 = vadd.f32 %v3133, %v3157
      %v3177 = vadd.f32 %v3134, %v3157
      %v3178 = vadd.f32 %v3135, %v3157
      %v3179 = vadd.f32 %v3136, %v3157
      %v3180 = vadd.f32 %v3137, %v3157
      %v3181 = vadd.f32 %v3138, %v3157
      %v3182 = vadd.f32 %v3139, %v3157
      %v3183 = vadd.f32 %v3140, %v3157
      %v3184 = vadd.f32 %v3141, %v3157
      %v3185 = vadd.f32 %v3142, %v3157
      %v3186 = vadd.f32 %v3143, %v3157
      %v3187 = vadd.f32 %v3144, %v3157
      %v3188 = vadd.f32 %v3145, %v3157
      %v3189 = vadd.f32 %v3146, %v3157
      %v3190 = vadd.f32 %v3147, %v3157
      %v3191 = vadd.f32 %v3148, %v3157
      %v3192 = vadd.f32 %v3149, %v3157
      %v3193 = vadd.f32 %v3150, %v3157
      %v3194 = vadd.f32 %v3151, %v3157
      %v3195 = vld [vmem:[%s9] sm:$0x3]
      %v3197 = vsel %vm456, %v3159, 0
      %v3200 = vsel %vm456, %v3160, 0
      %v3203 = vsel %vm456, %v3161, 0
      %v3206 = vsel %vm456, %v3162, 0
      %v3209 = vsel %vm456, %v3163, 0
      %v3212 = vsel %vm456, %v3164, 0
      %v3215 = vsel %vm456, %v3165, 0
      %v3218 = vsel %vm456, %v3166, 0
      %v3221 = vsel %vm456, %v3167, 0
      %v3224 = vsel %vm456, %v3168, 0
      %v3227 = vsel %vm456, %v3169, 0
      %v3230 = vsel %vm456, %v3170, 0
      %v3233 = vsel %vm456, %v3171, 0
      %v3236 = vsel %vm456, %v3172, 0
      %v3239 = vsel %vm456, %v3173, 0
      %v3242 = vsel %vm456, %v3174, 0
      %v3245 = vsel %vm456, %v3175, 0
      %v3248 = vsel %vm456, %v3176, 0
      %v3251 = vsel %vm456, %v3177, 0
      %v3254 = vsel %vm456, %v3178, 0
      %v3257 = vsel %vm456, %v3179, 0
      %v3260 = vsel %vm456, %v3180, 0
      %v3263 = vsel %vm456, %v3181, 0
      %v3266 = vsel %vm456, %v3182, 0
      %v3269 = vsel %vm456, %v3183, 0
      %v3272 = vsel %vm456, %v3184, 0
      %v3275 = vsel %vm456, %v3185, 0
      %v3278 = vsel %vm456, %v3186, 0
      %v3281 = vsel %vm456, %v3187, 0
      %v3284 = vsel %vm456, %v3188, 0
      %v3287 = vsel %vm456, %v3189, 0
      %v3290 = vsel %vm456, %v3190, 0
      %v3293 = vsel %vm456, %v3191, 0
      %v3296 = vsel %vm456, %v3192, 0
      %v3299 = vsel %vm456, %v3193, 0
      %v3302 = vsel %vm456, %v3194, 0
      %v3305 = vsel %vm580, %v3195, 0
      %3307 = vmatprep.subr.mxu0 0.0
      %3308 = vmatpush1.msra.mxu0 %v3305
      %3309 = vmatprep.subr.mxu0 0.0
      %3310 = vmatpush1.msra.mxu0 0.0
      %3311 = vmatprep.subr.mxu0 0.0
      %3312 = vmatpush1.msra.mxu0 0.0
      %3313 = vmatprep.subr.mxu0 0.0
      %3314 = vmatpush1.msra.mxu0 0.0
      %3315 = vmatprep.subr.mxu0 0.0
      %3316 = vmatpush1.msra.mxu0 0.0
      %3317 = vmatprep.subr.mxu0 0.0
      %3318 = vmatpush1.msra.mxu0 0.0
      %3319 = vmatprep.subr.mxu0 0.0
      %3320 = vmatpush1.msra.mxu0 0.0
      %3321 = vmatprep.subr.mxu0 0.0
      %3322 = vmatpush1.msra.mxu0 0.0
      %3323 = vmatprep.subr.mxu0 0.0
      %3324 = vmatpush1.msra.mxu0 0.0
      %3325 = vmatprep.subr.mxu0 0.0
      %3326 = vmatpush1.msra.mxu0 0.0
      %3327 = vmatprep.subr.mxu0 0.0
      %3328 = vmatpush1.msra.mxu0 0.0
      %3329 = vmatprep.subr.mxu0 0.0
      %3330 = vmatpush1.msra.mxu0 0.0
      %3331 = vmatprep.subr.mxu0 0.0
      %3332 = vmatpush1.msra.mxu0 0.0
      %3333 = vmatprep.subr.mxu0 0.0
      %3334 = vmatpush1.msra.mxu0 0.0
      %3335 = vmatprep.subr.mxu0 0.0
      %3336 = vmatpush1.msra.mxu0 0.0
      %3337 = vmatprep.subr.mxu0 0.0
      %3338 = vmatpush1.msra.mxu0 0.0
      %3339 = vmatprep.subr.mxu0 0.0
      %3340 = vmatpush1.msra.mxu0 0.0
      %3341 = vmatprep.subr.mxu0 0.0
      %3342 = vmatpush1.msra.mxu0 0.0
      %3343 = vmatprep.subr.mxu0 0.0
      %3344 = vmatpush1.msra.mxu0 0.0
      %3345 = vmatprep.subr.mxu0 0.0
      %3346 = vmatpush1.msra.mxu0 0.0
      %3347 = vmatprep.subr.mxu0 0.0
      %3348 = vmatpush1.msra.mxu0 0.0
      %3349 = vmatprep.subr.mxu0 0.0
      %3350 = vmatpush1.msra.mxu0 0.0
      %3351 = vmatprep.subr.mxu0 0.0
      %3352 = vmatpush1.msra.mxu0 0.0
      %3353 = vmatprep.subr.mxu0 0.0
      %3354 = vmatpush1.msra.mxu0 0.0
      %3355 = vmatprep.subr.mxu0 0.0
      %3356 = vmatpush1.msra.mxu0 0.0
      %3357 = vmatprep.subr.mxu0 0.0
      %3358 = vmatpush1.msra.mxu0 0.0
      %3359 = vmatprep.subr.mxu0 0.0
      %3360 = vmatpush1.msra.mxu0 0.0
      %3361 = vmatprep.subr.mxu0 0.0
      %3362 = vmatpush1.msra.mxu0 0.0
      %3363 = vmatprep.subr.mxu0 0.0
      %3364 = vmatpush1.msra.mxu0 0.0
      %3365 = vmatprep.subr.mxu0 0.0
      %3366 = vmatpush1.msra.mxu0 0.0
      %3367 = vmatprep.subr.mxu0 0.0
      %3368 = vmatpush1.msra.mxu0 0.0
      %3369 = vmatprep.subr.mxu0 0.0
      %3370 = vmatpush1.msra.mxu0 0.0
      %3371 = vmatprep.mubr.f32.mxu0 0.0
      %3372 = vmatmul.mubr.f32.gmra.mrb[0].mxu0 %v3197
      %v3373 = vpop.f32.mrb[0].mxu0
      %v3374 = vadd.f32 0.0, %v3373
      %v3375 = vpop.f32.mrb[0].mxu0
      %3376 = vmatprep.mubr.f32.mxu0 0.0
      %3377 = vmatmul.mubr.f32.gmra.mrb[0].mxu0 %v3200
      %v3378 = vpop.f32.mrb[0].mxu0
      %v3379 = vadd.f32 0.0, %v3378
      %v3380 = vpop.f32.mrb[0].mxu0
      %3381 = vmatprep.mubr.f32.mxu0 0.0
      %3382 = vmatmul.mubr.f32.gmra.mrb[0].mxu0 %v3203
      %v3383 = vpop.f32.mrb[0].mxu0
      %v3384 = vadd.f32 0.0, %v3383
      %v3385 = vpop.f32.mrb[0].mxu0
      %3386 = vmatprep.mubr.f32.mxu0 0.0
      %3387 = vmatmul.mubr.f32.gmra.mrb[0].mxu0 %v3206
      %v3388 = vpop.f32.mrb[0].mxu0
      %v3389 = vadd.f32 0.0, %v3388
      %v3390 = vpop.f32.mrb[0].mxu0
      %3391 = vmatprep.mubr.f32.mxu0 0.0
      %3392 = vmatmul.mubr.f32.gmra.mrb[0].mxu0 %v3209
      %v3393 = vpop.f32.mrb[0].mxu0
      %v3394 = vadd.f32 0.0, %v3393
      %v3395 = vpop.f32.mrb[0].mxu0
      %3396 = vmatprep.mubr.f32.mxu0 0.0
      %3397 = vmatmul.mubr.f32.gmra.mrb[0].mxu0 %v3212
      %v3398 = vpop.f32.mrb[0].mxu0
      %v3399 = vadd.f32 0.0, %v3398
      %v3400 = vpop.f32.mrb[0].mxu0
      %3401 = vmatprep.mubr.f32.mxu0 0.0
      %3402 = vmatmul.mubr.f32.gmra.mrb[0].mxu0 %v3215
      %v3403 = vpop.f32.mrb[0].mxu0
      %v3404 = vadd.f32 0.0, %v3403
      %v3405 = vpop.f32.mrb[0].mxu0
      %3406 = vmatprep.mubr.f32.mxu0 0.0
      %3407 = vmatmul.mubr.f32.gmra.mrb[0].mxu0 %v3218
      %v3408 = vpop.f32.mrb[0].mxu0
      %v3409 = vadd.f32 0.0, %v3408
      %v3410 = vpop.f32.mrb[0].mxu0
      %3411 = vmatprep.mubr.f32.mxu0 0.0
      %3412 = vmatmul.mubr.f32.gmra.mrb[0].mxu0 %v3221
      %v3413 = vpop.f32.mrb[0].mxu0
      %v3414 = vadd.f32 0.0, %v3413
      %v3415 = vpop.f32.mrb[0].mxu0
      %3416 = vmatprep.mubr.f32.mxu0 0.0
      %3417 = vmatmul.mubr.f32.gmra.mrb[0].mxu0 %v3224
      %v3418 = vpop.f32.mrb[0].mxu0
      %v3419 = vadd.f32 0.0, %v3418
      %v3420 = vpop.f32.mrb[0].mxu0
      %3421 = vmatprep.mubr.f32.mxu0 0.0
      %3422 = vmatmul.mubr.f32.gmra.mrb[0].mxu0 %v3227
      %v3423 = vpop.f32.mrb[0].mxu0
      %v3424 = vadd.f32 0.0, %v3423
      %v3425 = vpop.f32.mrb[0].mxu0
      %3426 = vmatprep.mubr.f32.mxu0 0.0
      %3427 = vmatmul.mubr.f32.gmra.mrb[0].mxu0 %v3230
      %v3428 = vpop.f32.mrb[0].mxu0
      %v3429 = vadd.f32 0.0, %v3428
      %v3430 = vpop.f32.mrb[0].mxu0
      %3431 = vmatprep.mubr.f32.mxu0 0.0
      %3432 = vmatmul.mubr.f32.gmra.mrb[0].mxu0 %v3233
      %v3433 = vpop.f32.mrb[0].mxu0
      %v3434 = vadd.f32 0.0, %v3433
      %v3435 = vpop.f32.mrb[0].mxu0
      %3436 = vmatprep.mubr.f32.mxu0 0.0
      %3437 = vmatmul.mubr.f32.gmra.mrb[0].mxu0 %v3236
      %v3438 = vpop.f32.mrb[0].mxu0
      %v3439 = vadd.f32 0.0, %v3438
      %v3440 = vpop.f32.mrb[0].mxu0
      %3441 = vmatprep.mubr.f32.mxu0 0.0
      %3442 = vmatmul.mubr.f32.gmra.mrb[0].mxu0 %v3239
      %v3443 = vpop.f32.mrb[0].mxu0
      %v3444 = vadd.f32 0.0, %v3443
      %v3445 = vpop.f32.mrb[0].mxu0
      %3446 = vmatprep.mubr.f32.mxu0 0.0
      %3447 = vmatmul.mubr.f32.gmra.mrb[0].mxu0 %v3242
      %v3448 = vpop.f32.mrb[0].mxu0
      %v3449 = vadd.f32 0.0, %v3448
      %v3450 = vpop.f32.mrb[0].mxu0
      %3451 = vmatprep.mubr.f32.mxu0 0.0
      %3452 = vmatmul.mubr.f32.gmra.mrb[0].mxu0 %v3245
      %v3453 = vpop.f32.mrb[0].mxu0
      %v3454 = vadd.f32 0.0, %v3453
      %v3455 = vpop.f32.mrb[0].mxu0
      %3456 = vmatprep.mubr.f32.mxu0 0.0
      %3457 = vmatmul.mubr.f32.gmra.mrb[0].mxu0 %v3248
      %v3458 = vpop.f32.mrb[0].mxu0
      %v3459 = vadd.f32 0.0, %v3458
      %v3460 = vpop.f32.mrb[0].mxu0
      %3461 = vmatprep.mubr.f32.mxu0 0.0
      %3462 = vmatmul.mubr.f32.gmra.mrb[0].mxu0 %v3251
      %v3463 = vpop.f32.mrb[0].mxu0
      %v3464 = vadd.f32 0.0, %v3463
      %v3465 = vpop.f32.mrb[0].mxu0
      %3466 = vmatprep.mubr.f32.mxu0 0.0
      %3467 = vmatmul.mubr.f32.gmra.mrb[0].mxu0 %v3254
      %v3468 = vpop.f32.mrb[0].mxu0
      %v3469 = vadd.f32 0.0, %v3468
      %v3470 = vpop.f32.mrb[0].mxu0
      %3471 = vmatprep.mubr.f32.mxu0 0.0
      %3472 = vmatmul.mubr.f32.gmra.mrb[0].mxu0 %v3257
      %v3473 = vpop.f32.mrb[0].mxu0
      %v3474 = vadd.f32 0.0, %v3473
      %v3475 = vpop.f32.mrb[0].mxu0
      %3476 = vmatprep.mubr.f32.mxu0 0.0
      %3477 = vmatmul.mubr.f32.gmra.mrb[0].mxu0 %v3260
      %v3478 = vpop.f32.mrb[0].mxu0
      %v3479 = vadd.f32 0.0, %v3478
      %v3480 = vpop.f32.mrb[0].mxu0
      %3481 = vmatprep.mubr.f32.mxu0 0.0
      %3482 = vmatmul.mubr.f32.gmra.mrb[0].mxu0 %v3263
      %v3483 = vpop.f32.mrb[0].mxu0
      %v3484 = vadd.f32 0.0, %v3483
      %v3485 = vpop.f32.mrb[0].mxu0
      %3486 = vmatprep.mubr.f32.mxu0 0.0
      %3487 = vmatmul.mubr.f32.gmra.mrb[0].mxu0 %v3266
      %v3488 = vpop.f32.mrb[0].mxu0
      %v3489 = vadd.f32 0.0, %v3488
      %v3490 = vpop.f32.mrb[0].mxu0
      %3491 = vmatprep.mubr.f32.mxu0 0.0
      %3492 = vmatmul.mubr.f32.gmra.mrb[0].mxu0 %v3269
      %v3493 = vpop.f32.mrb[0].mxu0
      %v3494 = vadd.f32 0.0, %v3493
      %v3495 = vpop.f32.mrb[0].mxu0
      %3496 = vmatprep.mubr.f32.mxu0 0.0
      %3497 = vmatmul.mubr.f32.gmra.mrb[0].mxu0 %v3272
      %v3498 = vpop.f32.mrb[0].mxu0
      %v3499 = vadd.f32 0.0, %v3498
      %v3500 = vpop.f32.mrb[0].mxu0
      %3501 = vmatprep.mubr.f32.mxu0 0.0
      %3502 = vmatmul.mubr.f32.gmra.mrb[0].mxu0 %v3275
      %v3503 = vpop.f32.mrb[0].mxu0
      %v3504 = vadd.f32 0.0, %v3503
      %v3505 = vpop.f32.mrb[0].mxu0
      %3506 = vmatprep.mubr.f32.mxu0 0.0
      %3507 = vmatmul.mubr.f32.gmra.mrb[0].mxu0 %v3278
      %v3508 = vpop.f32.mrb[0].mxu0
      %v3509 = vadd.f32 0.0, %v3508
      %v3510 = vpop.f32.mrb[0].mxu0
      %3511 = vmatprep.mubr.f32.mxu0 0.0
      %3512 = vmatmul.mubr.f32.gmra.mrb[0].mxu0 %v3281
      %v3513 = vpop.f32.mrb[0].mxu0
      %v3514 = vadd.f32 0.0, %v3513
      %v3515 = vpop.f32.mrb[0].mxu0
      %3516 = vmatprep.mubr.f32.mxu0 0.0
      %3517 = vmatmul.mubr.f32.gmra.mrb[0].mxu0 %v3284
      %v3518 = vpop.f32.mrb[0].mxu0
      %v3519 = vadd.f32 0.0, %v3518
      %v3520 = vpop.f32.mrb[0].mxu0
      %3521 = vmatprep.mubr.f32.mxu0 0.0
      %3522 = vmatmul.mubr.f32.gmra.mrb[0].mxu0 %v3287
      %v3523 = vpop.f32.mrb[0].mxu0
      %v3524 = vadd.f32 0.0, %v3523
      %v3525 = vpop.f32.mrb[0].mxu0
      %3526 = vmatprep.mubr.f32.mxu0 0.0
      %3527 = vmatmul.mubr.f32.gmra.mrb[0].mxu0 %v3290
      %v3528 = vpop.f32.mrb[0].mxu0
      %v3529 = vadd.f32 0.0, %v3528
      %v3530 = vpop.f32.mrb[0].mxu0
      %3531 = vmatprep.mubr.f32.mxu0 0.0
      %3532 = vmatmul.mubr.f32.gmra.mrb[0].mxu0 %v3293
      %v3533 = vpop.f32.mrb[0].mxu0
      %v3534 = vadd.f32 0.0, %v3533
      %v3535 = vpop.f32.mrb[0].mxu0
      %3536 = vmatprep.mubr.f32.mxu0 0.0
      %3537 = vmatmul.mubr.f32.gmra.mrb[0].mxu0 %v3296
      %v3538 = vpop.f32.mrb[0].mxu0
      %v3539 = vadd.f32 0.0, %v3538
      %v3540 = vpop.f32.mrb[0].mxu0
      %3541 = vmatprep.mubr.f32.mxu0 0.0
      %3542 = vmatmul.mubr.f32.gmra.mrb[0].mxu0 %v3299
      %v3543 = vpop.f32.mrb[0].mxu0
      %v3544 = vadd.f32 0.0, %v3543
      %v3545 = vpop.f32.mrb[0].mxu0
      %3546 = vmatprep.mubr.f32.mxu0 0.0
      %3547 = vmatmul.mubr.f32.gmra.mrb[0].mxu0 %v3302
      %v3548 = vpop.f32.mrb[0].mxu0
      %v3549 = vadd.f32 0.0, %v3548
      %v3550 = vpop.f32.mrb[0].mxu0
      %3551 = vdwg.mxu0
      %v3552 = vld [vmem:[%s10] sm:$0x1]
      %v3554 = vlaneseq
      %v3555 = vshrl.u32 %v3554, 7
      %v3556 = vsub.s32 0, %v3555
      %v3557 = vrot.slane %v3552, %v3556
      %v3559 = vmul.f32 %v3374, %v3557
      %v3560 = vmul.f32 %v3379, %v3557
      %v3561 = vmul.f32 %v3384, %v3557
      %v3562 = vmul.f32 %v3389, %v3557
      %v3563 = vmul.f32 %v3394, %v3557
      %v3564 = vmul.f32 %v3399, %v3557
      %v3565 = vmul.f32 %v3404, %v3557
      %v3566 = vmul.f32 %v3409, %v3557
      %v3567 = vmul.f32 %v3414, %v3557
      %v3568 = vmul.f32 %v3419, %v3557
      %v3569 = vmul.f32 %v3424, %v3557
      %v3570 = vmul.f32 %v3429, %v3557
      %v3571 = vmul.f32 %v3434, %v3557
      %v3572 = vmul.f32 %v3439, %v3557
      %v3573 = vmul.f32 %v3444, %v3557
      %v3574 = vmul.f32 %v3449, %v3557
      %v3575 = vmul.f32 %v3454, %v3557
      %v3576 = vmul.f32 %v3459, %v3557
      %v3577 = vmul.f32 %v3464, %v3557
      %v3578 = vmul.f32 %v3469, %v3557
      %v3579 = vmul.f32 %v3474, %v3557
      %v3580 = vmul.f32 %v3479, %v3557
      %v3581 = vmul.f32 %v3484, %v3557
      %v3582 = vmul.f32 %v3489, %v3557
      %v3583 = vmul.f32 %v3494, %v3557
      %v3584 = vmul.f32 %v3499, %v3557
      %v3585 = vmul.f32 %v3504, %v3557
      %v3586 = vmul.f32 %v3509, %v3557
      %v3587 = vmul.f32 %v3514, %v3557
      %v3588 = vmul.f32 %v3519, %v3557
      %v3589 = vmul.f32 %v3524, %v3557
      %v3590 = vmul.f32 %v3529, %v3557
      %v3591 = vmul.f32 %v3534, %v3557
      %v3592 = vmul.f32 %v3539, %v3557
      %v3593 = vmul.f32 %v3544, %v3557
      %v3594 = vmul.f32 %v3549, %v3557
      %v3595 = vld [vmem:[%s11] sm:$0x1]
      %v3597 = vlaneseq
      %v3598 = vshrl.u32 %v3597, 7
      %v3599 = vsub.s32 0, %v3598
      %v3600 = vrot.slane %v3595, %v3599
      %v3602 = vadd.f32 %v3559, %v3600
      %v3603 = vadd.f32 %v3560, %v3600
      %v3604 = vadd.f32 %v3561, %v3600
      %v3605 = vadd.f32 %v3562, %v3600
      %v3606 = vadd.f32 %v3563, %v3600
      %v3607 = vadd.f32 %v3564, %v3600
      %v3608 = vadd.f32 %v3565, %v3600
      %v3609 = vadd.f32 %v3566, %v3600
      %v3610 = vadd.f32 %v3567, %v3600
      %v3611 = vadd.f32 %v3568, %v3600
      %v3612 = vadd.f32 %v3569, %v3600
      %v3613 = vadd.f32 %v3570, %v3600
      %v3614 = vadd.f32 %v3571, %v3600
      %v3615 = vadd.f32 %v3572, %v3600
      %v3616 = vadd.f32 %v3573, %v3600
      %v3617 = vadd.f32 %v3574, %v3600
      %v3618 = vadd.f32 %v3575, %v3600
      %v3619 = vadd.f32 %v3576, %v3600
      %v3620 = vadd.f32 %v3577, %v3600
      %v3621 = vadd.f32 %v3578, %v3600
      %v3622 = vadd.f32 %v3579, %v3600
      %v3623 = vadd.f32 %v3580, %v3600
      %v3624 = vadd.f32 %v3581, %v3600
      %v3625 = vadd.f32 %v3582, %v3600
      %v3626 = vadd.f32 %v3583, %v3600
      %v3627 = vadd.f32 %v3584, %v3600
      %v3628 = vadd.f32 %v3585, %v3600
      %v3629 = vadd.f32 %v3586, %v3600
      %v3630 = vadd.f32 %v3587, %v3600
      %v3631 = vadd.f32 %v3588, %v3600
      %v3632 = vadd.f32 %v3589, %v3600
      %v3633 = vadd.f32 %v3590, %v3600
      %v3634 = vadd.f32 %v3591, %v3600
      %v3635 = vadd.f32 %v3592, %v3600
      %v3636 = vadd.f32 %v3593, %v3600
      %v3637 = vadd.f32 %v3594, %v3600
      %v3638 = vmax.f32 %v3602, 0.0
      %v3639 = vmax.f32 %v3603, 0.0
      %v3640 = vmax.f32 %v3604, 0.0
      %v3641 = vmax.f32 %v3605, 0.0
      %v3642 = vmax.f32 %v3606, 0.0
      %v3643 = vmax.f32 %v3607, 0.0
      %v3644 = vmax.f32 %v3608, 0.0
      %v3645 = vmax.f32 %v3609, 0.0
      %v3646 = vmax.f32 %v3610, 0.0
      %v3647 = vmax.f32 %v3611, 0.0
      %v3648 = vmax.f32 %v3612, 0.0
      %v3649 = vmax.f32 %v3613, 0.0
      %v3650 = vmax.f32 %v3614, 0.0
      %v3651 = vmax.f32 %v3615, 0.0
      %v3652 = vmax.f32 %v3616, 0.0
      %v3653 = vmax.f32 %v3617, 0.0
      %v3654 = vmax.f32 %v3618, 0.0
      %v3655 = vmax.f32 %v3619, 0.0
      %v3656 = vmax.f32 %v3620, 0.0
      %v3657 = vmax.f32 %v3621, 0.0
      %v3658 = vmax.f32 %v3622, 0.0
      %v3659 = vmax.f32 %v3623, 0.0
      %v3660 = vmax.f32 %v3624, 0.0
      %v3661 = vmax.f32 %v3625, 0.0
      %v3662 = vmax.f32 %v3626, 0.0
      %v3663 = vmax.f32 %v3627, 0.0
      %v3664 = vmax.f32 %v3628, 0.0
      %v3665 = vmax.f32 %v3629, 0.0
      %v3666 = vmax.f32 %v3630, 0.0
      %v3667 = vmax.f32 %v3631, 0.0
      %v3668 = vmax.f32 %v3632, 0.0
      %v3669 = vmax.f32 %v3633, 0.0
      %v3670 = vmax.f32 %v3634, 0.0
      %v3671 = vmax.f32 %v3635, 0.0
      %v3672 = vmax.f32 %v3636, 0.0
      %v3673 = vmax.f32 %v3637, 0.0
      %v3674 = vrot.slane %v416, 3
      %v3675 = vrot.slane %v417, 3
      %v3676 = vsel %vm2069, %v3674, %v3675
      %v3677 = vrot.slane %v418, 3
      %v3678 = vsel %vm2069, %v3675, %v3677
      %v3679 = vrot.slane %v419, 3
      %v3680 = vsel %vm2069, %v3677, %v3679
      %v3681 = vrot.slane %v420, 3
      %v3682 = vsel %vm2069, %v3679, %v3681
      %v3683 = vrot.slane %v421, 3
      %v3684 = vsel %vm2069, %v3681, %v3683
      %v3685 = vrot.slane %v422, 3
      %v3686 = vsel %vm2069, %v3683, %v3685
      %v3687 = vrot.slane %v423, 3
      %v3688 = vsel %vm2069, %v3685, %v3687
      %v3689 = vrot.slane %v424, 3
      %v3690 = vsel %vm2069, %v3687, %v3689
      %v3691 = vrot.slane %v425, 3
      %v3692 = vsel %vm2069, %v3689, %v3691
      %v3693 = vrot.slane %v426, 3
      %v3694 = vsel %vm2069, %v3691, %v3693
      %v3695 = vrot.slane %v427, 3
      %v3696 = vsel %vm2069, %v3693, %v3695
      %v3697 = vrot.slane %v428, 3
      %v3698 = vsel %vm2069, %v3695, %v3697
      %v3699 = vrot.slane %v429, 3
      %v3700 = vsel %vm2069, %v3697, %v3699
      %v3701 = vrot.slane %v430, 3
      %v3702 = vsel %vm2069, %v3699, %v3701
      %v3703 = vrot.slane %v431, 3
      %v3704 = vsel %vm2069, %v3701, %v3703
      %v3705 = vrot.slane %v432, 3
      %v3706 = vsel %vm2069, %v3703, %v3705
      %v3707 = vrot.slane %v433, 3
      %v3708 = vsel %vm2069, %v3705, %v3707
      %v3709 = vrot.slane %v434, 3
      %v3710 = vsel %vm2069, %v3707, %v3709
      %v3711 = vrot.slane %v435, 3
      %v3712 = vsel %vm2069, %v3709, %v3711
      %v3713 = vrot.slane %v436, 3
      %v3714 = vsel %vm2069, %v3711, %v3713
      %v3715 = vrot.slane %v437, 3
      %v3716 = vsel %vm2069, %v3713, %v3715
      %v3717 = vrot.slane %v438, 3
      %v3718 = vsel %vm2069, %v3715, %v3717
      %v3719 = vrot.slane %v439, 3
      %v3720 = vsel %vm2069, %v3717, %v3719
      %v3721 = vrot.slane %v440, 3
      %v3722 = vsel %vm2069, %v3719, %v3721
      %v3723 = vrot.slane %v441, 3
      %v3724 = vsel %vm2069, %v3721, %v3723
      %v3725 = vrot.slane %v442, 3
      %v3726 = vsel %vm2069, %v3723, %v3725
      %v3727 = vrot.slane %v443, 3
      %v3728 = vsel %vm2069, %v3725, %v3727
      %v3729 = vrot.slane %v444, 3
      %v3730 = vsel %vm2069, %v3727, %v3729
      %v3731 = vrot.slane %v445, 3
      %v3732 = vsel %vm2069, %v3729, %v3731
      %v3733 = vrot.slane %v446, 3
      %v3734 = vsel %vm2069, %v3731, %v3733
      %v3735 = vrot.slane %v447, 3
      %v3736 = vsel %vm2069, %v3733, %v3735
      %v3737 = vrot.slane %v448, 3
      %v3738 = vsel %vm2069, %v3735, %v3737
      %v3739 = vrot.slane %v449, 3
      %v3740 = vsel %vm2069, %v3737, %v3739
      %v3741 = vrot.slane %v450, 3
      %v3742 = vsel %vm2069, %v3739, %v3741
      %v3743 = vrot.slane %v451, 3
      %v3744 = vsel %vm2069, %v3741, %v3743
      %v3745 = vrot.slane %v452, 3
      %v3746 = vsel %vm2069, %v3743, %v3745
      %v3783 = vadd.f32 %v3638, %v3676
      %v3784 = vadd.f32 %v3639, %v3678
      %v3785 = vadd.f32 %v3640, %v3680
      %v3786 = vadd.f32 %v3641, %v3682
      %v3787 = vadd.f32 %v3642, %v3684
      %v3788 = vadd.f32 %v3643, %v3686
      %v3789 = vadd.f32 %v3644, %v3688
      %v3790 = vadd.f32 %v3645, %v3690
      %v3791 = vadd.f32 %v3646, %v3692
      %v3792 = vadd.f32 %v3647, %v3694
      %v3793 = vadd.f32 %v3648, %v3696
      %v3794 = vadd.f32 %v3649, %v3698
      %v3795 = vadd.f32 %v3650, %v3700
      %v3796 = vadd.f32 %v3651, %v3702
      %v3797 = vadd.f32 %v3652, %v3704
      %v3798 = vadd.f32 %v3653, %v3706
      %v3799 = vadd.f32 %v3654, %v3708
      %v3800 = vadd.f32 %v3655, %v3710
      %v3801 = vadd.f32 %v3656, %v3712
      %v3802 = vadd.f32 %v3657, %v3714
      %v3803 = vadd.f32 %v3658, %v3716
      %v3804 = vadd.f32 %v3659, %v3718
      %v3805 = vadd.f32 %v3660, %v3720
      %v3806 = vadd.f32 %v3661, %v3722
      %v3807 = vadd.f32 %v3662, %v3724
      %v3808 = vadd.f32 %v3663, %v3726
      %v3809 = vadd.f32 %v3664, %v3728
      %v3810 = vadd.f32 %v3665, %v3730
      %v3811 = vadd.f32 %v3666, %v3732
      %v3812 = vadd.f32 %v3667, %v3734
      %v3813 = vadd.f32 %v3668, %v3736
      %v3814 = vadd.f32 %v3669, %v3738
      %v3815 = vadd.f32 %v3670, %v3740
      %v3816 = vadd.f32 %v3671, %v3742
      %v3817 = vadd.f32 %v3672, %v3744
      %v3818 = vadd.f32 %v3673, %v3746
      %3819 = vst.msk [vmem:[%s413] sm:$0xff] %vm456, %v3783
      %3820 = vst.msk [vmem:[%s413 + $0x8] sm:$0xff] %vm456, %v3784
      %3821 = vst.msk [vmem:[%s413 + $0x10] sm:$0xff] %vm456, %v3785
      %3822 = vst.msk [vmem:[%s413 + $0x18] sm:$0xff] %vm456, %v3786
      %3823 = vst.msk [vmem:[%s413 + $0x20] sm:$0xff] %vm456, %v3787
      %3824 = vst.msk [vmem:[%s413 + $0x28] sm:$0xff] %vm456, %v3788
      %3825 = vst.msk [vmem:[%s413 + $0x30] sm:$0xff] %vm456, %v3789
      %3826 = vst.msk [vmem:[%s413 + $0x38] sm:$0xff] %vm456, %v3790
      %3827 = vst.msk [vmem:[%s413 + $0x40] sm:$0xff] %vm456, %v3791
      %3828 = vst.msk [vmem:[%s413 + $0x48] sm:$0xff] %vm456, %v3792
      %3829 = vst.msk [vmem:[%s413 + $0x50] sm:$0xff] %vm456, %v3793
      %3830 = vst.msk [vmem:[%s413 + $0x58] sm:$0xff] %vm456, %v3794
      %3831 = vst.msk [vmem:[%s413 + $0x60] sm:$0xff] %vm456, %v3795
      %3832 = vst.msk [vmem:[%s413 + $0x68] sm:$0xff] %vm456, %v3796
      %3833 = vst.msk [vmem:[%s413 + $0x70] sm:$0xff] %vm456, %v3797
      %3834 = vst.msk [vmem:[%s413 + $0x78] sm:$0xff] %vm456, %v3798
      %3835 = vst.msk [vmem:[%s413 + $0x80] sm:$0xff] %vm456, %v3799
      %3836 = vst.msk [vmem:[%s413 + $0x88] sm:$0xff] %vm456, %v3800
      %3837 = vst.msk [vmem:[%s413 + $0x90] sm:$0xff] %vm456, %v3801
      %3838 = vst.msk [vmem:[%s413 + $0x98] sm:$0xff] %vm456, %v3802
      %3839 = vst.msk [vmem:[%s413 + $0xa0] sm:$0xff] %vm456, %v3803
      %3840 = vst.msk [vmem:[%s413 + $0xa8] sm:$0xff] %vm456, %v3804
      %3841 = vst.msk [vmem:[%s413 + $0xb0] sm:$0xff] %vm456, %v3805
      %3842 = vst.msk [vmem:[%s413 + $0xb8] sm:$0xff] %vm456, %v3806
      %3843 = vst.msk [vmem:[%s413 + $0xc0] sm:$0xff] %vm456, %v3807
      %3844 = vst.msk [vmem:[%s413 + $0xc8] sm:$0xff] %vm456, %v3808
      %3845 = vst.msk [vmem:[%s413 + $0xd0] sm:$0xff] %vm456, %v3809
      %3846 = vst.msk [vmem:[%s413 + $0xd8] sm:$0xff] %vm456, %v3810
      %3847 = vst.msk [vmem:[%s413 + $0xe0] sm:$0xff] %vm456, %v3811
      %3848 = vst.msk [vmem:[%s413 + $0xe8] sm:$0xff] %vm456, %v3812
      %3849 = vst.msk [vmem:[%s413 + $0xf0] sm:$0xff] %vm456, %v3813
      %3850 = vst.msk [vmem:[%s413 + $0xf8] sm:$0xff] %vm456, %v3814
      %3851 = vst.msk [vmem:[%s413 + $0x100] sm:$0xff] %vm456, %v3815
      %3852 = vst.msk [vmem:[%s413 + $0x108] sm:$0xff] %vm456, %v3816
      %3853 = vst.msk [vmem:[%s413 + $0x110] sm:$0xff] %vm456, %v3817
      %3854 = vst.msk [vmem:[%s413 + $0x118] sm:$0xff] %vm456, %v3818
      %p3855 = scmp.lt.s32.totalorder %s23, 1
      %s3856 = scalar_select %p3855, %s23, 1
      %s3857 = smul.addr %s3856, 36
      %s3858 = smul.addr %s3857, 8
      %s3859 = scalar_lea.vmem %s12, %s3858
      // Predicated region
      $region69: #{tpu_custom_call.1} parent=67 // pred_check
        %p3860 = pneg %p298
      $region70: #{tpu_custom_call.1} parent=67 // pred_check_branch
        %3862 = sbr.rel (%p3860) target = $region72
      $region71: #{tpu_custom_call.1} parent=67 // pred_region
        _
      $region72: #{tpu_custom_call.1} parent=67 // pred_fallthru
        _
    $region68: #{tpu_custom_call.1} parent=5 // pred_fallthru
      _
    %p3863 = scmp.le.s32.totalorder 2, %s18
    // Predicated region
    $region73: #{tpu_custom_call.1} parent=5 // pred_check
      %p3864 = pneg %p3863
    $region74: #{tpu_custom_call.1} parent=5 // pred_check_branch
      %3866 = sbr.rel (%p3864) target = $region76
    $region75: #{tpu_custom_call.1} parent=5 // pred_region
      %s3867 = ssub.s32 %s18, 2
      // Predicated region
      $region77: #{tpu_custom_call.1} parent=75 // pred_check
        %p3868 = pneg %p304
      $region78: #{tpu_custom_call.1} parent=75 // pred_check_branch
        %3870 = sbr.rel (%p3868) target = $region80
      $region79: #{tpu_custom_call.1} parent=75 // pred_region
        %p3871 = scmp.lt.s32.totalorder %s24, 1
        %s3872 = scalar_select %p3871, %s24, 1
        %s3873 = smul.addr %s3872, 36
        %s3874 = smul.addr %s3873, 8
        %s3875 = scalar_lea.vmem %s12, %s3874
      $region80: #{tpu_custom_call.1} parent=75 // pred_fallthru
        _
    $region76: #{tpu_custom_call.1} parent=5 // pred_fallthru
      _
  $region6: #{tpu_custom_call.1} parent=0 // loop_footer
    %s22 = sadd.s32 1, %s18
  $region7: #{tpu_custom_call.1} parent=0 // loop_footer_branch
    %17 = sbr.rel target = $region3
  $region8: #{tpu_custom_call.1} parent=0 // loop_exit
    _

</llo_original>
